<compile_context>
chip_gen: v7x
topology: tpu7x:2x2x1
jax: 0.10.0
libtpu: 0.0.40
codegen_flags: <defaults>
</compile_context>

<pallas_src>
import jax
import jax.numpy as jnp
from jax import lax
from jax.experimental import pallas as pl
from jax.experimental.pallas import tpu as pltpu

EMB_SIZE = 2        # emb_size in the PyTorch script
CLIP_DIM = 512      # CLIP image-feature width (linear1 input)


def _round_up(x, m):
    return ((x + m - 1) // m) * m


def _chip_config():
    """Per-generation tuning: K-split across TensorCores, target K tile width,
    scoped-VMEM limit and w_clip pipeline depth."""
    kind = ""
    try:
        kind = jax.devices()[0].device_kind.lower()
    except Exception:
        pass
    if "v7" in kind or "7x" in kind:
        # v7x: 2 TensorCores/chip, 64 MiB VMEM per core, ~3.2 TB/s HBM.
        return dict(n_cores=2, tk_target=16 * 1024,
                    vmem_limit=48 * 1024 * 1024, n_buf=2)
    if "v6" in kind:
        # v6e: 1 TensorCore, 128 MiB VMEM, ~1.4 TB/s HBM.
        return dict(n_cores=1, tk_target=16 * 1024,
                    vmem_limit=80 * 1024 * 1024, n_buf=3)
    # v5e and older / unknown: 1 TensorCore, 128 MiB VMEM, slowest HBM --
    # keep the step count low and the DMA stream large & contiguous.
    return dict(n_cores=1, tk_target=16 * 1024,
                vmem_limit=80 * 1024 * 1024, n_buf=3)


def _choose_k_tiling(d_in, n_cores, tk_target):
    """Pick (tk, num_k_per_core, d_in_pad).  tk is independent of d_in's divisor
    structure: inputs are zero padded to d_in_pad = n_cores * num_k * tk.  tk is
    a multiple of 512 (lane/MXU aligned), close to tk_target, with minimal
    padding waste (e.g. d_in=150528 -> tk=15360, 2% padding)."""
    per_core = pl.cdiv(d_in, n_cores)
    num_k = max(1, pl.cdiv(per_core, tk_target))
    tk = _round_up(pl.cdiv(per_core, num_k), 512)
    d_in_pad = n_cores * num_k * tk
    return tk, num_k, d_in_pad


def _make_wclip_spec(tk, index_map, n_buf, total_k_blocks):
    """Full-row (tk, 512) contiguous w_clip tile.  Per-step compute is ~0 (the
    LHS has only B rows), so the loop is back-to-back DMAs; request a 3-deep
    pipeline on single-TC chips when the grid is long enough to benefit."""
    if n_buf > 2 and total_k_blocks >= n_buf:
        try:
            return pl.BlockSpec((tk, CLIP_DIM), index_map,
                                pipeline_mode=pl.Buffered(n_buf))
        except Exception:
            pass  # older Pallas without pipeline_mode: default double buffering
    return pl.BlockSpec((tk, CLIP_DIM), index_map)


def clip_stream_kernel(x_ref, wclip_ref, feat_ref, acc_ref):
    """grid = (n_cores, num_k): axis 0 ("parallel") splits the contraction range
    across TensorCores -- each streams a CONTIGUOUS row range of w_clip; axis 1
    ("arbitrary") walks that range in (tk, 512) full-row tiles.

    x_ref:     (num_k, B, tk)   f32   this core's image slab, VMEM-resident
    wclip_ref: (tk, CLIP_DIM)   bf16  streamed synthetic-CLIP weight tile
    feat_ref:  (1, B, CLIP_DIM) f32   this core's partial CLIP-feature sum
    acc_ref:   (B, CLIP_DIM)    f32   VMEM accumulator (persists over k)
    """
    k = pl.program_id(1)

    @pl.when(k == 0)
    def _():
        acc_ref[...] = jnp.zeros_like(acc_ref)

    # In-kernel f32 -> half cast of the image tile (no wrapper HBM round trip);
    # accumulate the MXU matmul in f32.
    x_tile = x_ref[k].astype(jnp.bfloat16)                 # (B, tk)
    acc_ref[...] += jnp.dot(x_tile, wclip_ref[...],
                            preferred_element_type=jnp.float32)

    @pl.when(k == pl.num_programs(1) - 1)
    def _():
        feat_ref[...] = acc_ref[...][None]                 # (1, B, CLIP_DIM)


def head_kernel(feat_parts_ref, w1_ref, out_ref):
    """Tiny epilogue: sum the per-core partial feature accumulations, round ONCE
    to half precision (torch: fp16 encoder output, then .float()), then the
    bias-free linear1 projection.  Rounding happens AFTER the cross-core sum so
    the K-split does not change numerics.

    feat_parts_ref: (n_cores, B, CLIP_DIM) f32
    w1_ref:         (EMB_SIZE, CLIP_DIM)   f32
    out_ref:        (B, EMB_SIZE)          f32
    """
    feat = jnp.sum(feat_parts_ref[...], axis=0)                      # (B, 512)
    feat = feat.astype(jnp.bfloat16).astype(jnp.float32)             # fp16->f32 stand-in
    # Contract dim 1 of both operands so w1 stays (EMB, 512) lane-dense.
    out_ref[...] = lax.dot_general(
        feat, w1_ref[...],
        dimension_numbers=(((1,), (1,)), ((), ())),
        preferred_element_type=jnp.float32)


def arcface_clip_forward(x_nchw, w_clip, w1):
    """x_nchw: (B, C, H, W) float32 image batch.
       w_clip: (C*H*W, 512) bf16 synthetic CLIP projection weights.
       w1:     (EMB_SIZE, 512) f32 == nn.Linear(512, emb_size, bias=False).weight
    returns (B, EMB_SIZE) float32."""
    B = x_nchw.shape[0]
    d_in = x_nchw.shape[1] * x_nchw.shape[2] * x_nchw.shape[3]
    assert w_clip.shape == (d_in, CLIP_DIM), w_clip.shape
    assert w1.shape == (EMB_SIZE, CLIP_DIM), w1.shape

    cfg = _chip_config()
    n_cores = cfg["n_cores"]
    tk, num_k, d_in_pad = _choose_k_tiling(d_in, n_cores, cfg["tk_target"])
    num_k_total = n_cores * num_k

    # torch .view(B, -1): row-major NCHW flatten (metadata only).
    x_flat = x_nchw.reshape(B, d_in)

    # Zero-pad the contraction axis so tk never depends on d_in's divisors.
    # Padded K rows/cols contribute exactly 0 to the dot product.
    # TODO(synk): in a real model pad w_clip once at parameter-init time, not
    # per forward call.
    if d_in_pad != d_in:
        pad = d_in_pad - d_in
        x_flat = jnp.pad(x_flat, ((0, 0), (0, pad)))
        w_clip = jnp.pad(w_clip, ((0, pad), (0, 0)))

    # Stack x into per-K-tile slabs so each core keeps its whole image slab
    # VMEM-resident (one DMA per core; indexed inside the kernel with x_ref[k]).
    x_stack = x_flat.reshape(B, num_k_total, tk).transpose(1, 0, 2)

    wclip_spec = _make_wclip_spec(
        tk, lambda c, k: (c * num_k + k, 0), cfg["n_buf"], num_k_total)

    flops = 2 * B * d_in_pad * CLIP_DIM + 2 * B * CLIP_DIM * EMB_SIZE
    bytes_accessed = (d_in_pad * CLIP_DIM * 2        # w_clip stream (bf16)
                      + B * d_in_pad * 4             # x (resident, one pass)
                      + n_cores * B * CLIP_DIM * 4   # partial features
                      + EMB_SIZE * CLIP_DIM * 4      # w1
                      + B * EMB_SIZE * 4)            # output

    feat_parts = pl.pallas_call(
        clip_stream_kernel,
        out_shape=jax.ShapeDtypeStruct((n_cores, B, CLIP_DIM), jnp.float32),
        grid_spec=pltpu.PrefetchScalarGridSpec(
            num_scalar_prefetch=0,
            grid=(n_cores, num_k),
            in_specs=[
                pl.BlockSpec((num_k, B, tk), lambda c, k: (c, 0, 0)),
                wclip_spec,
            ],
            out_specs=pl.BlockSpec((1, B, CLIP_DIM), lambda c, k: (c, 0, 0)),
            scratch_shapes=[pltpu.VMEM((B, CLIP_DIM), jnp.float32)],
        ),
        compiler_params=pltpu.CompilerParams(
            dimension_semantics=("parallel", "arbitrary"),
            vmem_limit_bytes=cfg["vmem_limit"],
        ),
        cost_estimate=pl.CostEstimate(
            flops=flops, transcendentals=0, bytes_accessed=bytes_accessed),
    )(x_stack, w_clip)

    # Stage 2 + 3 epilogue (tiny single-block kernel): cross-core sum, one
    # bf16 rounding point, linear1.
    out = pl.pallas_call(
        head_kernel,
        out_shape=jax.ShapeDtypeStruct((B, EMB_SIZE), jnp.float32),
    )(feat_parts, w1)
    return out


if __name__ == "__main__":
    key = jax.random.PRNGKey(0)
    k_x, k_clip, k_w1 = jax.random.split(key, 3)

    # Small CLIP-style image input: batch=2, 3 channels, 32x32 spatial.
    B, C, H, W = 2, 3, 32, 32
    x = jax.random.normal(k_x, (B, C, H, W), dtype=jnp.float32)
    d_in = C * H * W

    # Deterministic synthetic parameters (no checkpoint loading).
    w_clip = (jax.random.normal(k_clip, (d_in, CLIP_DIM), dtype=jnp.float32)
              * (1.0 / jnp.sqrt(d_in))).astype(jnp.bfloat16)
    # nn.Linear(512, emb_size, bias=False).weight has shape (emb_size, 512).
    w1 = (jax.random.normal(k_w1, (EMB_SIZE, CLIP_DIM), dtype=jnp.float32)
          * (1.0 / jnp.sqrt(CLIP_DIM)))

    out = arcface_clip_forward(x, w_clip, w1)
    out = jax.block_until_ready(out)

    # Plain-XLA reference with the same rounding points (loose tolerance: the
    # tiled f32 accumulation order differs slightly from XLA's single dot).
    feat_ref = jnp.dot(x.reshape(B, d_in).astype(jnp.bfloat16), w_clip,
                       preferred_element_type=jnp.float32)
    feat_ref = feat_ref.astype(jnp.bfloat16).astype(jnp.float32)
    ref = jnp.dot(feat_ref, w1.T, preferred_element_type=jnp.float32)

    assert out.shape == (B, EMB_SIZE), out.shape
    assert out.dtype == jnp.float32, out.dtype
    assert bool(jnp.all(jnp.isfinite(out)))
    assert bool(jnp.allclose(out, ref, atol=1e-1, rtol=1e-1)), (out, ref)
    print("KERNEL_OK")
</pallas_src>

<mosaic_0001>
module attributes {stable_mosaic.version = 11 : i64} {
  func.func @clip_stream_kernel(%arg0: i32, %arg1: i32, %arg2: memref<1x2x3072xf32, #tpu.memory_space<vmem>>, %arg3: memref<3072x512xbf16, #tpu.memory_space<vmem>>, %arg4: memref<1x2x512xf32, #tpu.memory_space<vmem>>, %arg5: memref<2x512xf32, #tpu.memory_space<vmem>>) attributes {dimension_semantics = [#tpu.dimension_semantics<parallel>, #tpu.dimension_semantics<arbitrary>], iteration_bounds = array<i64: 1, 1>, scalar_prefetch = 0 : i64, scratch_operands = 1 : i64, tpu.core_type = #tpu.core_type<tc>, window_params = [{transform_indices = @transform_0, window_bounds = array<i64: 1, 2, 3072>}, {transform_indices = @transform_1, window_bounds = array<i64: 3072, 512>}, {transform_indices = @transform_2, window_bounds = array<i64: 1, 2, 512>}]} {
    %c0_i32 = arith.constant 0 : i32
    %0 = arith.cmpi eq, %arg1, %c0_i32 : i32
    %1 = arith.extui %0 : i1 to i32
    %c0_i32_0 = arith.constant 0 : i32
    %2 = arith.cmpi ne, %1, %c0_i32_0 : i32
    scf.if %2 {
      %cst_10 = arith.constant 0.000000e+00 : f32
      %15 = vector.broadcast %cst_10 : f32 to vector<2x512xf32>
      %c0_11 = arith.constant 0 : index
      %c0_12 = arith.constant 0 : index
      %16 = vector.load %arg5[%c0_11, %c0_12] : memref<2x512xf32, #tpu.memory_space<vmem>>, vector<2x512xf32>
      tpu.vector_store %arg5[%c0_11, %c0_12], %15 {strides = array<i32>} : memref<2x512xf32, #tpu.memory_space<vmem>>, vector<2x512xf32>,
    } else {
    }
    %3 = arith.index_cast %arg1 : i32 to index
    %c0 = arith.constant 0 : index
    %c0_1 = arith.constant 0 : index
    %4 = vector.load %arg2[%3, %c0, %c0_1] : memref<1x2x3072xf32, #tpu.memory_space<vmem>>, vector<1x2x3072xf32>
    %5 = vector.shape_cast %4 : vector<1x2x3072xf32> to vector<2x3072xf32>
    %6 = arith.truncf %5 : vector<2x3072xf32> to vector<2x3072xbf16>
    %c0_2 = arith.constant 0 : index
    %c0_3 = arith.constant 0 : index
    %7 = vector.load %arg5[%c0_2, %c0_3] : memref<2x512xf32, #tpu.memory_space<vmem>>, vector<2x512xf32>
    %c0_4 = arith.constant 0 : index
    %c0_5 = arith.constant 0 : index
    %8 = vector.load %arg3[%c0_4, %c0_5] : memref<3072x512xbf16, #tpu.memory_space<vmem>>, vector<3072x512xbf16>
    %cst = arith.constant dense<0.000000e+00> : vector<2x512xf32>
    %9 = tpu.matmul %6, %8, %cst {dimension_numbers = #tpu.dot_dimension_numbers<[1], [0], [0], [1], [0, 0, 1, 1], [], []>} : vector<2x3072xbf16>, vector<3072x512xbf16>, vector<2x512xf32> -> vector<2x512xf32>
    %10 = arith.addf %7, %9 : vector<2x512xf32>
    %c0_6 = arith.constant 0 : index
    %c0_7 = arith.constant 0 : index
    %11 = vector.load %arg5[%c0_6, %c0_7] : memref<2x512xf32, #tpu.memory_space<vmem>>, vector<2x512xf32>
    tpu.vector_store %arg5[%c0_6, %c0_7], %10 {strides = array<i32>} : memref<2x512xf32, #tpu.memory_space<vmem>>, vector<2x512xf32>,
    %c0_i32_8 = arith.constant 0 : i32
    %12 = arith.cmpi eq, %arg1, %c0_i32_8 : i32
    %13 = arith.extui %12 : i1 to i32
    %c0_i32_9 = arith.constant 0 : i32
    %14 = arith.cmpi ne, %13, %c0_i32_9 : i32
    scf.if %14 {
      %c0_10 = arith.constant 0 : index
      %c0_11 = arith.constant 0 : index
      %15 = vector.load %arg5[%c0_10, %c0_11] : memref<2x512xf32, #tpu.memory_space<vmem>>, vector<2x512xf32>
      %16 = vector.shape_cast %15 : vector<2x512xf32> to vector<1x2x512xf32>
      %c0_12 = arith.constant 0 : index
      %c0_13 = arith.constant 0 : index
      %c0_14 = arith.constant 0 : index
      %17 = vector.load %arg4[%c0_12, %c0_13, %c0_14] : memref<1x2x512xf32, #tpu.memory_space<vmem>>, vector<1x2x512xf32>
      tpu.vector_store %arg4[%c0_12, %c0_13, %c0_14], %16 {strides = array<i32>} : memref<1x2x512xf32, #tpu.memory_space<vmem>>, vector<1x2x512xf32>,
    } else {
    }
    return
  }
  func.func @transform_0(%arg0: i32, %arg1: i32) -> (i32, i32, i32) {
    %c0_i32 = arith.constant 0 : i32
    %c0_i32_0 = arith.constant 0 : i32
    %c0_i32_1 = arith.constant 0 : i32
    return %arg0, %c0_i32, %c0_i32_0 : i32, i32, i32
  }
  func.func @transform_1(%arg0: i32, %arg1: i32) -> (i32, i32) {
    %c1_i32 = arith.constant 1 : i32
    %0 = arith.muli %arg0, %c1_i32 : i32
    %1 = arith.addi %0, %arg1 : i32
    %c0_i32 = arith.constant 0 : i32
    %c0_i32_0 = arith.constant 0 : i32
    return %1, %c0_i32 : i32, i32
  }
  func.func @transform_2(%arg0: i32, %arg1: i32) -> (i32, i32, i32) {
    %c0_i32 = arith.constant 0 : i32
    %c0_i32_0 = arith.constant 0 : i32
    %c0_i32_1 = arith.constant 0 : i32
    return %arg0, %c0_i32, %c0_i32_0 : i32, i32, i32
  }
}

</mosaic_0001>

<llo_original>
// kernel: tpu_custom_call.1
$region0: #{tpu_custom_call.1}
  #allocation0 [shape = 'u32[]', space=smem, size = 0x4, offset = 0x4, fixed_abs, tag = 'smem constant byte address 0x4 - core index']
  #allocation1 [shape = 'u32[144,128]{1,0:T(1,128)}', space=vmem, size = 0x12000, scoped, tag = 'internal scratch']
  #allocation2 [shape = 'f32[2,512]{1,0:T(2,128)}', space=vmem, size = 0x1000, scoped, tag = 'scratch operand']
  %s0 = inlined_call_operand.hbm [shape: f32[1,2,3072], index: 0, kind: input, shape index: {}]
  %s1 = inlined_call_operand.hbm [shape: bf16[3072,512], index: 1, kind: input, shape index: {}]
  %s2 = inlined_call_operand.hbm [shape: f32[1,2,512], index: 2, kind: output, shape index: {}]
  %s3 = sld [smem:[#allocation0]]
  $region34: #{tpu_custom_call.1} parent=0
    _
  %s5 = ssub.s32 1, %s3
  %s6 = scalar_select 0, %s5, %s3
  $region1: #{tpu_custom_call.1} parent=0
    #allocation3 [shape = 'u8[24576]{0}', space=vmem, size = 0x6000, scoped, tag = 'input window, operand 0, single buffered']
    #allocation4 [shape = 's32[1]{0}', space=sflag, size = 0x4, scoped, tag = 'scoped memory for tpu_custom_call.1']
    #allocation5 [shape = 's32[1]{0}', space=sflag, size = 0x4, scoped, tag = 'scoped memory for tpu_custom_call.1']
    #allocation6 [shape = 'u8[3145728]{0}', space=vmem, size = 0x300000, scoped, tag = 'input window, operand 1, single buffered']
    #allocation7 [shape = 's32[1]{0}', space=sflag, size = 0x4, scoped, tag = 'scoped memory for tpu_custom_call.1']
    #allocation8 [shape = 'u8[4096]{0}', space=vmem, size = 0x1000, scoped, tag = 'output window, operand 0, single buffered']
    %7 = vsyncpa [#allocation4], 0
    %8 = vsyncpa [#allocation7], 0
    %9 = vsyncpa [#allocation5], 0
    // Predicated region
    $region2: #{tpu_custom_call.1} parent=1 // pred_check
      _
    $region3: #{tpu_custom_call.1} parent=1 // pred_check_branch
      %11 = sbr.rel (0) target = $region5
    $region4: #{tpu_custom_call.1} parent=1 // pred_region
      %s13 = ssub.s32 768, 768
      %14 = vsyncadd [#allocation4], %s13
      %s16 = sshll.u32 [#allocation3], 4
      %s17 = int_to_ptr.vmem [resolvable:$true] %s16
      %19 = dma.hbm_to_vmem [thread:$0]  %s0, 768, %s17, [#allocation4]
    $region5: #{tpu_custom_call.1} parent=1 // pred_fallthru
      _
    // Predicated region
    $region6: #{tpu_custom_call.1} parent=1 // pred_check
      _
    $region7: #{tpu_custom_call.1} parent=1 // pred_check_branch
      %21 = sbr.rel (0) target = $region9
    $region8: #{tpu_custom_call.1} parent=1 // pred_region
      %s22 = sadd.s32 0, 0
      %s23 = smul.u32 384, %s22
      %s25 = ssub.s32 98304, 98304
      %26 = vsyncadd [#allocation7], %s25
      %s27 = smul.addr %s23, 4
      %s28 = smul.addr %s27, 64
      %s29 = scalar_lea.hbm %s1, %s28
      %s30 = sshll.u32 [#allocation6], 4
      %s31 = int_to_ptr.vmem [resolvable:$true] %s30
      %36 = dma.hbm_to_vmem [thread:$0]  %s29, 98304, %s31, [#allocation7], 256, 256, 16
    $region9: #{tpu_custom_call.1} parent=1 // pred_fallthru
      _
    // Predicated region
    $region10: #{tpu_custom_call.1} parent=1 // pred_check
      _
    $region11: #{tpu_custom_call.1} parent=1 // pred_check_branch
      %38 = sbr.rel (0) target = $region13
    $region12: #{tpu_custom_call.1} parent=1 // pred_region
      %39 = dma.done [#allocation4], 768
    $region13: #{tpu_custom_call.1} parent=1 // pred_fallthru
      _
    // Predicated region
    $region14: #{tpu_custom_call.1} parent=1 // pred_check
      _
    $region15: #{tpu_custom_call.1} parent=1 // pred_check_branch
      %41 = sbr.rel (0) target = $region17
    $region16: #{tpu_custom_call.1} parent=1 // pred_region
      %42 = dma.done [#allocation7], 98304
    $region17: #{tpu_custom_call.1} parent=1 // pred_fallthru
      _
    %s43 = sadd.s32 0, 0
    %s44 = smul.u32 384, %s43
    %p45 = scmp.eq.s32.totalorder 0, 0
    // Predicated region
    $region18: #{tpu_custom_call.1} parent=1 // pred_check
      %p46 = pneg %p45
    $region19: #{tpu_custom_call.1} parent=1 // pred_check_branch
      %48 = sbr.rel (%p46) target = $region21
    $region20: #{tpu_custom_call.1} parent=1 // pred_region
      %49 = vst [vmem:[#allocation2] sm:$0xff] 0.0
    $region21: #{tpu_custom_call.1} parent=1 // pred_fallthru
      _
    %s50 = smul.u32 0, 24
    %s51 = smul.addr %s50, 2
    %s52 = scalar_lea.vmem [#allocation3], %s51
    %v53 = vld [vmem:[%s52] sm:$0xff]
    %v54 = vld [vmem:[%s52 + $0x8] sm:$0xff]
    %v55 = vld [vmem:[%s52 + $0x10] sm:$0xff]
    %v56 = vld [vmem:[%s52 + $0x18] sm:$0xff]
    %v57 = vld [vmem:[%s52 + $0x20] sm:$0xff]
    %v58 = vld [vmem:[%s52 + $0x28] sm:$0xff]
    %v65 = vcombine.high %v53, %v53
    %v67 = vunpack.c.l.s4 1983009808
    %v68 = vunpack.c.0.s8 %v67
    %v69 = vlaneseq
    %v70 = vshrl.u32 %v69, 7
    %v71 = vsub.s32 %v68, %v70
    %v72 = vrot.slane %v53, %v71
    %v74 = vunpack.c.l.s4 1983009808
    %v75 = vunpack.c.0.s8 %v74
    %v76 = vlaneseq
    %v77 = vshrl.u32 %v76, 7
    %v78 = vsub.s32 %v75, %v77
    %v79 = vrot.slane %v65, %v78
    %v80 = vcombine.high %v72, %v72
    %v81 = vcombine.high %v79, %v79
    %v82 = vcombine.high %v54, %v54
    %v84 = vunpack.c.l.s4 1983009808
    %v85 = vunpack.c.0.s8 %v84
    %v86 = vlaneseq
    %v87 = vshrl.u32 %v86, 7
    %v88 = vsub.s32 %v85, %v87
    %v89 = vrot.slane %v54, %v88
    %v91 = vunpack.c.l.s4 1983009808
    %v92 = vunpack.c.0.s8 %v91
    %v93 = vlaneseq
    %v94 = vshrl.u32 %v93, 7
    %v95 = vsub.s32 %v92, %v94
    %v96 = vrot.slane %v82, %v95
    %v97 = vcombine.high %v89, %v89
    %v98 = vcombine.high %v96, %v96
    %v99 = vcombine.high %v55, %v55
    %v101 = vunpack.c.l.s4 1983009808
    %v102 = vunpack.c.0.s8 %v101
    %v103 = vlaneseq
    %v104 = vshrl.u32 %v103, 7
    %v105 = vsub.s32 %v102, %v104
    %v106 = vrot.slane %v55, %v105
    %v108 = vunpack.c.l.s4 1983009808
    %v109 = vunpack.c.0.s8 %v108
    %v110 = vlaneseq
    %v111 = vshrl.u32 %v110, 7
    %v112 = vsub.s32 %v109, %v111
    %v113 = vrot.slane %v99, %v112
    %v114 = vcombine.high %v106, %v106
    %v115 = vcombine.high %v113, %v113
    %v116 = vcombine.high %v56, %v56
    %v118 = vunpack.c.l.s4 1983009808
    %v119 = vunpack.c.0.s8 %v118
    %v120 = vlaneseq
    %v121 = vshrl.u32 %v120, 7
    %v122 = vsub.s32 %v119, %v121
    %v123 = vrot.slane %v56, %v122
    %v125 = vunpack.c.l.s4 1983009808
    %v126 = vunpack.c.0.s8 %v125
    %v127 = vlaneseq
    %v128 = vshrl.u32 %v127, 7
    %v129 = vsub.s32 %v126, %v128
    %v130 = vrot.slane %v116, %v129
    %v131 = vcombine.high %v123, %v123
    %v132 = vcombine.high %v130, %v130
    %v133 = vcombine.high %v57, %v57
    %v135 = vunpack.c.l.s4 1983009808
    %v136 = vunpack.c.0.s8 %v135
    %v137 = vlaneseq
    %v138 = vshrl.u32 %v137, 7
    %v139 = vsub.s32 %v136, %v138
    %v140 = vrot.slane %v57, %v139
    %v142 = vunpack.c.l.s4 1983009808
    %v143 = vunpack.c.0.s8 %v142
    %v144 = vlaneseq
    %v145 = vshrl.u32 %v144, 7
    %v146 = vsub.s32 %v143, %v145
    %v147 = vrot.slane %v133, %v146
    %v148 = vcombine.high %v140, %v140
    %v149 = vcombine.high %v147, %v147
    %v150 = vcombine.high %v58, %v58
    %v152 = vunpack.c.l.s4 1983009808
    %v153 = vunpack.c.0.s8 %v152
    %v154 = vlaneseq
    %v155 = vshrl.u32 %v154, 7
    %v156 = vsub.s32 %v153, %v155
    %v157 = vrot.slane %v58, %v156
    %v159 = vunpack.c.l.s4 1983009808
    %v160 = vunpack.c.0.s8 %v159
    %v161 = vlaneseq
    %v162 = vshrl.u32 %v161, 7
    %v163 = vsub.s32 %v160, %v162
    %v164 = vrot.slane %v150, %v163
    %v165 = vcombine.high %v157, %v157
    %v166 = vcombine.high %v164, %v164
    %v191 = vpack.c.bf16 %v72, %v72
    %v192 = vpack.c.bf16 %v80, %v80
    %v193 = vpack.c.bf16 %v79, %v79
    %v194 = vpack.c.bf16 %v81, %v81
    %v195 = vpack.c.bf16 %v89, %v89
    %v196 = vpack.c.bf16 %v97, %v97
    %v197 = vpack.c.bf16 %v96, %v96
    %v198 = vpack.c.bf16 %v98, %v98
    %v199 = vpack.c.bf16 %v106, %v106
    %v200 = vpack.c.bf16 %v114, %v114
    %v201 = vpack.c.bf16 %v113, %v113
    %v202 = vpack.c.bf16 %v115, %v115
    %v203 = vpack.c.bf16 %v123, %v123
    %v204 = vpack.c.bf16 %v131, %v131
    %v205 = vpack.c.bf16 %v130, %v130
    %v206 = vpack.c.bf16 %v132, %v132
    %v207 = vpack.c.bf16 %v140, %v140
    %v208 = vpack.c.bf16 %v148, %v148
    %v209 = vpack.c.bf16 %v147, %v147
    %v210 = vpack.c.bf16 %v149, %v149
    %v211 = vpack.c.bf16 %v157, %v157
    %v212 = vpack.c.bf16 %v165, %v165
    %v213 = vpack.c.bf16 %v164, %v164
    %v214 = vpack.c.bf16 %v166, %v166
    %v215 = vld [vmem:[#allocation2] sm:$0xff]
    %v216 = vld [vmem:[#allocation6] sm:$0xff]
    %v217 = vld [vmem:[#allocation6 + $0x8] sm:$0xff]
    %v218 = vld [vmem:[#allocation6 + $0x10] sm:$0xff]
    %v219 = vld [vmem:[#allocation6 + $0x18] sm:$0xff]
    %v220 = vld [vmem:[#allocation6 + $0x20] sm:$0xff]
    %v221 = vld [vmem:[#allocation6 + $0x28] sm:$0xff]
    %v222 = vld [vmem:[#allocation6 + $0x30] sm:$0xff]
    %v223 = vld [vmem:[#allocation6 + $0x38] sm:$0xff]
    %v224 = vld [vmem:[#allocation6 + $0x40] sm:$0xff]
    %v225 = vld [vmem:[#allocation6 + $0x48] sm:$0xff]
    %v226 = vld [vmem:[#allocation6 + $0x50] sm:$0xff]
    %v227 = vld [vmem:[#allocation6 + $0x58] sm:$0xff]
    %v228 = vld [vmem:[#allocation6 + $0x60] sm:$0xff]
    %v229 = vld [vmem:[#allocation6 + $0x68] sm:$0xff]
    %v230 = vld [vmem:[#allocation6 + $0x70] sm:$0xff]
    %v231 = vld [vmem:[#allocation6 + $0x78] sm:$0xff]
    %v232 = vld [vmem:[#allocation6 + $0x80] sm:$0xff]
    %v233 = vld [vmem:[#allocation6 + $0x88] sm:$0xff]
    %v234 = vld [vmem:[#allocation6 + $0x90] sm:$0xff]
    %v235 = vld [vmem:[#allocation6 + $0x98] sm:$0xff]
    %v236 = vld [vmem:[#allocation6 + $0xa0] sm:$0xff]
    %v237 = vld [vmem:[#allocation6 + $0xa8] sm:$0xff]
    %v238 = vld [vmem:[#allocation6 + $0xb0] sm:$0xff]
    %v239 = vld [vmem:[#allocation6 + $0xb8] sm:$0xff]
    %v240 = vld [vmem:[#allocation6 + $0xc0] sm:$0xff]
    %v241 = vld [vmem:[#allocation6 + $0xc8] sm:$0xff]
    %v242 = vld [vmem:[#allocation6 + $0xd0] sm:$0xff]
    %v243 = vld [vmem:[#allocation6 + $0xd8] sm:$0xff]
    %v244 = vld [vmem:[#allocation6 + $0xe0] sm:$0xff]
    %v245 = vld [vmem:[#allocation6 + $0xe8] sm:$0xff]
    %v246 = vld [vmem:[#allocation6 + $0xf0] sm:$0xff]
    %v247 = vld [vmem:[#allocation6 + $0xf8] sm:$0xff]
    %v248 = vld [vmem:[#allocation6 + $0x100] sm:$0xff]
    %v249 = vld [vmem:[#allocation6 + $0x108] sm:$0xff]
    %v250 = vld [vmem:[#allocation6 + $0x110] sm:$0xff]
    %v251 = vld [vmem:[#allocation6 + $0x118] sm:$0xff]
    %v252 = vld [vmem:[#allocation6 + $0x120] sm:$0xff]
    %v253 = vld [vmem:[#allocation6 + $0x128] sm:$0xff]
    %v254 = vld [vmem:[#allocation6 + $0x130] sm:$0xff]
    %v255 = vld [vmem:[#allocation6 + $0x138] sm:$0xff]
    %v256 = vld [vmem:[#allocation6 + $0x140] sm:$0xff]
    %v257 = vld [vmem:[#allocation6 + $0x148] sm:$0xff]
    %v258 = vld [vmem:[#allocation6 + $0x150] sm:$0xff]
    %v259 = vld [vmem:[#allocation6 + $0x158] sm:$0xff]
    %v260 = vld [vmem:[#allocation6 + $0x160] sm:$0xff]
    %v261 = vld [vmem:[#allocation6 + $0x168] sm:$0xff]
    %v262 = vld [vmem:[#allocation6 + $0x170] sm:$0xff]
    %v263 = vld [vmem:[#allocation6 + $0x178] sm:$0xff]
    %v264 = vld [vmem:[#allocation6 + $0x180] sm:$0xff]
    %v265 = vld [vmem:[#allocation6 + $0x188] sm:$0xff]
    %v266 = vld [vmem:[#allocation6 + $0x190] sm:$0xff]
    %v267 = vld [vmem:[#allocation6 + $0x198] sm:$0xff]
    %v268 = vld [vmem:[#allocation6 + $0x1a0] sm:$0xff]
    %v269 = vld [vmem:[#allocation6 + $0x1a8] sm:$0xff]
    %v270 = vld [vmem:[#allocation6 + $0x1b0] sm:$0xff]
    %v271 = vld [vmem:[#allocation6 + $0x1b8] sm:$0xff]
    %v272 = vld [vmem:[#allocation6 + $0x1c0] sm:$0xff]
    %v273 = vld [vmem:[#allocation6 + $0x1c8] sm:$0xff]
    %v274 = vld [vmem:[#allocation6 + $0x1d0] sm:$0xff]
    %v275 = vld [vmem:[#allocation6 + $0x1d8] sm:$0xff]
    %v276 = vld [vmem:[#allocation6 + $0x1e0] sm:$0xff]
    %v277 = vld [vmem:[#allocation6 + $0x1e8] sm:$0xff]
    %v278 = vld [vmem:[#allocation6 + $0x1f0] sm:$0xff]
    %v279 = vld [vmem:[#allocation6 + $0x1f8] sm:$0xff]
    %v280 = vld [vmem:[#allocation6 + $0x200] sm:$0xff]
    %v281 = vld [vmem:[#allocation6 + $0x208] sm:$0xff]
    %v282 = vld [vmem:[#allocation6 + $0x210] sm:$0xff]
    %v283 = vld [vmem:[#allocation6 + $0x218] sm:$0xff]
    %v284 = vld [vmem:[#allocation6 + $0x220] sm:$0xff]
    %v285 = vld [vmem:[#allocation6 + $0x228] sm:$0xff]
    %v286 = vld [vmem:[#allocation6 + $0x230] sm:$0xff]
    %v287 = vld [vmem:[#allocation6 + $0x238] sm:$0xff]
    %v288 = vld [vmem:[#allocation6 + $0x240] sm:$0xff]
    %v289 = vld [vmem:[#allocation6 + $0x248] sm:$0xff]
    %v290 = vld [vmem:[#allocation6 + $0x250] sm:$0xff]
    %v291 = vld [vmem:[#allocation6 + $0x258] sm:$0xff]
    %v292 = vld [vmem:[#allocation6 + $0x260] sm:$0xff]
    %v293 = vld [vmem:[#allocation6 + $0x268] sm:$0xff]
    %v294 = vld [vmem:[#allocation6 + $0x270] sm:$0xff]
    %v295 = vld [vmem:[#allocation6 + $0x278] sm:$0xff]
    %v296 = vld [vmem:[#allocation6 + $0x280] sm:$0xff]
    %v297 = vld [vmem:[#allocation6 + $0x288] sm:$0xff]
    %v298 = vld [vmem:[#allocation6 + $0x290] sm:$0xff]
    %v299 = vld [vmem:[#allocation6 + $0x298] sm:$0xff]
    %v300 = vld [vmem:[#allocation6 + $0x2a0] sm:$0xff]
    %v301 = vld [vmem:[#allocation6 + $0x2a8] sm:$0xff]
    %v302 = vld [vmem:[#allocation6 + $0x2b0] sm:$0xff]
    %v303 = vld [vmem:[#allocation6 + $0x2b8] sm:$0xff]
    %v304 = vld [vmem:[#allocation6 + $0x2c0] sm:$0xff]
    %v305 = vld [vmem:[#allocation6 + $0x2c8] sm:$0xff]
    %v306 = vld [vmem:[#allocation6 + $0x2d0] sm:$0xff]
    %v307 = vld [vmem:[#allocation6 + $0x2d8] sm:$0xff]
    %v308 = vld [vmem:[#allocation6 + $0x2e0] sm:$0xff]
    %v309 = vld [vmem:[#allocation6 + $0x2e8] sm:$0xff]
    %v310 = vld [vmem:[#allocation6 + $0x2f0] sm:$0xff]
    %v311 = vld [vmem:[#allocation6 + $0x2f8] sm:$0xff]
    %v312 = vld [vmem:[#allocation6 + $0x300] sm:$0xff]
    %v313 = vld [vmem:[#allocation6 + $0x308] sm:$0xff]
    %v314 = vld [vmem:[#allocation6 + $0x310] sm:$0xff]
    %v315 = vld [vmem:[#allocation6 + $0x318] sm:$0xff]
    %v316 = vld [vmem:[#allocation6 + $0x320] sm:$0xff]
    %v317 = vld [vmem:[#allocation6 + $0x328] sm:$0xff]
    %v318 = vld [vmem:[#allocation6 + $0x330] sm:$0xff]
    %v319 = vld [vmem:[#allocation6 + $0x338] sm:$0xff]
    %v320 = vld [vmem:[#allocation6 + $0x340] sm:$0xff]
    %v321 = vld [vmem:[#allocation6 + $0x348] sm:$0xff]
    %v322 = vld [vmem:[#allocation6 + $0x350] sm:$0xff]
    %v323 = vld [vmem:[#allocation6 + $0x358] sm:$0xff]
    %v324 = vld [vmem:[#allocation6 + $0x360] sm:$0xff]
    %v325 = vld [vmem:[#allocation6 + $0x368] sm:$0xff]
    %v326 = vld [vmem:[#allocation6 + $0x370] sm:$0xff]
    %v327 = vld [vmem:[#allocation6 + $0x378] sm:$0xff]
    %v328 = vld [vmem:[#allocation6 + $0x380] sm:$0xff]
    %v329 = vld [vmem:[#allocation6 + $0x388] sm:$0xff]
    %v330 = vld [vmem:[#allocation6 + $0x390] sm:$0xff]
    %v331 = vld [vmem:[#allocation6 + $0x398] sm:$0xff]
    %v332 = vld [vmem:[#allocation6 + $0x3a0] sm:$0xff]
    %v333 = vld [vmem:[#allocation6 + $0x3a8] sm:$0xff]
    %v334 = vld [vmem:[#allocation6 + $0x3b0] sm:$0xff]
    %v335 = vld [vmem:[#allocation6 + $0x3b8] sm:$0xff]
    %v336 = vld [vmem:[#allocation6 + $0x3c0] sm:$0xff]
    %v337 = vld [vmem:[#allocation6 + $0x3c8] sm:$0xff]
    %v338 = vld [vmem:[#allocation6 + $0x3d0] sm:$0xff]
    %v339 = vld [vmem:[#allocation6 + $0x3d8] sm:$0xff]
    %v340 = vld [vmem:[#allocation6 + $0x3e0] sm:$0xff]
    %v341 = vld [vmem:[#allocation6 + $0x3e8] sm:$0xff]
    %v342 = vld [vmem:[#allocation6 + $0x3f0] sm:$0xff]
    %v343 = vld [vmem:[#allocation6 + $0x3f8] sm:$0xff]
    %v344 = vld [vmem:[#allocation6 + $0x400] sm:$0xff]
    %v345 = vld [vmem:[#allocation6 + $0x408] sm:$0xff]
    %v346 = vld [vmem:[#allocation6 + $0x410] sm:$0xff]
    %v347 = vld [vmem:[#allocation6 + $0x418] sm:$0xff]
    %v348 = vld [vmem:[#allocation6 + $0x420] sm:$0xff]
    %v349 = vld [vmem:[#allocation6 + $0x428] sm:$0xff]
    %v350 = vld [vmem:[#allocation6 + $0x430] sm:$0xff]
    %v351 = vld [vmem:[#allocation6 + $0x438] sm:$0xff]
    %v352 = vld [vmem:[#allocation6 + $0x440] sm:$0xff]
    %v353 = vld [vmem:[#allocation6 + $0x448] sm:$0xff]
    %v354 = vld [vmem:[#allocation6 + $0x450] sm:$0xff]
    %v355 = vld [vmem:[#allocation6 + $0x458] sm:$0xff]
    %v356 = vld [vmem:[#allocation6 + $0x460] sm:$0xff]
    %v357 = vld [vmem:[#allocation6 + $0x468] sm:$0xff]
    %v358 = vld [vmem:[#allocation6 + $0x470] sm:$0xff]
    %v359 = vld [vmem:[#allocation6 + $0x478] sm:$0xff]
    %v360 = vld [vmem:[#allocation6 + $0x480] sm:$0xff]
    %v361 = vld [vmem:[#allocation6 + $0x488] sm:$0xff]
    %v362 = vld [vmem:[#allocation6 + $0x490] sm:$0xff]
    %v363 = vld [vmem:[#allocation6 + $0x498] sm:$0xff]
    %v364 = vld [vmem:[#allocation6 + $0x4a0] sm:$0xff]
    %v365 = vld [vmem:[#allocation6 + $0x4a8] sm:$0xff]
    %v366 = vld [vmem:[#allocation6 + $0x4b0] sm:$0xff]
    %v367 = vld [vmem:[#allocation6 + $0x4b8] sm:$0xff]
    %v368 = vld [vmem:[#allocation6 + $0x4c0] sm:$0xff]
    %v369 = vld [vmem:[#allocation6 + $0x4c8] sm:$0xff]
    %v370 = vld [vmem:[#allocation6 + $0x4d0] sm:$0xff]
    %v371 = vld [vmem:[#allocation6 + $0x4d8] sm:$0xff]
    %v372 = vld [vmem:[#allocation6 + $0x4e0] sm:$0xff]
    %v373 = vld [vmem:[#allocation6 + $0x4e8] sm:$0xff]
    %v374 = vld [vmem:[#allocation6 + $0x4f0] sm:$0xff]
    %v375 = vld [vmem:[#allocation6 + $0x4f8] sm:$0xff]
    %v376 = vld [vmem:[#allocation6 + $0x500] sm:$0xff]
    %v377 = vld [vmem:[#allocation6 + $0x508] sm:$0xff]
    %v378 = vld [vmem:[#allocation6 + $0x510] sm:$0xff]
    %v379 = vld [vmem:[#allocation6 + $0x518] sm:$0xff]
    %v380 = vld [vmem:[#allocation6 + $0x520] sm:$0xff]
    %v381 = vld [vmem:[#allocation6 + $0x528] sm:$0xff]
    %v382 = vld [vmem:[#allocation6 + $0x530] sm:$0xff]
    %v383 = vld [vmem:[#allocation6 + $0x538] sm:$0xff]
    %v384 = vld [vmem:[#allocation6 + $0x540] sm:$0xff]
    %v385 = vld [vmem:[#allocation6 + $0x548] sm:$0xff]
    %v386 = vld [vmem:[#allocation6 + $0x550] sm:$0xff]
    %v387 = vld [vmem:[#allocation6 + $0x558] sm:$0xff]
    %v388 = vld [vmem:[#allocation6 + $0x560] sm:$0xff]
    %v389 = vld [vmem:[#allocation6 + $0x568] sm:$0xff]
    %v390 = vld [vmem:[#allocation6 + $0x570] sm:$0xff]
    %v391 = vld [vmem:[#allocation6 + $0x578] sm:$0xff]
    %v392 = vld [vmem:[#allocation6 + $0x580] sm:$0xff]
    %v393 = vld [vmem:[#allocation6 + $0x588] sm:$0xff]
    %v394 = vld [vmem:[#allocation6 + $0x590] sm:$0xff]
    %v395 = vld [vmem:[#allocation6 + $0x598] sm:$0xff]
    %v396 = vld [vmem:[#allocation6 + $0x5a0] sm:$0xff]
    %v397 = vld [vmem:[#allocation6 + $0x5a8] sm:$0xff]
    %v398 = vld [vmem:[#allocation6 + $0x5b0] sm:$0xff]
    %v399 = vld [vmem:[#allocation6 + $0x5b8] sm:$0xff]
    %v400 = vld [vmem:[#allocation6 + $0x5c0] sm:$0xff]
    %v401 = vld [vmem:[#allocation6 + $0x5c8] sm:$0xff]
    %v402 = vld [vmem:[#allocation6 + $0x5d0] sm:$0xff]
    %v403 = vld [vmem:[#allocation6 + $0x5d8] sm:$0xff]
    %v404 = vld [vmem:[#allocation6 + $0x5e0] sm:$0xff]
    %v405 = vld [vmem:[#allocation6 + $0x5e8] sm:$0xff]
    %v406 = vld [vmem:[#allocation6 + $0x5f0] sm:$0xff]
    %v407 = vld [vmem:[#allocation6 + $0x5f8] sm:$0xff]
    %v408 = vld [vmem:[#allocation6 + $0x600] sm:$0xff]
    %v409 = vld [vmem:[#allocation6 + $0x608] sm:$0xff]
    %v410 = vld [vmem:[#allocation6 + $0x610] sm:$0xff]
    %v411 = vld [vmem:[#allocation6 + $0x618] sm:$0xff]
    %v412 = vld [vmem:[#allocation6 + $0x620] sm:$0xff]
    %v413 = vld [vmem:[#allocation6 + $0x628] sm:$0xff]
    %v414 = vld [vmem:[#allocation6 + $0x630] sm:$0xff]
    %v415 = vld [vmem:[#allocation6 + $0x638] sm:$0xff]
    %v416 = vld [vmem:[#allocation6 + $0x640] sm:$0xff]
    %v417 = vld [vmem:[#allocation6 + $0x648] sm:$0xff]
    %v418 = vld [vmem:[#allocation6 + $0x650] sm:$0xff]
    %v419 = vld [vmem:[#allocation6 + $0x658] sm:$0xff]
    %v420 = vld [vmem:[#allocation6 + $0x660] sm:$0xff]
    %v421 = vld [vmem:[#allocation6 + $0x668] sm:$0xff]
    %v422 = vld [vmem:[#allocation6 + $0x670] sm:$0xff]
    %v423 = vld [vmem:[#allocation6 + $0x678] sm:$0xff]
    %v424 = vld [vmem:[#allocation6 + $0x680] sm:$0xff]
    %v425 = vld [vmem:[#allocation6 + $0x688] sm:$0xff]
    %v426 = vld [vmem:[#allocation6 + $0x690] sm:$0xff]
    %v427 = vld [vmem:[#allocation6 + $0x698] sm:$0xff]
    %v428 = vld [vmem:[#allocation6 + $0x6a0] sm:$0xff]
    %v429 = vld [vmem:[#allocation6 + $0x6a8] sm:$0xff]
    %v430 = vld [vmem:[#allocation6 + $0x6b0] sm:$0xff]
    %v431 = vld [vmem:[#allocation6 + $0x6b8] sm:$0xff]
    %v432 = vld [vmem:[#allocation6 + $0x6c0] sm:$0xff]
    %v433 = vld [vmem:[#allocation6 + $0x6c8] sm:$0xff]
    %v434 = vld [vmem:[#allocation6 + $0x6d0] sm:$0xff]
    %v435 = vld [vmem:[#allocation6 + $0x6d8] sm:$0xff]
    %v436 = vld [vmem:[#allocation6 + $0x6e0] sm:$0xff]
    %v437 = vld [vmem:[#allocation6 + $0x6e8] sm:$0xff]
    %v438 = vld [vmem:[#allocation6 + $0x6f0] sm:$0xff]
    %v439 = vld [vmem:[#allocation6 + $0x6f8] sm:$0xff]
    %v440 = vld [vmem:[#allocation6 + $0x700] sm:$0xff]
    %v441 = vld [vmem:[#allocation6 + $0x708] sm:$0xff]
    %v442 = vld [vmem:[#allocation6 + $0x710] sm:$0xff]
    %v443 = vld [vmem:[#allocation6 + $0x718] sm:$0xff]
    %v444 = vld [vmem:[#allocation6 + $0x720] sm:$0xff]
    %v445 = vld [vmem:[#allocation6 + $0x728] sm:$0xff]
    %v446 = vld [vmem:[#allocation6 + $0x730] sm:$0xff]
    %v447 = vld [vmem:[#allocation6 + $0x738] sm:$0xff]
    %v448 = vld [vmem:[#allocation6 + $0x740] sm:$0xff]
    %v449 = vld [vmem:[#allocation6 + $0x748] sm:$0xff]
    %v450 = vld [vmem:[#allocation6 + $0x750] sm:$0xff]
    %v451 = vld [vmem:[#allocation6 + $0x758] sm:$0xff]
    %v452 = vld [vmem:[#allocation6 + $0x760] sm:$0xff]
    %v453 = vld [vmem:[#allocation6 + $0x768] sm:$0xff]
    %v454 = vld [vmem:[#allocation6 + $0x770] sm:$0xff]
    %v455 = vld [vmem:[#allocation6 + $0x778] sm:$0xff]
    %v456 = vld [vmem:[#allocation6 + $0x780] sm:$0xff]
    %v457 = vld [vmem:[#allocation6 + $0x788] sm:$0xff]
    %v458 = vld [vmem:[#allocation6 + $0x790] sm:$0xff]
    %v459 = vld [vmem:[#allocation6 + $0x798] sm:$0xff]
    %v460 = vld [vmem:[#allocation6 + $0x7a0] sm:$0xff]
    %v461 = vld [vmem:[#allocation6 + $0x7a8] sm:$0xff]
    %v462 = vld [vmem:[#allocation6 + $0x7b0] sm:$0xff]
    %v463 = vld [vmem:[#allocation6 + $0x7b8] sm:$0xff]
    %v464 = vld [vmem:[#allocation6 + $0x7c0] sm:$0xff]
    %v465 = vld [vmem:[#allocation6 + $0x7c8] sm:$0xff]
    %v466 = vld [vmem:[#allocation6 + $0x7d0] sm:$0xff]
    %v467 = vld [vmem:[#allocation6 + $0x7d8] sm:$0xff]
    %v468 = vld [vmem:[#allocation6 + $0x7e0] sm:$0xff]
    %v469 = vld [vmem:[#allocation6 + $0x7e8] sm:$0xff]
    %v470 = vld [vmem:[#allocation6 + $0x7f0] sm:$0xff]
    %v471 = vld [vmem:[#allocation6 + $0x7f8] sm:$0xff]
    %v472 = vld [vmem:[#allocation6 + $0x800] sm:$0xff]
    %v473 = vld [vmem:[#allocation6 + $0x808] sm:$0xff]
    %v474 = vld [vmem:[#allocation6 + $0x810] sm:$0xff]
    %v475 = vld [vmem:[#allocation6 + $0x818] sm:$0xff]
    %v476 = vld [vmem:[#allocation6 + $0x820] sm:$0xff]
    %v477 = vld [vmem:[#allocation6 + $0x828] sm:$0xff]
    %v478 = vld [vmem:[#allocation6 + $0x830] sm:$0xff]
    %v479 = vld [vmem:[#allocation6 + $0x838] sm:$0xff]
    %v480 = vld [vmem:[#allocation6 + $0x840] sm:$0xff]
    %v481 = vld [vmem:[#allocation6 + $0x848] sm:$0xff]
    %v482 = vld [vmem:[#allocation6 + $0x850] sm:$0xff]
    %v483 = vld [vmem:[#allocation6 + $0x858] sm:$0xff]
    %v484 = vld [vmem:[#allocation6 + $0x860] sm:$0xff]
    %v485 = vld [vmem:[#allocation6 + $0x868] sm:$0xff]
    %v486 = vld [vmem:[#allocation6 + $0x870] sm:$0xff]
    %v487 = vld [vmem:[#allocation6 + $0x878] sm:$0xff]
    %v488 = vld [vmem:[#allocation6 + $0x880] sm:$0xff]
    %v489 = vld [vmem:[#allocation6 + $0x888] sm:$0xff]
    %v490 = vld [vmem:[#allocation6 + $0x890] sm:$0xff]
    %v491 = vld [vmem:[#allocation6 + $0x898] sm:$0xff]
    %v492 = vld [vmem:[#allocation6 + $0x8a0] sm:$0xff]
    %v493 = vld [vmem:[#allocation6 + $0x8a8] sm:$0xff]
    %v494 = vld [vmem:[#allocation6 + $0x8b0] sm:$0xff]
    %v495 = vld [vmem:[#allocation6 + $0x8b8] sm:$0xff]
    %v496 = vld [vmem:[#allocation6 + $0x8c0] sm:$0xff]
    %v497 = vld [vmem:[#allocation6 + $0x8c8] sm:$0xff]
    %v498 = vld [vmem:[#allocation6 + $0x8d0] sm:$0xff]
    %v499 = vld [vmem:[#allocation6 + $0x8d8] sm:$0xff]
    %v500 = vld [vmem:[#allocation6 + $0x8e0] sm:$0xff]
    %v501 = vld [vmem:[#allocation6 + $0x8e8] sm:$0xff]
    %v502 = vld [vmem:[#allocation6 + $0x8f0] sm:$0xff]
    %v503 = vld [vmem:[#allocation6 + $0x8f8] sm:$0xff]
    %v504 = vld [vmem:[#allocation6 + $0x900] sm:$0xff]
    %v505 = vld [vmem:[#allocation6 + $0x908] sm:$0xff]
    %v506 = vld [vmem:[#allocation6 + $0x910] sm:$0xff]
    %v507 = vld [vmem:[#allocation6 + $0x918] sm:$0xff]
    %v508 = vld [vmem:[#allocation6 + $0x920] sm:$0xff]
    %v509 = vld [vmem:[#allocation6 + $0x928] sm:$0xff]
    %v510 = vld [vmem:[#allocation6 + $0x930] sm:$0xff]
    %v511 = vld [vmem:[#allocation6 + $0x938] sm:$0xff]
    %v512 = vld [vmem:[#allocation6 + $0x940] sm:$0xff]
    %v513 = vld [vmem:[#allocation6 + $0x948] sm:$0xff]
    %v514 = vld [vmem:[#allocation6 + $0x950] sm:$0xff]
    %v515 = vld [vmem:[#allocation6 + $0x958] sm:$0xff]
    %v516 = vld [vmem:[#allocation6 + $0x960] sm:$0xff]
    %v517 = vld [vmem:[#allocation6 + $0x968] sm:$0xff]
    %v518 = vld [vmem:[#allocation6 + $0x970] sm:$0xff]
    %v519 = vld [vmem:[#allocation6 + $0x978] sm:$0xff]
    %v520 = vld [vmem:[#allocation6 + $0x980] sm:$0xff]
    %v521 = vld [vmem:[#allocation6 + $0x988] sm:$0xff]
    %v522 = vld [vmem:[#allocation6 + $0x990] sm:$0xff]
    %v523 = vld [vmem:[#allocation6 + $0x998] sm:$0xff]
    %v524 = vld [vmem:[#allocation6 + $0x9a0] sm:$0xff]
    %v525 = vld [vmem:[#allocation6 + $0x9a8] sm:$0xff]
    %v526 = vld [vmem:[#allocation6 + $0x9b0] sm:$0xff]
    %v527 = vld [vmem:[#allocation6 + $0x9b8] sm:$0xff]
    %v528 = vld [vmem:[#allocation6 + $0x9c0] sm:$0xff]
    %v529 = vld [vmem:[#allocation6 + $0x9c8] sm:$0xff]
    %v530 = vld [vmem:[#allocation6 + $0x9d0] sm:$0xff]
    %v531 = vld [vmem:[#allocation6 + $0x9d8] sm:$0xff]
    %v532 = vld [vmem:[#allocation6 + $0x9e0] sm:$0xff]
    %v533 = vld [vmem:[#allocation6 + $0x9e8] sm:$0xff]
    %v534 = vld [vmem:[#allocation6 + $0x9f0] sm:$0xff]
    %v535 = vld [vmem:[#allocation6 + $0x9f8] sm:$0xff]
    %v536 = vld [vmem:[#allocation6 + $0xa00] sm:$0xff]
    %v537 = vld [vmem:[#allocation6 + $0xa08] sm:$0xff]
    %v538 = vld [vmem:[#allocation6 + $0xa10] sm:$0xff]
    %v539 = vld [vmem:[#allocation6 + $0xa18] sm:$0xff]
    %v540 = vld [vmem:[#allocation6 + $0xa20] sm:$0xff]
    %v541 = vld [vmem:[#allocation6 + $0xa28] sm:$0xff]
    %v542 = vld [vmem:[#allocation6 + $0xa30] sm:$0xff]
    %v543 = vld [vmem:[#allocation6 + $0xa38] sm:$0xff]
    %v544 = vld [vmem:[#allocation6 + $0xa40] sm:$0xff]
    %v545 = vld [vmem:[#allocation6 + $0xa48] sm:$0xff]
    %v546 = vld [vmem:[#allocation6 + $0xa50] sm:$0xff]
    %v547 = vld [vmem:[#allocation6 + $0xa58] sm:$0xff]
    %v548 = vld [vmem:[#allocation6 + $0xa60] sm:$0xff]
    %v549 = vld [vmem:[#allocation6 + $0xa68] sm:$0xff]
    %v550 = vld [vmem:[#allocation6 + $0xa70] sm:$0xff]
    %v551 = vld [vmem:[#allocation6 + $0xa78] sm:$0xff]
    %v552 = vld [vmem:[#allocation6 + $0xa80] sm:$0xff]
    %v553 = vld [vmem:[#allocation6 + $0xa88] sm:$0xff]
    %v554 = vld [vmem:[#allocation6 + $0xa90] sm:$0xff]
    %v555 = vld [vmem:[#allocation6 + $0xa98] sm:$0xff]
    %v556 = vld [vmem:[#allocation6 + $0xaa0] sm:$0xff]
    %v557 = vld [vmem:[#allocation6 + $0xaa8] sm:$0xff]
    %v558 = vld [vmem:[#allocation6 + $0xab0] sm:$0xff]
    %v559 = vld [vmem:[#allocation6 + $0xab8] sm:$0xff]
    %v560 = vld [vmem:[#allocation6 + $0xac0] sm:$0xff]
    %v561 = vld [vmem:[#allocation6 + $0xac8] sm:$0xff]
    %v562 = vld [vmem:[#allocation6 + $0xad0] sm:$0xff]
    %v563 = vld [vmem:[#allocation6 + $0xad8] sm:$0xff]
    %v564 = vld [vmem:[#allocation6 + $0xae0] sm:$0xff]
    %v565 = vld [vmem:[#allocation6 + $0xae8] sm:$0xff]
    %v566 = vld [vmem:[#allocation6 + $0xaf0] sm:$0xff]
    %v567 = vld [vmem:[#allocation6 + $0xaf8] sm:$0xff]
    %v568 = vld [vmem:[#allocation6 + $0xb00] sm:$0xff]
    %v569 = vld [vmem:[#allocation6 + $0xb08] sm:$0xff]
    %v570 = vld [vmem:[#allocation6 + $0xb10] sm:$0xff]
    %v571 = vld [vmem:[#allocation6 + $0xb18] sm:$0xff]
    %v572 = vld [vmem:[#allocation6 + $0xb20] sm:$0xff]
    %v573 = vld [vmem:[#allocation6 + $0xb28] sm:$0xff]
    %v574 = vld [vmem:[#allocation6 + $0xb30] sm:$0xff]
    %v575 = vld [vmem:[#allocation6 + $0xb38] sm:$0xff]
    %v576 = vld [vmem:[#allocation6 + $0xb40] sm:$0xff]
    %v577 = vld [vmem:[#allocation6 + $0xb48] sm:$0xff]
    %v578 = vld [vmem:[#allocation6 + $0xb50] sm:$0xff]
    %v579 = vld [vmem:[#allocation6 + $0xb58] sm:$0xff]
    %v580 = vld [vmem:[#allocation6 + $0xb60] sm:$0xff]
    %v581 = vld [vmem:[#allocation6 + $0xb68] sm:$0xff]
    %v582 = vld [vmem:[#allocation6 + $0xb70] sm:$0xff]
    %v583 = vld [vmem:[#allocation6 + $0xb78] sm:$0xff]
    %v584 = vld [vmem:[#allocation6 + $0xb80] sm:$0xff]
    %v585 = vld [vmem:[#allocation6 + $0xb88] sm:$0xff]
    %v586 = vld [vmem:[#allocation6 + $0xb90] sm:$0xff]
    %v587 = vld [vmem:[#allocation6 + $0xb98] sm:$0xff]
    %v588 = vld [vmem:[#allocation6 + $0xba0] sm:$0xff]
    %v589 = vld [vmem:[#allocation6 + $0xba8] sm:$0xff]
    %v590 = vld [vmem:[#allocation6 + $0xbb0] sm:$0xff]
    %v591 = vld [vmem:[#allocation6 + $0xbb8] sm:$0xff]
    %v592 = vld [vmem:[#allocation6 + $0xbc0] sm:$0xff]
    %v593 = vld [vmem:[#allocation6 + $0xbc8] sm:$0xff]
    %v594 = vld [vmem:[#allocation6 + $0xbd0] sm:$0xff]
    %v595 = vld [vmem:[#allocation6 + $0xbd8] sm:$0xff]
    %v596 = vld [vmem:[#allocation6 + $0xbe0] sm:$0xff]
    %v597 = vld [vmem:[#allocation6 + $0xbe8] sm:$0xff]
    %v598 = vld [vmem:[#allocation6 + $0xbf0] sm:$0xff]
    %v599 = vld [vmem:[#allocation6 + $0xbf8] sm:$0xff]
    %v600 = vld [vmem:[#allocation6 + $0xc00] sm:$0xff]
    %v601 = vld [vmem:[#allocation6 + $0xc08] sm:$0xff]
    %v602 = vld [vmem:[#allocation6 + $0xc10] sm:$0xff]
    %v603 = vld [vmem:[#allocation6 + $0xc18] sm:$0xff]
    %v604 = vld [vmem:[#allocation6 + $0xc20] sm:$0xff]
    %v605 = vld [vmem:[#allocation6 + $0xc28] sm:$0xff]
    %v606 = vld [vmem:[#allocation6 + $0xc30] sm:$0xff]
    %v607 = vld [vmem:[#allocation6 + $0xc38] sm:$0xff]
    %v608 = vld [vmem:[#allocation6 + $0xc40] sm:$0xff]
    %v609 = vld [vmem:[#allocation6 + $0xc48] sm:$0xff]
    %v610 = vld [vmem:[#allocation6 + $0xc50] sm:$0xff]
    %v611 = vld [vmem:[#allocation6 + $0xc58] sm:$0xff]
    %v612 = vld [vmem:[#allocation6 + $0xc60] sm:$0xff]
    %v613 = vld [vmem:[#allocation6 + $0xc68] sm:$0xff]
    %v614 = vld [vmem:[#allocation6 + $0xc70] sm:$0xff]
    %v615 = vld [vmem:[#allocation6 + $0xc78] sm:$0xff]
    %v616 = vld [vmem:[#allocation6 + $0xc80] sm:$0xff]
    %v617 = vld [vmem:[#allocation6 + $0xc88] sm:$0xff]
    %v618 = vld [vmem:[#allocation6 + $0xc90] sm:$0xff]
    %v619 = vld [vmem:[#allocation6 + $0xc98] sm:$0xff]
    %v620 = vld [vmem:[#allocation6 + $0xca0] sm:$0xff]
    %v621 = vld [vmem:[#allocation6 + $0xca8] sm:$0xff]
    %v622 = vld [vmem:[#allocation6 + $0xcb0] sm:$0xff]
    %v623 = vld [vmem:[#allocation6 + $0xcb8] sm:$0xff]
    %v624 = vld [vmem:[#allocation6 + $0xcc0] sm:$0xff]
    %v625 = vld [vmem:[#allocation6 + $0xcc8] sm:$0xff]
    %v626 = vld [vmem:[#allocation6 + $0xcd0] sm:$0xff]
    %v627 = vld [vmem:[#allocation6 + $0xcd8] sm:$0xff]
    %v628 = vld [vmem:[#allocation6 + $0xce0] sm:$0xff]
    %v629 = vld [vmem:[#allocation6 + $0xce8] sm:$0xff]
    %v630 = vld [vmem:[#allocation6 + $0xcf0] sm:$0xff]
    %v631 = vld [vmem:[#allocation6 + $0xcf8] sm:$0xff]
    %v632 = vld [vmem:[#allocation6 + $0xd00] sm:$0xff]
    %v633 = vld [vmem:[#allocation6 + $0xd08] sm:$0xff]
    %v634 = vld [vmem:[#allocation6 + $0xd10] sm:$0xff]
    %v635 = vld [vmem:[#allocation6 + $0xd18] sm:$0xff]
    %v636 = vld [vmem:[#allocation6 + $0xd20] sm:$0xff]
    %v637 = vld [vmem:[#allocation6 + $0xd28] sm:$0xff]
    %v638 = vld [vmem:[#allocation6 + $0xd30] sm:$0xff]
    %v639 = vld [vmem:[#allocation6 + $0xd38] sm:$0xff]
    %v640 = vld [vmem:[#allocation6 + $0xd40] sm:$0xff]
    %v641 = vld [vmem:[#allocation6 + $0xd48] sm:$0xff]
    %v642 = vld [vmem:[#allocation6 + $0xd50] sm:$0xff]
    %v643 = vld [vmem:[#allocation6 + $0xd58] sm:$0xff]
    %v644 = vld [vmem:[#allocation6 + $0xd60] sm:$0xff]
    %v645 = vld [vmem:[#allocation6 + $0xd68] sm:$0xff]
    %v646 = vld [vmem:[#allocation6 + $0xd70] sm:$0xff]
    %v647 = vld [vmem:[#allocation6 + $0xd78] sm:$0xff]
    %v648 = vld [vmem:[#allocation6 + $0xd80] sm:$0xff]
    %v649 = vld [vmem:[#allocation6 + $0xd88] sm:$0xff]
    %v650 = vld [vmem:[#allocation6 + $0xd90] sm:$0xff]
    %v651 = vld [vmem:[#allocation6 + $0xd98] sm:$0xff]
    %v652 = vld [vmem:[#allocation6 + $0xda0] sm:$0xff]
    %v653 = vld [vmem:[#allocation6 + $0xda8] sm:$0xff]
    %v654 = vld [vmem:[#allocation6 + $0xdb0] sm:$0xff]
    %v655 = vld [vmem:[#allocation6 + $0xdb8] sm:$0xff]
    %v656 = vld [vmem:[#allocation6 + $0xdc0] sm:$0xff]
    %v657 = vld [vmem:[#allocation6 + $0xdc8] sm:$0xff]
    %v658 = vld [vmem:[#allocation6 + $0xdd0] sm:$0xff]
    %v659 = vld [vmem:[#allocation6 + $0xdd8] sm:$0xff]
    %v660 = vld [vmem:[#allocation6 + $0xde0] sm:$0xff]
    %v661 = vld [vmem:[#allocation6 + $0xde8] sm:$0xff]
    %v662 = vld [vmem:[#allocation6 + $0xdf0] sm:$0xff]
    %v663 = vld [vmem:[#allocation6 + $0xdf8] sm:$0xff]
    %v664 = vld [vmem:[#allocation6 + $0xe00] sm:$0xff]
    %v665 = vld [vmem:[#allocation6 + $0xe08] sm:$0xff]
    %v666 = vld [vmem:[#allocation6 + $0xe10] sm:$0xff]
    %v667 = vld [vmem:[#allocation6 + $0xe18] sm:$0xff]
    %v668 = vld [vmem:[#allocation6 + $0xe20] sm:$0xff]
    %v669 = vld [vmem:[#allocation6 + $0xe28] sm:$0xff]
    %v670 = vld [vmem:[#allocation6 + $0xe30] sm:$0xff]
    %v671 = vld [vmem:[#allocation6 + $0xe38] sm:$0xff]
    %v672 = vld [vmem:[#allocation6 + $0xe40] sm:$0xff]
    %v673 = vld [vmem:[#allocation6 + $0xe48] sm:$0xff]
    %v674 = vld [vmem:[#allocation6 + $0xe50] sm:$0xff]
    %v675 = vld [vmem:[#allocation6 + $0xe58] sm:$0xff]
    %v676 = vld [vmem:[#allocation6 + $0xe60] sm:$0xff]
    %v677 = vld [vmem:[#allocation6 + $0xe68] sm:$0xff]
    %v678 = vld [vmem:[#allocation6 + $0xe70] sm:$0xff]
    %v679 = vld [vmem:[#allocation6 + $0xe78] sm:$0xff]
    %v680 = vld [vmem:[#allocation6 + $0xe80] sm:$0xff]
    %v681 = vld [vmem:[#allocation6 + $0xe88] sm:$0xff]
    %v682 = vld [vmem:[#allocation6 + $0xe90] sm:$0xff]
    %v683 = vld [vmem:[#allocation6 + $0xe98] sm:$0xff]
    %v684 = vld [vmem:[#allocation6 + $0xea0] sm:$0xff]
    %v685 = vld [vmem:[#allocation6 + $0xea8] sm:$0xff]
    %v686 = vld [vmem:[#allocation6 + $0xeb0] sm:$0xff]
    %v687 = vld [vmem:[#allocation6 + $0xeb8] sm:$0xff]
    %v688 = vld [vmem:[#allocation6 + $0xec0] sm:$0xff]
    %v689 = vld [vmem:[#allocation6 + $0xec8] sm:$0xff]
    %v690 = vld [vmem:[#allocation6 + $0xed0] sm:$0xff]
    %v691 = vld [vmem:[#allocation6 + $0xed8] sm:$0xff]
    %v692 = vld [vmem:[#allocation6 + $0xee0] sm:$0xff]
    %v693 = vld [vmem:[#allocation6 + $0xee8] sm:$0xff]
    %v694 = vld [vmem:[#allocation6 + $0xef0] sm:$0xff]
    %v695 = vld [vmem:[#allocation6 + $0xef8] sm:$0xff]
    %v696 = vld [vmem:[#allocation6 + $0xf00] sm:$0xff]
    %v697 = vld [vmem:[#allocation6 + $0xf08] sm:$0xff]
    %v698 = vld [vmem:[#allocation6 + $0xf10] sm:$0xff]
    %v699 = vld [vmem:[#allocation6 + $0xf18] sm:$0xff]
    %v700 = vld [vmem:[#allocation6 + $0xf20] sm:$0xff]
    %v701 = vld [vmem:[#allocation6 + $0xf28] sm:$0xff]
    %v702 = vld [vmem:[#allocation6 + $0xf30] sm:$0xff]
    %v703 = vld [vmem:[#allocation6 + $0xf38] sm:$0xff]
    %v704 = vld [vmem:[#allocation6 + $0xf40] sm:$0xff]
    %v705 = vld [vmem:[#allocation6 + $0xf48] sm:$0xff]
    %v706 = vld [vmem:[#allocation6 + $0xf50] sm:$0xff]
    %v707 = vld [vmem:[#allocation6 + $0xf58] sm:$0xff]
    %v708 = vld [vmem:[#allocation6 + $0xf60] sm:$0xff]
    %v709 = vld [vmem:[#allocation6 + $0xf68] sm:$0xff]
    %v710 = vld [vmem:[#allocation6 + $0xf70] sm:$0xff]
    %v711 = vld [vmem:[#allocation6 + $0xf78] sm:$0xff]
    %v712 = vld [vmem:[#allocation6 + $0xf80] sm:$0xff]
    %v713 = vld [vmem:[#allocation6 + $0xf88] sm:$0xff]
    %v714 = vld [vmem:[#allocation6 + $0xf90] sm:$0xff]
    %v715 = vld [vmem:[#allocation6 + $0xf98] sm:$0xff]
    %v716 = vld [vmem:[#allocation6 + $0xfa0] sm:$0xff]
    %v717 = vld [vmem:[#allocation6 + $0xfa8] sm:$0xff]
    %v718 = vld [vmem:[#allocation6 + $0xfb0] sm:$0xff]
    %v719 = vld [vmem:[#allocation6 + $0xfb8] sm:$0xff]
    %v720 = vld [vmem:[#allocation6 + $0xfc0] sm:$0xff]
    %v721 = vld [vmem:[#allocation6 + $0xfc8] sm:$0xff]
    %v722 = vld [vmem:[#allocation6 + $0xfd0] sm:$0xff]
    %v723 = vld [vmem:[#allocation6 + $0xfd8] sm:$0xff]
    %v724 = vld [vmem:[#allocation6 + $0xfe0] sm:$0xff]
    %v725 = vld [vmem:[#allocation6 + $0xfe8] sm:$0xff]
    %v726 = vld [vmem:[#allocation6 + $0xff0] sm:$0xff]
    %v727 = vld [vmem:[#allocation6 + $0xff8] sm:$0xff]
    %v728 = vld [vmem:[#allocation6 + $0x1000] sm:$0xff]
    %v729 = vld [vmem:[#allocation6 + $0x1008] sm:$0xff]
    %v730 = vld [vmem:[#allocation6 + $0x1010] sm:$0xff]
    %v731 = vld [vmem:[#allocation6 + $0x1018] sm:$0xff]
    %v732 = vld [vmem:[#allocation6 + $0x1020] sm:$0xff]
    %v733 = vld [vmem:[#allocation6 + $0x1028] sm:$0xff]
    %v734 = vld [vmem:[#allocation6 + $0x1030] sm:$0xff]
    %v735 = vld [vmem:[#allocation6 + $0x1038] sm:$0xff]
    %v736 = vld [vmem:[#allocation6 + $0x1040] sm:$0xff]
    %v737 = vld [vmem:[#allocation6 + $0x1048] sm:$0xff]
    %v738 = vld [vmem:[#allocation6 + $0x1050] sm:$0xff]
    %v739 = vld [vmem:[#allocation6 + $0x1058] sm:$0xff]
    %v740 = vld [vmem:[#allocation6 + $0x1060] sm:$0xff]
    %v741 = vld [vmem:[#allocation6 + $0x1068] sm:$0xff]
    %v742 = vld [vmem:[#allocation6 + $0x1070] sm:$0xff]
    %v743 = vld [vmem:[#allocation6 + $0x1078] sm:$0xff]
    %v744 = vld [vmem:[#allocation6 + $0x1080] sm:$0xff]
    %v745 = vld [vmem:[#allocation6 + $0x1088] sm:$0xff]
    %v746 = vld [vmem:[#allocation6 + $0x1090] sm:$0xff]
    %v747 = vld [vmem:[#allocation6 + $0x1098] sm:$0xff]
    %v748 = vld [vmem:[#allocation6 + $0x10a0] sm:$0xff]
    %v749 = vld [vmem:[#allocation6 + $0x10a8] sm:$0xff]
    %v750 = vld [vmem:[#allocation6 + $0x10b0] sm:$0xff]
    %v751 = vld [vmem:[#allocation6 + $0x10b8] sm:$0xff]
    %v752 = vld [vmem:[#allocation6 + $0x10c0] sm:$0xff]
    %v753 = vld [vmem:[#allocation6 + $0x10c8] sm:$0xff]
    %v754 = vld [vmem:[#allocation6 + $0x10d0] sm:$0xff]
    %v755 = vld [vmem:[#allocation6 + $0x10d8] sm:$0xff]
    %v756 = vld [vmem:[#allocation6 + $0x10e0] sm:$0xff]
    %v757 = vld [vmem:[#allocation6 + $0x10e8] sm:$0xff]
    %v758 = vld [vmem:[#allocation6 + $0x10f0] sm:$0xff]
    %v759 = vld [vmem:[#allocation6 + $0x10f8] sm:$0xff]
    %v760 = vld [vmem:[#allocation6 + $0x1100] sm:$0xff]
    %v761 = vld [vmem:[#allocation6 + $0x1108] sm:$0xff]
    %v762 = vld [vmem:[#allocation6 + $0x1110] sm:$0xff]
    %v763 = vld [vmem:[#allocation6 + $0x1118] sm:$0xff]
    %v764 = vld [vmem:[#allocation6 + $0x1120] sm:$0xff]
    %v765 = vld [vmem:[#allocation6 + $0x1128] sm:$0xff]
    %v766 = vld [vmem:[#allocation6 + $0x1130] sm:$0xff]
    %v767 = vld [vmem:[#allocation6 + $0x1138] sm:$0xff]
    %v768 = vld [vmem:[#allocation6 + $0x1140] sm:$0xff]
    %v769 = vld [vmem:[#allocation6 + $0x1148] sm:$0xff]
    %v770 = vld [vmem:[#allocation6 + $0x1150] sm:$0xff]
    %v771 = vld [vmem:[#allocation6 + $0x1158] sm:$0xff]
    %v772 = vld [vmem:[#allocation6 + $0x1160] sm:$0xff]
    %v773 = vld [vmem:[#allocation6 + $0x1168] sm:$0xff]
    %v774 = vld [vmem:[#allocation6 + $0x1170] sm:$0xff]
    %v775 = vld [vmem:[#allocation6 + $0x1178] sm:$0xff]
    %v776 = vld [vmem:[#allocation6 + $0x1180] sm:$0xff]
    %v777 = vld [vmem:[#allocation6 + $0x1188] sm:$0xff]
    %v778 = vld [vmem:[#allocation6 + $0x1190] sm:$0xff]
    %v779 = vld [vmem:[#allocation6 + $0x1198] sm:$0xff]
    %v780 = vld [vmem:[#allocation6 + $0x11a0] sm:$0xff]
    %v781 = vld [vmem:[#allocation6 + $0x11a8] sm:$0xff]
    %v782 = vld [vmem:[#allocation6 + $0x11b0] sm:$0xff]
    %v783 = vld [vmem:[#allocation6 + $0x11b8] sm:$0xff]
    %v784 = vld [vmem:[#allocation6 + $0x11c0] sm:$0xff]
    %v785 = vld [vmem:[#allocation6 + $0x11c8] sm:$0xff]
    %v786 = vld [vmem:[#allocation6 + $0x11d0] sm:$0xff]
    %v787 = vld [vmem:[#allocation6 + $0x11d8] sm:$0xff]
    %v788 = vld [vmem:[#allocation6 + $0x11e0] sm:$0xff]
    %v789 = vld [vmem:[#allocation6 + $0x11e8] sm:$0xff]
    %v790 = vld [vmem:[#allocation6 + $0x11f0] sm:$0xff]
    %v791 = vld [vmem:[#allocation6 + $0x11f8] sm:$0xff]
    %v792 = vld [vmem:[#allocation6 + $0x1200] sm:$0xff]
    %v793 = vld [vmem:[#allocation6 + $0x1208] sm:$0xff]
    %v794 = vld [vmem:[#allocation6 + $0x1210] sm:$0xff]
    %v795 = vld [vmem:[#allocation6 + $0x1218] sm:$0xff]
    %v796 = vld [vmem:[#allocation6 + $0x1220] sm:$0xff]
    %v797 = vld [vmem:[#allocation6 + $0x1228] sm:$0xff]
    %v798 = vld [vmem:[#allocation6 + $0x1230] sm:$0xff]
    %v799 = vld [vmem:[#allocation6 + $0x1238] sm:$0xff]
    %v800 = vld [vmem:[#allocation6 + $0x1240] sm:$0xff]
    %v801 = vld [vmem:[#allocation6 + $0x1248] sm:$0xff]
    %v802 = vld [vmem:[#allocation6 + $0x1250] sm:$0xff]
    %v803 = vld [vmem:[#allocation6 + $0x1258] sm:$0xff]
    %v804 = vld [vmem:[#allocation6 + $0x1260] sm:$0xff]
    %v805 = vld [vmem:[#allocation6 + $0x1268] sm:$0xff]
    %v806 = vld [vmem:[#allocation6 + $0x1270] sm:$0xff]
    %v807 = vld [vmem:[#allocation6 + $0x1278] sm:$0xff]
    %v808 = vld [vmem:[#allocation6 + $0x1280] sm:$0xff]
    %v809 = vld [vmem:[#allocation6 + $0x1288] sm:$0xff]
    %v810 = vld [vmem:[#allocation6 + $0x1290] sm:$0xff]
    %v811 = vld [vmem:[#allocation6 + $0x1298] sm:$0xff]
    %v812 = vld [vmem:[#allocation6 + $0x12a0] sm:$0xff]
    %v813 = vld [vmem:[#allocation6 + $0x12a8] sm:$0xff]
    %v814 = vld [vmem:[#allocation6 + $0x12b0] sm:$0xff]
    %v815 = vld [vmem:[#allocation6 + $0x12b8] sm:$0xff]
    %v816 = vld [vmem:[#allocation6 + $0x12c0] sm:$0xff]
    %v817 = vld [vmem:[#allocation6 + $0x12c8] sm:$0xff]
    %v818 = vld [vmem:[#allocation6 + $0x12d0] sm:$0xff]
    %v819 = vld [vmem:[#allocation6 + $0x12d8] sm:$0xff]
    %v820 = vld [vmem:[#allocation6 + $0x12e0] sm:$0xff]
    %v821 = vld [vmem:[#allocation6 + $0x12e8] sm:$0xff]
    %v822 = vld [vmem:[#allocation6 + $0x12f0] sm:$0xff]
    %v823 = vld [vmem:[#allocation6 + $0x12f8] sm:$0xff]
    %v824 = vld [vmem:[#allocation6 + $0x1300] sm:$0xff]
    %v825 = vld [vmem:[#allocation6 + $0x1308] sm:$0xff]
    %v826 = vld [vmem:[#allocation6 + $0x1310] sm:$0xff]
    %v827 = vld [vmem:[#allocation6 + $0x1318] sm:$0xff]
    %v828 = vld [vmem:[#allocation6 + $0x1320] sm:$0xff]
    %v829 = vld [vmem:[#allocation6 + $0x1328] sm:$0xff]
    %v830 = vld [vmem:[#allocation6 + $0x1330] sm:$0xff]
    %v831 = vld [vmem:[#allocation6 + $0x1338] sm:$0xff]
    %v832 = vld [vmem:[#allocation6 + $0x1340] sm:$0xff]
    %v833 = vld [vmem:[#allocation6 + $0x1348] sm:$0xff]
    %v834 = vld [vmem:[#allocation6 + $0x1350] sm:$0xff]
    %v835 = vld [vmem:[#allocation6 + $0x1358] sm:$0xff]
    %v836 = vld [vmem:[#allocation6 + $0x1360] sm:$0xff]
    %v837 = vld [vmem:[#allocation6 + $0x1368] sm:$0xff]
    %v838 = vld [vmem:[#allocation6 + $0x1370] sm:$0xff]
    %v839 = vld [vmem:[#allocation6 + $0x1378] sm:$0xff]
    %v840 = vld [vmem:[#allocation6 + $0x1380] sm:$0xff]
    %v841 = vld [vmem:[#allocation6 + $0x1388] sm:$0xff]
    %v842 = vld [vmem:[#allocation6 + $0x1390] sm:$0xff]
    %v843 = vld [vmem:[#allocation6 + $0x1398] sm:$0xff]
    %v844 = vld [vmem:[#allocation6 + $0x13a0] sm:$0xff]
    %v845 = vld [vmem:[#allocation6 + $0x13a8] sm:$0xff]
    %v846 = vld [vmem:[#allocation6 + $0x13b0] sm:$0xff]
    %v847 = vld [vmem:[#allocation6 + $0x13b8] sm:$0xff]
    %v848 = vld [vmem:[#allocation6 + $0x13c0] sm:$0xff]
    %v849 = vld [vmem:[#allocation6 + $0x13c8] sm:$0xff]
    %v850 = vld [vmem:[#allocation6 + $0x13d0] sm:$0xff]
    %v851 = vld [vmem:[#allocation6 + $0x13d8] sm:$0xff]
    %v852 = vld [vmem:[#allocation6 + $0x13e0] sm:$0xff]
    %v853 = vld [vmem:[#allocation6 + $0x13e8] sm:$0xff]
    %v854 = vld [vmem:[#allocation6 + $0x13f0] sm:$0xff]
    %v855 = vld [vmem:[#allocation6 + $0x13f8] sm:$0xff]
    %v856 = vld [vmem:[#allocation6 + $0x1400] sm:$0xff]
    %v857 = vld [vmem:[#allocation6 + $0x1408] sm:$0xff]
    %v858 = vld [vmem:[#allocation6 + $0x1410] sm:$0xff]
    %v859 = vld [vmem:[#allocation6 + $0x1418] sm:$0xff]
    %v860 = vld [vmem:[#allocation6 + $0x1420] sm:$0xff]
    %v861 = vld [vmem:[#allocation6 + $0x1428] sm:$0xff]
    %v862 = vld [vmem:[#allocation6 + $0x1430] sm:$0xff]
    %v863 = vld [vmem:[#allocation6 + $0x1438] sm:$0xff]
    %v864 = vld [vmem:[#allocation6 + $0x1440] sm:$0xff]
    %v865 = vld [vmem:[#allocation6 + $0x1448] sm:$0xff]
    %v866 = vld [vmem:[#allocation6 + $0x1450] sm:$0xff]
    %v867 = vld [vmem:[#allocation6 + $0x1458] sm:$0xff]
    %v868 = vld [vmem:[#allocation6 + $0x1460] sm:$0xff]
    %v869 = vld [vmem:[#allocation6 + $0x1468] sm:$0xff]
    %v870 = vld [vmem:[#allocation6 + $0x1470] sm:$0xff]
    %v871 = vld [vmem:[#allocation6 + $0x1478] sm:$0xff]
    %v872 = vld [vmem:[#allocation6 + $0x1480] sm:$0xff]
    %v873 = vld [vmem:[#allocation6 + $0x1488] sm:$0xff]
    %v874 = vld [vmem:[#allocation6 + $0x1490] sm:$0xff]
    %v875 = vld [vmem:[#allocation6 + $0x1498] sm:$0xff]
    %v876 = vld [vmem:[#allocation6 + $0x14a0] sm:$0xff]
    %v877 = vld [vmem:[#allocation6 + $0x14a8] sm:$0xff]
    %v878 = vld [vmem:[#allocation6 + $0x14b0] sm:$0xff]
    %v879 = vld [vmem:[#allocation6 + $0x14b8] sm:$0xff]
    %v880 = vld [vmem:[#allocation6 + $0x14c0] sm:$0xff]
    %v881 = vld [vmem:[#allocation6 + $0x14c8] sm:$0xff]
    %v882 = vld [vmem:[#allocation6 + $0x14d0] sm:$0xff]
    %v883 = vld [vmem:[#allocation6 + $0x14d8] sm:$0xff]
    %v884 = vld [vmem:[#allocation6 + $0x14e0] sm:$0xff]
    %v885 = vld [vmem:[#allocation6 + $0x14e8] sm:$0xff]
    %v886 = vld [vmem:[#allocation6 + $0x14f0] sm:$0xff]
    %v887 = vld [vmem:[#allocation6 + $0x14f8] sm:$0xff]
    %v888 = vld [vmem:[#allocation6 + $0x1500] sm:$0xff]
    %v889 = vld [vmem:[#allocation6 + $0x1508] sm:$0xff]
    %v890 = vld [vmem:[#allocation6 + $0x1510] sm:$0xff]
    %v891 = vld [vmem:[#allocation6 + $0x1518] sm:$0xff]
    %v892 = vld [vmem:[#allocation6 + $0x1520] sm:$0xff]
    %v893 = vld [vmem:[#allocation6 + $0x1528] sm:$0xff]
    %v894 = vld [vmem:[#allocation6 + $0x1530] sm:$0xff]
    %v895 = vld [vmem:[#allocation6 + $0x1538] sm:$0xff]
    %v896 = vld [vmem:[#allocation6 + $0x1540] sm:$0xff]
    %v897 = vld [vmem:[#allocation6 + $0x1548] sm:$0xff]
    %v898 = vld [vmem:[#allocation6 + $0x1550] sm:$0xff]
    %v899 = vld [vmem:[#allocation6 + $0x1558] sm:$0xff]
    %v900 = vld [vmem:[#allocation6 + $0x1560] sm:$0xff]
    %v901 = vld [vmem:[#allocation6 + $0x1568] sm:$0xff]
    %v902 = vld [vmem:[#allocation6 + $0x1570] sm:$0xff]
    %v903 = vld [vmem:[#allocation6 + $0x1578] sm:$0xff]
    %v904 = vld [vmem:[#allocation6 + $0x1580] sm:$0xff]
    %v905 = vld [vmem:[#allocation6 + $0x1588] sm:$0xff]
    %v906 = vld [vmem:[#allocation6 + $0x1590] sm:$0xff]
    %v907 = vld [vmem:[#allocation6 + $0x1598] sm:$0xff]
    %v908 = vld [vmem:[#allocation6 + $0x15a0] sm:$0xff]
    %v909 = vld [vmem:[#allocation6 + $0x15a8] sm:$0xff]
    %v910 = vld [vmem:[#allocation6 + $0x15b0] sm:$0xff]
    %v911 = vld [vmem:[#allocation6 + $0x15b8] sm:$0xff]
    %v912 = vld [vmem:[#allocation6 + $0x15c0] sm:$0xff]
    %v913 = vld [vmem:[#allocation6 + $0x15c8] sm:$0xff]
    %v914 = vld [vmem:[#allocation6 + $0x15d0] sm:$0xff]
    %v915 = vld [vmem:[#allocation6 + $0x15d8] sm:$0xff]
    %v916 = vld [vmem:[#allocation6 + $0x15e0] sm:$0xff]
    %v917 = vld [vmem:[#allocation6 + $0x15e8] sm:$0xff]
    %v918 = vld [vmem:[#allocation6 + $0x15f0] sm:$0xff]
    %v919 = vld [vmem:[#allocation6 + $0x15f8] sm:$0xff]
    %v920 = vld [vmem:[#allocation6 + $0x1600] sm:$0xff]
    %v921 = vld [vmem:[#allocation6 + $0x1608] sm:$0xff]
    %v922 = vld [vmem:[#allocation6 + $0x1610] sm:$0xff]
    %v923 = vld [vmem:[#allocation6 + $0x1618] sm:$0xff]
    %v924 = vld [vmem:[#allocation6 + $0x1620] sm:$0xff]
    %v925 = vld [vmem:[#allocation6 + $0x1628] sm:$0xff]
    %v926 = vld [vmem:[#allocation6 + $0x1630] sm:$0xff]
    %v927 = vld [vmem:[#allocation6 + $0x1638] sm:$0xff]
    %v928 = vld [vmem:[#allocation6 + $0x1640] sm:$0xff]
    %v929 = vld [vmem:[#allocation6 + $0x1648] sm:$0xff]
    %v930 = vld [vmem:[#allocation6 + $0x1650] sm:$0xff]
    %v931 = vld [vmem:[#allocation6 + $0x1658] sm:$0xff]
    %v932 = vld [vmem:[#allocation6 + $0x1660] sm:$0xff]
    %v933 = vld [vmem:[#allocation6 + $0x1668] sm:$0xff]
    %v934 = vld [vmem:[#allocation6 + $0x1670] sm:$0xff]
    %v935 = vld [vmem:[#allocation6 + $0x1678] sm:$0xff]
    %v936 = vld [vmem:[#allocation6 + $0x1680] sm:$0xff]
    %v937 = vld [vmem:[#allocation6 + $0x1688] sm:$0xff]
    %v938 = vld [vmem:[#allocation6 + $0x1690] sm:$0xff]
    %v939 = vld [vmem:[#allocation6 + $0x1698] sm:$0xff]
    %v940 = vld [vmem:[#allocation6 + $0x16a0] sm:$0xff]
    %v941 = vld [vmem:[#allocation6 + $0x16a8] sm:$0xff]
    %v942 = vld [vmem:[#allocation6 + $0x16b0] sm:$0xff]
    %v943 = vld [vmem:[#allocation6 + $0x16b8] sm:$0xff]
    %v944 = vld [vmem:[#allocation6 + $0x16c0] sm:$0xff]
    %v945 = vld [vmem:[#allocation6 + $0x16c8] sm:$0xff]
    %v946 = vld [vmem:[#allocation6 + $0x16d0] sm:$0xff]
    %v947 = vld [vmem:[#allocation6 + $0x16d8] sm:$0xff]
    %v948 = vld [vmem:[#allocation6 + $0x16e0] sm:$0xff]
    %v949 = vld [vmem:[#allocation6 + $0x16e8] sm:$0xff]
    %v950 = vld [vmem:[#allocation6 + $0x16f0] sm:$0xff]
    %v951 = vld [vmem:[#allocation6 + $0x16f8] sm:$0xff]
    %v952 = vld [vmem:[#allocation6 + $0x1700] sm:$0xff]
    %v953 = vld [vmem:[#allocation6 + $0x1708] sm:$0xff]
    %v954 = vld [vmem:[#allocation6 + $0x1710] sm:$0xff]
    %v955 = vld [vmem:[#allocation6 + $0x1718] sm:$0xff]
    %v956 = vld [vmem:[#allocation6 + $0x1720] sm:$0xff]
    %v957 = vld [vmem:[#allocation6 + $0x1728] sm:$0xff]
    %v958 = vld [vmem:[#allocation6 + $0x1730] sm:$0xff]
    %v959 = vld [vmem:[#allocation6 + $0x1738] sm:$0xff]
    %v960 = vld [vmem:[#allocation6 + $0x1740] sm:$0xff]
    %v961 = vld [vmem:[#allocation6 + $0x1748] sm:$0xff]
    %v962 = vld [vmem:[#allocation6 + $0x1750] sm:$0xff]
    %v963 = vld [vmem:[#allocation6 + $0x1758] sm:$0xff]
    %v964 = vld [vmem:[#allocation6 + $0x1760] sm:$0xff]
    %v965 = vld [vmem:[#allocation6 + $0x1768] sm:$0xff]
    %v966 = vld [vmem:[#allocation6 + $0x1770] sm:$0xff]
    %v967 = vld [vmem:[#allocation6 + $0x1778] sm:$0xff]
    %v968 = vld [vmem:[#allocation6 + $0x1780] sm:$0xff]
    %v969 = vld [vmem:[#allocation6 + $0x1788] sm:$0xff]
    %v970 = vld [vmem:[#allocation6 + $0x1790] sm:$0xff]
    %v971 = vld [vmem:[#allocation6 + $0x1798] sm:$0xff]
    %v972 = vld [vmem:[#allocation6 + $0x17a0] sm:$0xff]
    %v973 = vld [vmem:[#allocation6 + $0x17a8] sm:$0xff]
    %v974 = vld [vmem:[#allocation6 + $0x17b0] sm:$0xff]
    %v975 = vld [vmem:[#allocation6 + $0x17b8] sm:$0xff]
    %v976 = vld [vmem:[#allocation6 + $0x17c0] sm:$0xff]
    %v977 = vld [vmem:[#allocation6 + $0x17c8] sm:$0xff]
    %v978 = vld [vmem:[#allocation6 + $0x17d0] sm:$0xff]
    %v979 = vld [vmem:[#allocation6 + $0x17d8] sm:$0xff]
    %v980 = vld [vmem:[#allocation6 + $0x17e0] sm:$0xff]
    %v981 = vld [vmem:[#allocation6 + $0x17e8] sm:$0xff]
    %v982 = vld [vmem:[#allocation6 + $0x17f0] sm:$0xff]
    %v983 = vld [vmem:[#allocation6 + $0x17f8] sm:$0xff]
    %v1752 = vunpack.c.l.b16 %v216
    %v1753 = vunpack.c.h.b16 %v216
    %v1754 = vunpack.c.l.b16 %v217
    %v1755 = vunpack.c.h.b16 %v217
    %v1756 = vunpack.c.l.b16 %v218
    %v1757 = vunpack.c.h.b16 %v218
    %v1758 = vunpack.c.l.b16 %v219
    %v1759 = vunpack.c.h.b16 %v219
    %v1760 = vunpack.c.l.b16 %v220
    %v1761 = vunpack.c.h.b16 %v220
    %v1762 = vunpack.c.l.b16 %v221
    %v1763 = vunpack.c.h.b16 %v221
    %v1764 = vunpack.c.l.b16 %v222
    %v1765 = vunpack.c.h.b16 %v222
    %v1766 = vunpack.c.l.b16 %v223
    %v1767 = vunpack.c.h.b16 %v223
    %v1768 = vunpack.c.l.b16 %v224
    %v1769 = vunpack.c.h.b16 %v224
    %v1770 = vunpack.c.l.b16 %v225
    %v1771 = vunpack.c.h.b16 %v225
    %v1772 = vunpack.c.l.b16 %v226
    %v1773 = vunpack.c.h.b16 %v226
    %v1774 = vunpack.c.l.b16 %v227
    %v1775 = vunpack.c.h.b16 %v227
    %v1776 = vunpack.c.l.b16 %v228
    %v1777 = vunpack.c.h.b16 %v228
    %v1778 = vunpack.c.l.b16 %v229
    %v1779 = vunpack.c.h.b16 %v229
    %v1780 = vunpack.c.l.b16 %v230
    %v1781 = vunpack.c.h.b16 %v230
    %v1782 = vunpack.c.l.b16 %v231
    %v1783 = vunpack.c.h.b16 %v231
    %v1784 = vunpack.c.l.b16 %v232
    %v1785 = vunpack.c.h.b16 %v232
    %v1786 = vunpack.c.l.b16 %v233
    %v1787 = vunpack.c.h.b16 %v233
    %v1788 = vunpack.c.l.b16 %v234
    %v1789 = vunpack.c.h.b16 %v234
    %v1790 = vunpack.c.l.b16 %v235
    %v1791 = vunpack.c.h.b16 %v235
    %v1792 = vunpack.c.l.b16 %v236
    %v1793 = vunpack.c.h.b16 %v236
    %v1794 = vunpack.c.l.b16 %v237
    %v1795 = vunpack.c.h.b16 %v237
    %v1796 = vunpack.c.l.b16 %v238
    %v1797 = vunpack.c.h.b16 %v238
    %v1798 = vunpack.c.l.b16 %v239
    %v1799 = vunpack.c.h.b16 %v239
    %v1800 = vunpack.c.l.b16 %v240
    %v1801 = vunpack.c.h.b16 %v240
    %v1802 = vunpack.c.l.b16 %v241
    %v1803 = vunpack.c.h.b16 %v241
    %v1804 = vunpack.c.l.b16 %v242
    %v1805 = vunpack.c.h.b16 %v242
    %v1806 = vunpack.c.l.b16 %v243
    %v1807 = vunpack.c.h.b16 %v243
    %v1808 = vunpack.c.l.b16 %v244
    %v1809 = vunpack.c.h.b16 %v244
    %v1810 = vunpack.c.l.b16 %v245
    %v1811 = vunpack.c.h.b16 %v245
    %v1812 = vunpack.c.l.b16 %v246
    %v1813 = vunpack.c.h.b16 %v246
    %v1814 = vunpack.c.l.b16 %v247
    %v1815 = vunpack.c.h.b16 %v247
    %v1816 = vunpack.c.l.b16 %v248
    %v1817 = vunpack.c.h.b16 %v248
    %v1818 = vunpack.c.l.b16 %v249
    %v1819 = vunpack.c.h.b16 %v249
    %v1820 = vunpack.c.l.b16 %v250
    %v1821 = vunpack.c.h.b16 %v250
    %v1822 = vunpack.c.l.b16 %v251
    %v1823 = vunpack.c.h.b16 %v251
    %v1824 = vunpack.c.l.b16 %v252
    %v1825 = vunpack.c.h.b16 %v252
    %v1826 = vunpack.c.l.b16 %v253
    %v1827 = vunpack.c.h.b16 %v253
    %v1828 = vunpack.c.l.b16 %v254
    %v1829 = vunpack.c.h.b16 %v254
    %v1830 = vunpack.c.l.b16 %v255
    %v1831 = vunpack.c.h.b16 %v255
    %v1832 = vunpack.c.l.b16 %v256
    %v1833 = vunpack.c.h.b16 %v256
    %v1834 = vunpack.c.l.b16 %v257
    %v1835 = vunpack.c.h.b16 %v257
    %v1836 = vunpack.c.l.b16 %v258
    %v1837 = vunpack.c.h.b16 %v258
    %v1838 = vunpack.c.l.b16 %v259
    %v1839 = vunpack.c.h.b16 %v259
    %v1840 = vunpack.c.l.b16 %v260
    %v1841 = vunpack.c.h.b16 %v260
    %v1842 = vunpack.c.l.b16 %v261
    %v1843 = vunpack.c.h.b16 %v261
    %v1844 = vunpack.c.l.b16 %v262
    %v1845 = vunpack.c.h.b16 %v262
    %v1846 = vunpack.c.l.b16 %v263
    %v1847 = vunpack.c.h.b16 %v263
    %v1848 = vunpack.c.l.b16 %v264
    %v1849 = vunpack.c.h.b16 %v264
    %v1850 = vunpack.c.l.b16 %v265
    %v1851 = vunpack.c.h.b16 %v265
    %v1852 = vunpack.c.l.b16 %v266
    %v1853 = vunpack.c.h.b16 %v266
    %v1854 = vunpack.c.l.b16 %v267
    %v1855 = vunpack.c.h.b16 %v267
    %v1856 = vunpack.c.l.b16 %v268
    %v1857 = vunpack.c.h.b16 %v268
    %v1858 = vunpack.c.l.b16 %v269
    %v1859 = vunpack.c.h.b16 %v269
    %v1860 = vunpack.c.l.b16 %v270
    %v1861 = vunpack.c.h.b16 %v270
    %v1862 = vunpack.c.l.b16 %v271
    %v1863 = vunpack.c.h.b16 %v271
    %v1864 = vunpack.c.l.b16 %v272
    %v1865 = vunpack.c.h.b16 %v272
    %v1866 = vunpack.c.l.b16 %v273
    %v1867 = vunpack.c.h.b16 %v273
    %v1868 = vunpack.c.l.b16 %v274
    %v1869 = vunpack.c.h.b16 %v274
    %v1870 = vunpack.c.l.b16 %v275
    %v1871 = vunpack.c.h.b16 %v275
    %v1872 = vunpack.c.l.b16 %v276
    %v1873 = vunpack.c.h.b16 %v276
    %v1874 = vunpack.c.l.b16 %v277
    %v1875 = vunpack.c.h.b16 %v277
    %v1876 = vunpack.c.l.b16 %v278
    %v1877 = vunpack.c.h.b16 %v278
    %v1878 = vunpack.c.l.b16 %v279
    %v1879 = vunpack.c.h.b16 %v279
    %v1880 = vunpack.c.l.b16 %v280
    %v1881 = vunpack.c.h.b16 %v280
    %v1882 = vunpack.c.l.b16 %v281
    %v1883 = vunpack.c.h.b16 %v281
    %v1884 = vunpack.c.l.b16 %v282
    %v1885 = vunpack.c.h.b16 %v282
    %v1886 = vunpack.c.l.b16 %v283
    %v1887 = vunpack.c.h.b16 %v283
    %v1888 = vunpack.c.l.b16 %v284
    %v1889 = vunpack.c.h.b16 %v284
    %v1890 = vunpack.c.l.b16 %v285
    %v1891 = vunpack.c.h.b16 %v285
    %v1892 = vunpack.c.l.b16 %v286
    %v1893 = vunpack.c.h.b16 %v286
    %v1894 = vunpack.c.l.b16 %v287
    %v1895 = vunpack.c.h.b16 %v287
    %v1896 = vunpack.c.l.b16 %v288
    %v1897 = vunpack.c.h.b16 %v288
    %v1898 = vunpack.c.l.b16 %v289
    %v1899 = vunpack.c.h.b16 %v289
    %v1900 = vunpack.c.l.b16 %v290
    %v1901 = vunpack.c.h.b16 %v290
    %v1902 = vunpack.c.l.b16 %v291
    %v1903 = vunpack.c.h.b16 %v291
    %v1904 = vunpack.c.l.b16 %v292
    %v1905 = vunpack.c.h.b16 %v292
    %v1906 = vunpack.c.l.b16 %v293
    %v1907 = vunpack.c.h.b16 %v293
    %v1908 = vunpack.c.l.b16 %v294
    %v1909 = vunpack.c.h.b16 %v294
    %v1910 = vunpack.c.l.b16 %v295
    %v1911 = vunpack.c.h.b16 %v295
    %v1912 = vunpack.c.l.b16 %v296
    %v1913 = vunpack.c.h.b16 %v296
    %v1914 = vunpack.c.l.b16 %v297
    %v1915 = vunpack.c.h.b16 %v297
    %v1916 = vunpack.c.l.b16 %v298
    %v1917 = vunpack.c.h.b16 %v298
    %v1918 = vunpack.c.l.b16 %v299
    %v1919 = vunpack.c.h.b16 %v299
    %v1920 = vunpack.c.l.b16 %v300
    %v1921 = vunpack.c.h.b16 %v300
    %v1922 = vunpack.c.l.b16 %v301
    %v1923 = vunpack.c.h.b16 %v301
    %v1924 = vunpack.c.l.b16 %v302
    %v1925 = vunpack.c.h.b16 %v302
    %v1926 = vunpack.c.l.b16 %v303
    %v1927 = vunpack.c.h.b16 %v303
    %v1928 = vunpack.c.l.b16 %v304
    %v1929 = vunpack.c.h.b16 %v304
    %v1930 = vunpack.c.l.b16 %v305
    %v1931 = vunpack.c.h.b16 %v305
    %v1932 = vunpack.c.l.b16 %v306
    %v1933 = vunpack.c.h.b16 %v306
    %v1934 = vunpack.c.l.b16 %v307
    %v1935 = vunpack.c.h.b16 %v307
    %v1936 = vunpack.c.l.b16 %v308
    %v1937 = vunpack.c.h.b16 %v308
    %v1938 = vunpack.c.l.b16 %v309
    %v1939 = vunpack.c.h.b16 %v309
    %v1940 = vunpack.c.l.b16 %v310
    %v1941 = vunpack.c.h.b16 %v310
    %v1942 = vunpack.c.l.b16 %v311
    %v1943 = vunpack.c.h.b16 %v311
    %v1944 = vunpack.c.l.b16 %v312
    %v1945 = vunpack.c.h.b16 %v312
    %v1946 = vunpack.c.l.b16 %v313
    %v1947 = vunpack.c.h.b16 %v313
    %v1948 = vunpack.c.l.b16 %v314
    %v1949 = vunpack.c.h.b16 %v314
    %v1950 = vunpack.c.l.b16 %v315
    %v1951 = vunpack.c.h.b16 %v315
    %v1952 = vunpack.c.l.b16 %v316
    %v1953 = vunpack.c.h.b16 %v316
    %v1954 = vunpack.c.l.b16 %v317
    %v1955 = vunpack.c.h.b16 %v317
    %v1956 = vunpack.c.l.b16 %v318
    %v1957 = vunpack.c.h.b16 %v318
    %v1958 = vunpack.c.l.b16 %v319
    %v1959 = vunpack.c.h.b16 %v319
    %v1960 = vunpack.c.l.b16 %v320
    %v1961 = vunpack.c.h.b16 %v320
    %v1962 = vunpack.c.l.b16 %v321
    %v1963 = vunpack.c.h.b16 %v321
    %v1964 = vunpack.c.l.b16 %v322
    %v1965 = vunpack.c.h.b16 %v322
    %v1966 = vunpack.c.l.b16 %v323
    %v1967 = vunpack.c.h.b16 %v323
    %v1968 = vunpack.c.l.b16 %v324
    %v1969 = vunpack.c.h.b16 %v324
    %v1970 = vunpack.c.l.b16 %v325
    %v1971 = vunpack.c.h.b16 %v325
    %v1972 = vunpack.c.l.b16 %v326
    %v1973 = vunpack.c.h.b16 %v326
    %v1974 = vunpack.c.l.b16 %v327
    %v1975 = vunpack.c.h.b16 %v327
    %v1976 = vunpack.c.l.b16 %v328
    %v1977 = vunpack.c.h.b16 %v328
    %v1978 = vunpack.c.l.b16 %v329
    %v1979 = vunpack.c.h.b16 %v329
    %v1980 = vunpack.c.l.b16 %v330
    %v1981 = vunpack.c.h.b16 %v330
    %v1982 = vunpack.c.l.b16 %v331
    %v1983 = vunpack.c.h.b16 %v331
    %v1984 = vunpack.c.l.b16 %v332
    %v1985 = vunpack.c.h.b16 %v332
    %v1986 = vunpack.c.l.b16 %v333
    %v1987 = vunpack.c.h.b16 %v333
    %v1988 = vunpack.c.l.b16 %v334
    %v1989 = vunpack.c.h.b16 %v334
    %v1990 = vunpack.c.l.b16 %v335
    %v1991 = vunpack.c.h.b16 %v335
    %v1992 = vunpack.c.l.b16 %v336
    %v1993 = vunpack.c.h.b16 %v336
    %v1994 = vunpack.c.l.b16 %v337
    %v1995 = vunpack.c.h.b16 %v337
    %v1996 = vunpack.c.l.b16 %v338
    %v1997 = vunpack.c.h.b16 %v338
    %v1998 = vunpack.c.l.b16 %v339
    %v1999 = vunpack.c.h.b16 %v339
    %v2000 = vunpack.c.l.b16 %v340
    %v2001 = vunpack.c.h.b16 %v340
    %v2002 = vunpack.c.l.b16 %v341
    %v2003 = vunpack.c.h.b16 %v341
    %v2004 = vunpack.c.l.b16 %v342
    %v2005 = vunpack.c.h.b16 %v342
    %v2006 = vunpack.c.l.b16 %v343
    %v2007 = vunpack.c.h.b16 %v343
    %v2008 = vunpack.c.l.b16 %v344
    %v2009 = vunpack.c.h.b16 %v344
    %v2010 = vunpack.c.l.b16 %v345
    %v2011 = vunpack.c.h.b16 %v345
    %v2012 = vunpack.c.l.b16 %v346
    %v2013 = vunpack.c.h.b16 %v346
    %v2014 = vunpack.c.l.b16 %v347
    %v2015 = vunpack.c.h.b16 %v347
    %v2016 = vunpack.c.l.b16 %v348
    %v2017 = vunpack.c.h.b16 %v348
    %v2018 = vunpack.c.l.b16 %v349
    %v2019 = vunpack.c.h.b16 %v349
    %v2020 = vunpack.c.l.b16 %v350
    %v2021 = vunpack.c.h.b16 %v350
    %v2022 = vunpack.c.l.b16 %v351
    %v2023 = vunpack.c.h.b16 %v351
    %v2024 = vunpack.c.l.b16 %v352
    %v2025 = vunpack.c.h.b16 %v352
    %v2026 = vunpack.c.l.b16 %v353
    %v2027 = vunpack.c.h.b16 %v353
    %v2028 = vunpack.c.l.b16 %v354
    %v2029 = vunpack.c.h.b16 %v354
    %v2030 = vunpack.c.l.b16 %v355
    %v2031 = vunpack.c.h.b16 %v355
    %v2032 = vunpack.c.l.b16 %v356
    %v2033 = vunpack.c.h.b16 %v356
    %v2034 = vunpack.c.l.b16 %v357
    %v2035 = vunpack.c.h.b16 %v357
    %v2036 = vunpack.c.l.b16 %v358
    %v2037 = vunpack.c.h.b16 %v358
    %v2038 = vunpack.c.l.b16 %v359
    %v2039 = vunpack.c.h.b16 %v359
    %v2040 = vunpack.c.l.b16 %v360
    %v2041 = vunpack.c.h.b16 %v360
    %v2042 = vunpack.c.l.b16 %v361
    %v2043 = vunpack.c.h.b16 %v361
    %v2044 = vunpack.c.l.b16 %v362
    %v2045 = vunpack.c.h.b16 %v362
    %v2046 = vunpack.c.l.b16 %v363
    %v2047 = vunpack.c.h.b16 %v363
    %v2048 = vunpack.c.l.b16 %v364
    %v2049 = vunpack.c.h.b16 %v364
    %v2050 = vunpack.c.l.b16 %v365
    %v2051 = vunpack.c.h.b16 %v365
    %v2052 = vunpack.c.l.b16 %v366
    %v2053 = vunpack.c.h.b16 %v366
    %v2054 = vunpack.c.l.b16 %v367
    %v2055 = vunpack.c.h.b16 %v367
    %v2056 = vunpack.c.l.b16 %v368
    %v2057 = vunpack.c.h.b16 %v368
    %v2058 = vunpack.c.l.b16 %v369
    %v2059 = vunpack.c.h.b16 %v369
    %v2060 = vunpack.c.l.b16 %v370
    %v2061 = vunpack.c.h.b16 %v370
    %v2062 = vunpack.c.l.b16 %v371
    %v2063 = vunpack.c.h.b16 %v371
    %v2064 = vunpack.c.l.b16 %v372
    %v2065 = vunpack.c.h.b16 %v372
    %v2066 = vunpack.c.l.b16 %v373
    %v2067 = vunpack.c.h.b16 %v373
    %v2068 = vunpack.c.l.b16 %v374
    %v2069 = vunpack.c.h.b16 %v374
    %v2070 = vunpack.c.l.b16 %v375
    %v2071 = vunpack.c.h.b16 %v375
    %v2072 = vunpack.c.l.b16 %v376
    %v2073 = vunpack.c.h.b16 %v376
    %v2074 = vunpack.c.l.b16 %v377
    %v2075 = vunpack.c.h.b16 %v377
    %v2076 = vunpack.c.l.b16 %v378
    %v2077 = vunpack.c.h.b16 %v378
    %v2078 = vunpack.c.l.b16 %v379
    %v2079 = vunpack.c.h.b16 %v379
    %v2080 = vunpack.c.l.b16 %v380
    %v2081 = vunpack.c.h.b16 %v380
    %v2082 = vunpack.c.l.b16 %v381
    %v2083 = vunpack.c.h.b16 %v381
    %v2084 = vunpack.c.l.b16 %v382
    %v2085 = vunpack.c.h.b16 %v382
    %v2086 = vunpack.c.l.b16 %v383
    %v2087 = vunpack.c.h.b16 %v383
    %v2088 = vunpack.c.l.b16 %v384
    %v2089 = vunpack.c.h.b16 %v384
    %v2090 = vunpack.c.l.b16 %v385
    %v2091 = vunpack.c.h.b16 %v385
    %v2092 = vunpack.c.l.b16 %v386
    %v2093 = vunpack.c.h.b16 %v386
    %v2094 = vunpack.c.l.b16 %v387
    %v2095 = vunpack.c.h.b16 %v387
    %v2096 = vunpack.c.l.b16 %v388
    %v2097 = vunpack.c.h.b16 %v388
    %v2098 = vunpack.c.l.b16 %v389
    %v2099 = vunpack.c.h.b16 %v389
    %v2100 = vunpack.c.l.b16 %v390
    %v2101 = vunpack.c.h.b16 %v390
    %v2102 = vunpack.c.l.b16 %v391
    %v2103 = vunpack.c.h.b16 %v391
    %v2104 = vunpack.c.l.b16 %v392
    %v2105 = vunpack.c.h.b16 %v392
    %v2106 = vunpack.c.l.b16 %v393
    %v2107 = vunpack.c.h.b16 %v393
    %v2108 = vunpack.c.l.b16 %v394
    %v2109 = vunpack.c.h.b16 %v394
    %v2110 = vunpack.c.l.b16 %v395
    %v2111 = vunpack.c.h.b16 %v395
    %v2112 = vunpack.c.l.b16 %v396
    %v2113 = vunpack.c.h.b16 %v396
    %v2114 = vunpack.c.l.b16 %v397
    %v2115 = vunpack.c.h.b16 %v397
    %v2116 = vunpack.c.l.b16 %v398
    %v2117 = vunpack.c.h.b16 %v398
    %v2118 = vunpack.c.l.b16 %v399
    %v2119 = vunpack.c.h.b16 %v399
    %v2120 = vunpack.c.l.b16 %v400
    %v2121 = vunpack.c.h.b16 %v400
    %v2122 = vunpack.c.l.b16 %v401
    %v2123 = vunpack.c.h.b16 %v401
    %v2124 = vunpack.c.l.b16 %v402
    %v2125 = vunpack.c.h.b16 %v402
    %v2126 = vunpack.c.l.b16 %v403
    %v2127 = vunpack.c.h.b16 %v403
    %v2128 = vunpack.c.l.b16 %v404
    %v2129 = vunpack.c.h.b16 %v404
    %v2130 = vunpack.c.l.b16 %v405
    %v2131 = vunpack.c.h.b16 %v405
    %v2132 = vunpack.c.l.b16 %v406
    %v2133 = vunpack.c.h.b16 %v406
    %v2134 = vunpack.c.l.b16 %v407
    %v2135 = vunpack.c.h.b16 %v407
    %v2136 = vunpack.c.l.b16 %v408
    %v2137 = vunpack.c.h.b16 %v408
    %v2138 = vunpack.c.l.b16 %v409
    %v2139 = vunpack.c.h.b16 %v409
    %v2140 = vunpack.c.l.b16 %v410
    %v2141 = vunpack.c.h.b16 %v410
    %v2142 = vunpack.c.l.b16 %v411
    %v2143 = vunpack.c.h.b16 %v411
    %v2144 = vunpack.c.l.b16 %v412
    %v2145 = vunpack.c.h.b16 %v412
    %v2146 = vunpack.c.l.b16 %v413
    %v2147 = vunpack.c.h.b16 %v413
    %v2148 = vunpack.c.l.b16 %v414
    %v2149 = vunpack.c.h.b16 %v414
    %v2150 = vunpack.c.l.b16 %v415
    %v2151 = vunpack.c.h.b16 %v415
    %v2152 = vunpack.c.l.b16 %v416
    %v2153 = vunpack.c.h.b16 %v416
    %v2154 = vunpack.c.l.b16 %v417
    %v2155 = vunpack.c.h.b16 %v417
    %v2156 = vunpack.c.l.b16 %v418
    %v2157 = vunpack.c.h.b16 %v418
    %v2158 = vunpack.c.l.b16 %v419
    %v2159 = vunpack.c.h.b16 %v419
    %v2160 = vunpack.c.l.b16 %v420
    %v2161 = vunpack.c.h.b16 %v420
    %v2162 = vunpack.c.l.b16 %v421
    %v2163 = vunpack.c.h.b16 %v421
    %v2164 = vunpack.c.l.b16 %v422
    %v2165 = vunpack.c.h.b16 %v422
    %v2166 = vunpack.c.l.b16 %v423
    %v2167 = vunpack.c.h.b16 %v423
    %v2168 = vunpack.c.l.b16 %v424
    %v2169 = vunpack.c.h.b16 %v424
    %v2170 = vunpack.c.l.b16 %v425
    %v2171 = vunpack.c.h.b16 %v425
    %v2172 = vunpack.c.l.b16 %v426
    %v2173 = vunpack.c.h.b16 %v426
    %v2174 = vunpack.c.l.b16 %v427
    %v2175 = vunpack.c.h.b16 %v427
    %v2176 = vunpack.c.l.b16 %v428
    %v2177 = vunpack.c.h.b16 %v428
    %v2178 = vunpack.c.l.b16 %v429
    %v2179 = vunpack.c.h.b16 %v429
    %v2180 = vunpack.c.l.b16 %v430
    %v2181 = vunpack.c.h.b16 %v430
    %v2182 = vunpack.c.l.b16 %v431
    %v2183 = vunpack.c.h.b16 %v431
    %v2184 = vunpack.c.l.b16 %v432
    %v2185 = vunpack.c.h.b16 %v432
    %v2186 = vunpack.c.l.b16 %v433
    %v2187 = vunpack.c.h.b16 %v433
    %v2188 = vunpack.c.l.b16 %v434
    %v2189 = vunpack.c.h.b16 %v434
    %v2190 = vunpack.c.l.b16 %v435
    %v2191 = vunpack.c.h.b16 %v435
    %v2192 = vunpack.c.l.b16 %v436
    %v2193 = vunpack.c.h.b16 %v436
    %v2194 = vunpack.c.l.b16 %v437
    %v2195 = vunpack.c.h.b16 %v437
    %v2196 = vunpack.c.l.b16 %v438
    %v2197 = vunpack.c.h.b16 %v438
    %v2198 = vunpack.c.l.b16 %v439
    %v2199 = vunpack.c.h.b16 %v439
    %v2200 = vunpack.c.l.b16 %v440
    %v2201 = vunpack.c.h.b16 %v440
    %v2202 = vunpack.c.l.b16 %v441
    %v2203 = vunpack.c.h.b16 %v441
    %v2204 = vunpack.c.l.b16 %v442
    %v2205 = vunpack.c.h.b16 %v442
    %v2206 = vunpack.c.l.b16 %v443
    %v2207 = vunpack.c.h.b16 %v443
    %v2208 = vunpack.c.l.b16 %v444
    %v2209 = vunpack.c.h.b16 %v444
    %v2210 = vunpack.c.l.b16 %v445
    %v2211 = vunpack.c.h.b16 %v445
    %v2212 = vunpack.c.l.b16 %v446
    %v2213 = vunpack.c.h.b16 %v446
    %v2214 = vunpack.c.l.b16 %v447
    %v2215 = vunpack.c.h.b16 %v447
    %v2216 = vunpack.c.l.b16 %v448
    %v2217 = vunpack.c.h.b16 %v448
    %v2218 = vunpack.c.l.b16 %v449
    %v2219 = vunpack.c.h.b16 %v449
    %v2220 = vunpack.c.l.b16 %v450
    %v2221 = vunpack.c.h.b16 %v450
    %v2222 = vunpack.c.l.b16 %v451
    %v2223 = vunpack.c.h.b16 %v451
    %v2224 = vunpack.c.l.b16 %v452
    %v2225 = vunpack.c.h.b16 %v452
    %v2226 = vunpack.c.l.b16 %v453
    %v2227 = vunpack.c.h.b16 %v453
    %v2228 = vunpack.c.l.b16 %v454
    %v2229 = vunpack.c.h.b16 %v454
    %v2230 = vunpack.c.l.b16 %v455
    %v2231 = vunpack.c.h.b16 %v455
    %v2232 = vunpack.c.l.b16 %v456
    %v2233 = vunpack.c.h.b16 %v456
    %v2234 = vunpack.c.l.b16 %v457
    %v2235 = vunpack.c.h.b16 %v457
    %v2236 = vunpack.c.l.b16 %v458
    %v2237 = vunpack.c.h.b16 %v458
    %v2238 = vunpack.c.l.b16 %v459
    %v2239 = vunpack.c.h.b16 %v459
    %v2240 = vunpack.c.l.b16 %v460
    %v2241 = vunpack.c.h.b16 %v460
    %v2242 = vunpack.c.l.b16 %v461
    %v2243 = vunpack.c.h.b16 %v461
    %v2244 = vunpack.c.l.b16 %v462
    %v2245 = vunpack.c.h.b16 %v462
    %v2246 = vunpack.c.l.b16 %v463
    %v2247 = vunpack.c.h.b16 %v463
    %v2248 = vunpack.c.l.b16 %v464
    %v2249 = vunpack.c.h.b16 %v464
    %v2250 = vunpack.c.l.b16 %v465
    %v2251 = vunpack.c.h.b16 %v465
    %v2252 = vunpack.c.l.b16 %v466
    %v2253 = vunpack.c.h.b16 %v466
    %v2254 = vunpack.c.l.b16 %v467
    %v2255 = vunpack.c.h.b16 %v467
    %v2256 = vunpack.c.l.b16 %v468
    %v2257 = vunpack.c.h.b16 %v468
    %v2258 = vunpack.c.l.b16 %v469
    %v2259 = vunpack.c.h.b16 %v469
    %v2260 = vunpack.c.l.b16 %v470
    %v2261 = vunpack.c.h.b16 %v470
    %v2262 = vunpack.c.l.b16 %v471
    %v2263 = vunpack.c.h.b16 %v471
    %v2264 = vunpack.c.l.b16 %v472
    %v2265 = vunpack.c.h.b16 %v472
    %v2266 = vunpack.c.l.b16 %v473
    %v2267 = vunpack.c.h.b16 %v473
    %v2268 = vunpack.c.l.b16 %v474
    %v2269 = vunpack.c.h.b16 %v474
    %v2270 = vunpack.c.l.b16 %v475
    %v2271 = vunpack.c.h.b16 %v475
    %v2272 = vunpack.c.l.b16 %v476
    %v2273 = vunpack.c.h.b16 %v476
    %v2274 = vunpack.c.l.b16 %v477
    %v2275 = vunpack.c.h.b16 %v477
    %v2276 = vunpack.c.l.b16 %v478
    %v2277 = vunpack.c.h.b16 %v478
    %v2278 = vunpack.c.l.b16 %v479
    %v2279 = vunpack.c.h.b16 %v479
    %v2280 = vunpack.c.l.b16 %v480
    %v2281 = vunpack.c.h.b16 %v480
    %v2282 = vunpack.c.l.b16 %v481
    %v2283 = vunpack.c.h.b16 %v481
    %v2284 = vunpack.c.l.b16 %v482
    %v2285 = vunpack.c.h.b16 %v482
    %v2286 = vunpack.c.l.b16 %v483
    %v2287 = vunpack.c.h.b16 %v483
    %v2288 = vunpack.c.l.b16 %v484
    %v2289 = vunpack.c.h.b16 %v484
    %v2290 = vunpack.c.l.b16 %v485
    %v2291 = vunpack.c.h.b16 %v485
    %v2292 = vunpack.c.l.b16 %v486
    %v2293 = vunpack.c.h.b16 %v486
    %v2294 = vunpack.c.l.b16 %v487
    %v2295 = vunpack.c.h.b16 %v487
    %v2296 = vunpack.c.l.b16 %v488
    %v2297 = vunpack.c.h.b16 %v488
    %v2298 = vunpack.c.l.b16 %v489
    %v2299 = vunpack.c.h.b16 %v489
    %v2300 = vunpack.c.l.b16 %v490
    %v2301 = vunpack.c.h.b16 %v490
    %v2302 = vunpack.c.l.b16 %v491
    %v2303 = vunpack.c.h.b16 %v491
    %v2304 = vunpack.c.l.b16 %v492
    %v2305 = vunpack.c.h.b16 %v492
    %v2306 = vunpack.c.l.b16 %v493
    %v2307 = vunpack.c.h.b16 %v493
    %v2308 = vunpack.c.l.b16 %v494
    %v2309 = vunpack.c.h.b16 %v494
    %v2310 = vunpack.c.l.b16 %v495
    %v2311 = vunpack.c.h.b16 %v495
    %v2312 = vunpack.c.l.b16 %v496
    %v2313 = vunpack.c.h.b16 %v496
    %v2314 = vunpack.c.l.b16 %v497
    %v2315 = vunpack.c.h.b16 %v497
    %v2316 = vunpack.c.l.b16 %v498
    %v2317 = vunpack.c.h.b16 %v498
    %v2318 = vunpack.c.l.b16 %v499
    %v2319 = vunpack.c.h.b16 %v499
    %v2320 = vunpack.c.l.b16 %v500
    %v2321 = vunpack.c.h.b16 %v500
    %v2322 = vunpack.c.l.b16 %v501
    %v2323 = vunpack.c.h.b16 %v501
    %v2324 = vunpack.c.l.b16 %v502
    %v2325 = vunpack.c.h.b16 %v502
    %v2326 = vunpack.c.l.b16 %v503
    %v2327 = vunpack.c.h.b16 %v503
    %v2328 = vunpack.c.l.b16 %v504
    %v2329 = vunpack.c.h.b16 %v504
    %v2330 = vunpack.c.l.b16 %v505
    %v2331 = vunpack.c.h.b16 %v505
    %v2332 = vunpack.c.l.b16 %v506
    %v2333 = vunpack.c.h.b16 %v506
    %v2334 = vunpack.c.l.b16 %v507
    %v2335 = vunpack.c.h.b16 %v507
    %v2336 = vunpack.c.l.b16 %v508
    %v2337 = vunpack.c.h.b16 %v508
    %v2338 = vunpack.c.l.b16 %v509
    %v2339 = vunpack.c.h.b16 %v509
    %v2340 = vunpack.c.l.b16 %v510
    %v2341 = vunpack.c.h.b16 %v510
    %v2342 = vunpack.c.l.b16 %v511
    %v2343 = vunpack.c.h.b16 %v511
    %v2344 = vunpack.c.l.b16 %v512
    %v2345 = vunpack.c.h.b16 %v512
    %v2346 = vunpack.c.l.b16 %v513
    %v2347 = vunpack.c.h.b16 %v513
    %v2348 = vunpack.c.l.b16 %v514
    %v2349 = vunpack.c.h.b16 %v514
    %v2350 = vunpack.c.l.b16 %v515
    %v2351 = vunpack.c.h.b16 %v515
    %v2352 = vunpack.c.l.b16 %v516
    %v2353 = vunpack.c.h.b16 %v516
    %v2354 = vunpack.c.l.b16 %v517
    %v2355 = vunpack.c.h.b16 %v517
    %v2356 = vunpack.c.l.b16 %v518
    %v2357 = vunpack.c.h.b16 %v518
    %v2358 = vunpack.c.l.b16 %v519
    %v2359 = vunpack.c.h.b16 %v519
    %v2360 = vunpack.c.l.b16 %v520
    %v2361 = vunpack.c.h.b16 %v520
    %v2362 = vunpack.c.l.b16 %v521
    %v2363 = vunpack.c.h.b16 %v521
    %v2364 = vunpack.c.l.b16 %v522
    %v2365 = vunpack.c.h.b16 %v522
    %v2366 = vunpack.c.l.b16 %v523
    %v2367 = vunpack.c.h.b16 %v523
    %v2368 = vunpack.c.l.b16 %v524
    %v2369 = vunpack.c.h.b16 %v524
    %v2370 = vunpack.c.l.b16 %v525
    %v2371 = vunpack.c.h.b16 %v525
    %v2372 = vunpack.c.l.b16 %v526
    %v2373 = vunpack.c.h.b16 %v526
    %v2374 = vunpack.c.l.b16 %v527
    %v2375 = vunpack.c.h.b16 %v527
    %v2376 = vunpack.c.l.b16 %v528
    %v2377 = vunpack.c.h.b16 %v528
    %v2378 = vunpack.c.l.b16 %v529
    %v2379 = vunpack.c.h.b16 %v529
    %v2380 = vunpack.c.l.b16 %v530
    %v2381 = vunpack.c.h.b16 %v530
    %v2382 = vunpack.c.l.b16 %v531
    %v2383 = vunpack.c.h.b16 %v531
    %v2384 = vunpack.c.l.b16 %v532
    %v2385 = vunpack.c.h.b16 %v532
    %v2386 = vunpack.c.l.b16 %v533
    %v2387 = vunpack.c.h.b16 %v533
    %v2388 = vunpack.c.l.b16 %v534
    %v2389 = vunpack.c.h.b16 %v534
    %v2390 = vunpack.c.l.b16 %v535
    %v2391 = vunpack.c.h.b16 %v535
    %v2392 = vunpack.c.l.b16 %v536
    %v2393 = vunpack.c.h.b16 %v536
    %v2394 = vunpack.c.l.b16 %v537
    %v2395 = vunpack.c.h.b16 %v537
    %v2396 = vunpack.c.l.b16 %v538
    %v2397 = vunpack.c.h.b16 %v538
    %v2398 = vunpack.c.l.b16 %v539
    %v2399 = vunpack.c.h.b16 %v539
    %v2400 = vunpack.c.l.b16 %v540
    %v2401 = vunpack.c.h.b16 %v540
    %v2402 = vunpack.c.l.b16 %v541
    %v2403 = vunpack.c.h.b16 %v541
    %v2404 = vunpack.c.l.b16 %v542
    %v2405 = vunpack.c.h.b16 %v542
    %v2406 = vunpack.c.l.b16 %v543
    %v2407 = vunpack.c.h.b16 %v543
    %v2408 = vunpack.c.l.b16 %v544
    %v2409 = vunpack.c.h.b16 %v544
    %v2410 = vunpack.c.l.b16 %v545
    %v2411 = vunpack.c.h.b16 %v545
    %v2412 = vunpack.c.l.b16 %v546
    %v2413 = vunpack.c.h.b16 %v546
    %v2414 = vunpack.c.l.b16 %v547
    %v2415 = vunpack.c.h.b16 %v547
    %v2416 = vunpack.c.l.b16 %v548
    %v2417 = vunpack.c.h.b16 %v548
    %v2418 = vunpack.c.l.b16 %v549
    %v2419 = vunpack.c.h.b16 %v549
    %v2420 = vunpack.c.l.b16 %v550
    %v2421 = vunpack.c.h.b16 %v550
    %v2422 = vunpack.c.l.b16 %v551
    %v2423 = vunpack.c.h.b16 %v551
    %v2424 = vunpack.c.l.b16 %v552
    %v2425 = vunpack.c.h.b16 %v552
    %v2426 = vunpack.c.l.b16 %v553
    %v2427 = vunpack.c.h.b16 %v553
    %v2428 = vunpack.c.l.b16 %v554
    %v2429 = vunpack.c.h.b16 %v554
    %v2430 = vunpack.c.l.b16 %v555
    %v2431 = vunpack.c.h.b16 %v555
    %v2432 = vunpack.c.l.b16 %v556
    %v2433 = vunpack.c.h.b16 %v556
    %v2434 = vunpack.c.l.b16 %v557
    %v2435 = vunpack.c.h.b16 %v557
    %v2436 = vunpack.c.l.b16 %v558
    %v2437 = vunpack.c.h.b16 %v558
    %v2438 = vunpack.c.l.b16 %v559
    %v2439 = vunpack.c.h.b16 %v559
    %v2440 = vunpack.c.l.b16 %v560
    %v2441 = vunpack.c.h.b16 %v560
    %v2442 = vunpack.c.l.b16 %v561
    %v2443 = vunpack.c.h.b16 %v561
    %v2444 = vunpack.c.l.b16 %v562
    %v2445 = vunpack.c.h.b16 %v562
    %v2446 = vunpack.c.l.b16 %v563
    %v2447 = vunpack.c.h.b16 %v563
    %v2448 = vunpack.c.l.b16 %v564
    %v2449 = vunpack.c.h.b16 %v564
    %v2450 = vunpack.c.l.b16 %v565
    %v2451 = vunpack.c.h.b16 %v565
    %v2452 = vunpack.c.l.b16 %v566
    %v2453 = vunpack.c.h.b16 %v566
    %v2454 = vunpack.c.l.b16 %v567
    %v2455 = vunpack.c.h.b16 %v567
    %v2456 = vunpack.c.l.b16 %v568
    %v2457 = vunpack.c.h.b16 %v568
    %v2458 = vunpack.c.l.b16 %v569
    %v2459 = vunpack.c.h.b16 %v569
    %v2460 = vunpack.c.l.b16 %v570
    %v2461 = vunpack.c.h.b16 %v570
    %v2462 = vunpack.c.l.b16 %v571
    %v2463 = vunpack.c.h.b16 %v571
    %v2464 = vunpack.c.l.b16 %v572
    %v2465 = vunpack.c.h.b16 %v572
    %v2466 = vunpack.c.l.b16 %v573
    %v2467 = vunpack.c.h.b16 %v573
    %v2468 = vunpack.c.l.b16 %v574
    %v2469 = vunpack.c.h.b16 %v574
    %v2470 = vunpack.c.l.b16 %v575
    %v2471 = vunpack.c.h.b16 %v575
    %v2472 = vunpack.c.l.b16 %v576
    %v2473 = vunpack.c.h.b16 %v576
    %v2474 = vunpack.c.l.b16 %v577
    %v2475 = vunpack.c.h.b16 %v577
    %v2476 = vunpack.c.l.b16 %v578
    %v2477 = vunpack.c.h.b16 %v578
    %v2478 = vunpack.c.l.b16 %v579
    %v2479 = vunpack.c.h.b16 %v579
    %v2480 = vunpack.c.l.b16 %v580
    %v2481 = vunpack.c.h.b16 %v580
    %v2482 = vunpack.c.l.b16 %v581
    %v2483 = vunpack.c.h.b16 %v581
    %v2484 = vunpack.c.l.b16 %v582
    %v2485 = vunpack.c.h.b16 %v582
    %v2486 = vunpack.c.l.b16 %v583
    %v2487 = vunpack.c.h.b16 %v583
    %v2488 = vunpack.c.l.b16 %v584
    %v2489 = vunpack.c.h.b16 %v584
    %v2490 = vunpack.c.l.b16 %v585
    %v2491 = vunpack.c.h.b16 %v585
    %v2492 = vunpack.c.l.b16 %v586
    %v2493 = vunpack.c.h.b16 %v586
    %v2494 = vunpack.c.l.b16 %v587
    %v2495 = vunpack.c.h.b16 %v587
    %v2496 = vunpack.c.l.b16 %v588
    %v2497 = vunpack.c.h.b16 %v588
    %v2498 = vunpack.c.l.b16 %v589
    %v2499 = vunpack.c.h.b16 %v589
    %v2500 = vunpack.c.l.b16 %v590
    %v2501 = vunpack.c.h.b16 %v590
    %v2502 = vunpack.c.l.b16 %v591
    %v2503 = vunpack.c.h.b16 %v591
    %v2504 = vunpack.c.l.b16 %v592
    %v2505 = vunpack.c.h.b16 %v592
    %v2506 = vunpack.c.l.b16 %v593
    %v2507 = vunpack.c.h.b16 %v593
    %v2508 = vunpack.c.l.b16 %v594
    %v2509 = vunpack.c.h.b16 %v594
    %v2510 = vunpack.c.l.b16 %v595
    %v2511 = vunpack.c.h.b16 %v595
    %v2512 = vunpack.c.l.b16 %v596
    %v2513 = vunpack.c.h.b16 %v596
    %v2514 = vunpack.c.l.b16 %v597
    %v2515 = vunpack.c.h.b16 %v597
    %v2516 = vunpack.c.l.b16 %v598
    %v2517 = vunpack.c.h.b16 %v598
    %v2518 = vunpack.c.l.b16 %v599
    %v2519 = vunpack.c.h.b16 %v599
    %v2520 = vunpack.c.l.b16 %v600
    %v2521 = vunpack.c.h.b16 %v600
    %v2522 = vunpack.c.l.b16 %v601
    %v2523 = vunpack.c.h.b16 %v601
    %v2524 = vunpack.c.l.b16 %v602
    %v2525 = vunpack.c.h.b16 %v602
    %v2526 = vunpack.c.l.b16 %v603
    %v2527 = vunpack.c.h.b16 %v603
    %v2528 = vunpack.c.l.b16 %v604
    %v2529 = vunpack.c.h.b16 %v604
    %v2530 = vunpack.c.l.b16 %v605
    %v2531 = vunpack.c.h.b16 %v605
    %v2532 = vunpack.c.l.b16 %v606
    %v2533 = vunpack.c.h.b16 %v606
    %v2534 = vunpack.c.l.b16 %v607
    %v2535 = vunpack.c.h.b16 %v607
    %v2536 = vunpack.c.l.b16 %v608
    %v2537 = vunpack.c.h.b16 %v608
    %v2538 = vunpack.c.l.b16 %v609
    %v2539 = vunpack.c.h.b16 %v609
    %v2540 = vunpack.c.l.b16 %v610
    %v2541 = vunpack.c.h.b16 %v610
    %v2542 = vunpack.c.l.b16 %v611
    %v2543 = vunpack.c.h.b16 %v611
    %v2544 = vunpack.c.l.b16 %v612
    %v2545 = vunpack.c.h.b16 %v612
    %v2546 = vunpack.c.l.b16 %v613
    %v2547 = vunpack.c.h.b16 %v613
    %v2548 = vunpack.c.l.b16 %v614
    %v2549 = vunpack.c.h.b16 %v614
    %v2550 = vunpack.c.l.b16 %v615
    %v2551 = vunpack.c.h.b16 %v615
    %v2552 = vunpack.c.l.b16 %v616
    %v2553 = vunpack.c.h.b16 %v616
    %v2554 = vunpack.c.l.b16 %v617
    %v2555 = vunpack.c.h.b16 %v617
    %v2556 = vunpack.c.l.b16 %v618
    %v2557 = vunpack.c.h.b16 %v618
    %v2558 = vunpack.c.l.b16 %v619
    %v2559 = vunpack.c.h.b16 %v619
    %v2560 = vunpack.c.l.b16 %v620
    %v2561 = vunpack.c.h.b16 %v620
    %v2562 = vunpack.c.l.b16 %v621
    %v2563 = vunpack.c.h.b16 %v621
    %v2564 = vunpack.c.l.b16 %v622
    %v2565 = vunpack.c.h.b16 %v622
    %v2566 = vunpack.c.l.b16 %v623
    %v2567 = vunpack.c.h.b16 %v623
    %v2568 = vunpack.c.l.b16 %v624
    %v2569 = vunpack.c.h.b16 %v624
    %v2570 = vunpack.c.l.b16 %v625
    %v2571 = vunpack.c.h.b16 %v625
    %v2572 = vunpack.c.l.b16 %v626
    %v2573 = vunpack.c.h.b16 %v626
    %v2574 = vunpack.c.l.b16 %v627
    %v2575 = vunpack.c.h.b16 %v627
    %v2576 = vunpack.c.l.b16 %v628
    %v2577 = vunpack.c.h.b16 %v628
    %v2578 = vunpack.c.l.b16 %v629
    %v2579 = vunpack.c.h.b16 %v629
    %v2580 = vunpack.c.l.b16 %v630
    %v2581 = vunpack.c.h.b16 %v630
    %v2582 = vunpack.c.l.b16 %v631
    %v2583 = vunpack.c.h.b16 %v631
    %v2584 = vunpack.c.l.b16 %v632
    %v2585 = vunpack.c.h.b16 %v632
    %v2586 = vunpack.c.l.b16 %v633
    %v2587 = vunpack.c.h.b16 %v633
    %v2588 = vunpack.c.l.b16 %v634
    %v2589 = vunpack.c.h.b16 %v634
    %v2590 = vunpack.c.l.b16 %v635
    %v2591 = vunpack.c.h.b16 %v635
    %v2592 = vunpack.c.l.b16 %v636
    %v2593 = vunpack.c.h.b16 %v636
    %v2594 = vunpack.c.l.b16 %v637
    %v2595 = vunpack.c.h.b16 %v637
    %v2596 = vunpack.c.l.b16 %v638
    %v2597 = vunpack.c.h.b16 %v638
    %v2598 = vunpack.c.l.b16 %v639
    %v2599 = vunpack.c.h.b16 %v639
    %v2600 = vunpack.c.l.b16 %v640
    %v2601 = vunpack.c.h.b16 %v640
    %v2602 = vunpack.c.l.b16 %v641
    %v2603 = vunpack.c.h.b16 %v641
    %v2604 = vunpack.c.l.b16 %v642
    %v2605 = vunpack.c.h.b16 %v642
    %v2606 = vunpack.c.l.b16 %v643
    %v2607 = vunpack.c.h.b16 %v643
    %v2608 = vunpack.c.l.b16 %v644
    %v2609 = vunpack.c.h.b16 %v644
    %v2610 = vunpack.c.l.b16 %v645
    %v2611 = vunpack.c.h.b16 %v645
    %v2612 = vunpack.c.l.b16 %v646
    %v2613 = vunpack.c.h.b16 %v646
    %v2614 = vunpack.c.l.b16 %v647
    %v2615 = vunpack.c.h.b16 %v647
    %v2616 = vunpack.c.l.b16 %v648
    %v2617 = vunpack.c.h.b16 %v648
    %v2618 = vunpack.c.l.b16 %v649
    %v2619 = vunpack.c.h.b16 %v649
    %v2620 = vunpack.c.l.b16 %v650
    %v2621 = vunpack.c.h.b16 %v650
    %v2622 = vunpack.c.l.b16 %v651
    %v2623 = vunpack.c.h.b16 %v651
    %v2624 = vunpack.c.l.b16 %v652
    %v2625 = vunpack.c.h.b16 %v652
    %v2626 = vunpack.c.l.b16 %v653
    %v2627 = vunpack.c.h.b16 %v653
    %v2628 = vunpack.c.l.b16 %v654
    %v2629 = vunpack.c.h.b16 %v654
    %v2630 = vunpack.c.l.b16 %v655
    %v2631 = vunpack.c.h.b16 %v655
    %v2632 = vunpack.c.l.b16 %v656
    %v2633 = vunpack.c.h.b16 %v656
    %v2634 = vunpack.c.l.b16 %v657
    %v2635 = vunpack.c.h.b16 %v657
    %v2636 = vunpack.c.l.b16 %v658
    %v2637 = vunpack.c.h.b16 %v658
    %v2638 = vunpack.c.l.b16 %v659
    %v2639 = vunpack.c.h.b16 %v659
    %v2640 = vunpack.c.l.b16 %v660
    %v2641 = vunpack.c.h.b16 %v660
    %v2642 = vunpack.c.l.b16 %v661
    %v2643 = vunpack.c.h.b16 %v661
    %v2644 = vunpack.c.l.b16 %v662
    %v2645 = vunpack.c.h.b16 %v662
    %v2646 = vunpack.c.l.b16 %v663
    %v2647 = vunpack.c.h.b16 %v663
    %v2648 = vunpack.c.l.b16 %v664
    %v2649 = vunpack.c.h.b16 %v664
    %v2650 = vunpack.c.l.b16 %v665
    %v2651 = vunpack.c.h.b16 %v665
    %v2652 = vunpack.c.l.b16 %v666
    %v2653 = vunpack.c.h.b16 %v666
    %v2654 = vunpack.c.l.b16 %v667
    %v2655 = vunpack.c.h.b16 %v667
    %v2656 = vunpack.c.l.b16 %v668
    %v2657 = vunpack.c.h.b16 %v668
    %v2658 = vunpack.c.l.b16 %v669
    %v2659 = vunpack.c.h.b16 %v669
    %v2660 = vunpack.c.l.b16 %v670
    %v2661 = vunpack.c.h.b16 %v670
    %v2662 = vunpack.c.l.b16 %v671
    %v2663 = vunpack.c.h.b16 %v671
    %v2664 = vunpack.c.l.b16 %v672
    %v2665 = vunpack.c.h.b16 %v672
    %v2666 = vunpack.c.l.b16 %v673
    %v2667 = vunpack.c.h.b16 %v673
    %v2668 = vunpack.c.l.b16 %v674
    %v2669 = vunpack.c.h.b16 %v674
    %v2670 = vunpack.c.l.b16 %v675
    %v2671 = vunpack.c.h.b16 %v675
    %v2672 = vunpack.c.l.b16 %v676
    %v2673 = vunpack.c.h.b16 %v676
    %v2674 = vunpack.c.l.b16 %v677
    %v2675 = vunpack.c.h.b16 %v677
    %v2676 = vunpack.c.l.b16 %v678
    %v2677 = vunpack.c.h.b16 %v678
    %v2678 = vunpack.c.l.b16 %v679
    %v2679 = vunpack.c.h.b16 %v679
    %v2680 = vunpack.c.l.b16 %v680
    %v2681 = vunpack.c.h.b16 %v680
    %v2682 = vunpack.c.l.b16 %v681
    %v2683 = vunpack.c.h.b16 %v681
    %v2684 = vunpack.c.l.b16 %v682
    %v2685 = vunpack.c.h.b16 %v682
    %v2686 = vunpack.c.l.b16 %v683
    %v2687 = vunpack.c.h.b16 %v683
    %v2688 = vunpack.c.l.b16 %v684
    %v2689 = vunpack.c.h.b16 %v684
    %v2690 = vunpack.c.l.b16 %v685
    %v2691 = vunpack.c.h.b16 %v685
    %v2692 = vunpack.c.l.b16 %v686
    %v2693 = vunpack.c.h.b16 %v686
    %v2694 = vunpack.c.l.b16 %v687
    %v2695 = vunpack.c.h.b16 %v687
    %v2696 = vunpack.c.l.b16 %v688
    %v2697 = vunpack.c.h.b16 %v688
    %v2698 = vunpack.c.l.b16 %v689
    %v2699 = vunpack.c.h.b16 %v689
    %v2700 = vunpack.c.l.b16 %v690
    %v2701 = vunpack.c.h.b16 %v690
    %v2702 = vunpack.c.l.b16 %v691
    %v2703 = vunpack.c.h.b16 %v691
    %v2704 = vunpack.c.l.b16 %v692
    %v2705 = vunpack.c.h.b16 %v692
    %v2706 = vunpack.c.l.b16 %v693
    %v2707 = vunpack.c.h.b16 %v693
    %v2708 = vunpack.c.l.b16 %v694
    %v2709 = vunpack.c.h.b16 %v694
    %v2710 = vunpack.c.l.b16 %v695
    %v2711 = vunpack.c.h.b16 %v695
    %v2712 = vunpack.c.l.b16 %v696
    %v2713 = vunpack.c.h.b16 %v696
    %v2714 = vunpack.c.l.b16 %v697
    %v2715 = vunpack.c.h.b16 %v697
    %v2716 = vunpack.c.l.b16 %v698
    %v2717 = vunpack.c.h.b16 %v698
    %v2718 = vunpack.c.l.b16 %v699
    %v2719 = vunpack.c.h.b16 %v699
    %v2720 = vunpack.c.l.b16 %v700
    %v2721 = vunpack.c.h.b16 %v700
    %v2722 = vunpack.c.l.b16 %v701
    %v2723 = vunpack.c.h.b16 %v701
    %v2724 = vunpack.c.l.b16 %v702
    %v2725 = vunpack.c.h.b16 %v702
    %v2726 = vunpack.c.l.b16 %v703
    %v2727 = vunpack.c.h.b16 %v703
    %v2728 = vunpack.c.l.b16 %v704
    %v2729 = vunpack.c.h.b16 %v704
    %v2730 = vunpack.c.l.b16 %v705
    %v2731 = vunpack.c.h.b16 %v705
    %v2732 = vunpack.c.l.b16 %v706
    %v2733 = vunpack.c.h.b16 %v706
    %v2734 = vunpack.c.l.b16 %v707
    %v2735 = vunpack.c.h.b16 %v707
    %v2736 = vunpack.c.l.b16 %v708
    %v2737 = vunpack.c.h.b16 %v708
    %v2738 = vunpack.c.l.b16 %v709
    %v2739 = vunpack.c.h.b16 %v709
    %v2740 = vunpack.c.l.b16 %v710
    %v2741 = vunpack.c.h.b16 %v710
    %v2742 = vunpack.c.l.b16 %v711
    %v2743 = vunpack.c.h.b16 %v711
    %v2744 = vunpack.c.l.b16 %v712
    %v2745 = vunpack.c.h.b16 %v712
    %v2746 = vunpack.c.l.b16 %v713
    %v2747 = vunpack.c.h.b16 %v713
    %v2748 = vunpack.c.l.b16 %v714
    %v2749 = vunpack.c.h.b16 %v714
    %v2750 = vunpack.c.l.b16 %v715
    %v2751 = vunpack.c.h.b16 %v715
    %v2752 = vunpack.c.l.b16 %v716
    %v2753 = vunpack.c.h.b16 %v716
    %v2754 = vunpack.c.l.b16 %v717
    %v2755 = vunpack.c.h.b16 %v717
    %v2756 = vunpack.c.l.b16 %v718
    %v2757 = vunpack.c.h.b16 %v718
    %v2758 = vunpack.c.l.b16 %v719
    %v2759 = vunpack.c.h.b16 %v719
    %v2760 = vunpack.c.l.b16 %v720
    %v2761 = vunpack.c.h.b16 %v720
    %v2762 = vunpack.c.l.b16 %v721
    %v2763 = vunpack.c.h.b16 %v721
    %v2764 = vunpack.c.l.b16 %v722
    %v2765 = vunpack.c.h.b16 %v722
    %v2766 = vunpack.c.l.b16 %v723
    %v2767 = vunpack.c.h.b16 %v723
    %v2768 = vunpack.c.l.b16 %v724
    %v2769 = vunpack.c.h.b16 %v724
    %v2770 = vunpack.c.l.b16 %v725
    %v2771 = vunpack.c.h.b16 %v725
    %v2772 = vunpack.c.l.b16 %v726
    %v2773 = vunpack.c.h.b16 %v726
    %v2774 = vunpack.c.l.b16 %v727
    %v2775 = vunpack.c.h.b16 %v727
    %v2776 = vunpack.c.l.b16 %v728
    %v2777 = vunpack.c.h.b16 %v728
    %v2778 = vunpack.c.l.b16 %v729
    %v2779 = vunpack.c.h.b16 %v729
    %v2780 = vunpack.c.l.b16 %v730
    %v2781 = vunpack.c.h.b16 %v730
    %v2782 = vunpack.c.l.b16 %v731
    %v2783 = vunpack.c.h.b16 %v731
    %v2784 = vunpack.c.l.b16 %v732
    %v2785 = vunpack.c.h.b16 %v732
    %v2786 = vunpack.c.l.b16 %v733
    %v2787 = vunpack.c.h.b16 %v733
    %v2788 = vunpack.c.l.b16 %v734
    %v2789 = vunpack.c.h.b16 %v734
    %v2790 = vunpack.c.l.b16 %v735
    %v2791 = vunpack.c.h.b16 %v735
    %v2792 = vunpack.c.l.b16 %v736
    %v2793 = vunpack.c.h.b16 %v736
    %v2794 = vunpack.c.l.b16 %v737
    %v2795 = vunpack.c.h.b16 %v737
    %v2796 = vunpack.c.l.b16 %v738
    %v2797 = vunpack.c.h.b16 %v738
    %v2798 = vunpack.c.l.b16 %v739
    %v2799 = vunpack.c.h.b16 %v739
    %v2800 = vunpack.c.l.b16 %v740
    %v2801 = vunpack.c.h.b16 %v740
    %v2802 = vunpack.c.l.b16 %v741
    %v2803 = vunpack.c.h.b16 %v741
    %v2804 = vunpack.c.l.b16 %v742
    %v2805 = vunpack.c.h.b16 %v742
    %v2806 = vunpack.c.l.b16 %v743
    %v2807 = vunpack.c.h.b16 %v743
    %v2808 = vunpack.c.l.b16 %v744
    %v2809 = vunpack.c.h.b16 %v744
    %v2810 = vunpack.c.l.b16 %v745
    %v2811 = vunpack.c.h.b16 %v745
    %v2812 = vunpack.c.l.b16 %v746
    %v2813 = vunpack.c.h.b16 %v746
    %v2814 = vunpack.c.l.b16 %v747
    %v2815 = vunpack.c.h.b16 %v747
    %v2816 = vunpack.c.l.b16 %v748
    %v2817 = vunpack.c.h.b16 %v748
    %v2818 = vunpack.c.l.b16 %v749
    %v2819 = vunpack.c.h.b16 %v749
    %v2820 = vunpack.c.l.b16 %v750
    %v2821 = vunpack.c.h.b16 %v750
    %v2822 = vunpack.c.l.b16 %v751
    %v2823 = vunpack.c.h.b16 %v751
    %v2824 = vunpack.c.l.b16 %v752
    %v2825 = vunpack.c.h.b16 %v752
    %v2826 = vunpack.c.l.b16 %v753
    %v2827 = vunpack.c.h.b16 %v753
    %v2828 = vunpack.c.l.b16 %v754
    %v2829 = vunpack.c.h.b16 %v754
    %v2830 = vunpack.c.l.b16 %v755
    %v2831 = vunpack.c.h.b16 %v755
    %v2832 = vunpack.c.l.b16 %v756
    %v2833 = vunpack.c.h.b16 %v756
    %v2834 = vunpack.c.l.b16 %v757
    %v2835 = vunpack.c.h.b16 %v757
    %v2836 = vunpack.c.l.b16 %v758
    %v2837 = vunpack.c.h.b16 %v758
    %v2838 = vunpack.c.l.b16 %v759
    %v2839 = vunpack.c.h.b16 %v759
    %v2840 = vunpack.c.l.b16 %v760
    %v2841 = vunpack.c.h.b16 %v760
    %v2842 = vunpack.c.l.b16 %v761
    %v2843 = vunpack.c.h.b16 %v761
    %v2844 = vunpack.c.l.b16 %v762
    %v2845 = vunpack.c.h.b16 %v762
    %v2846 = vunpack.c.l.b16 %v763
    %v2847 = vunpack.c.h.b16 %v763
    %v2848 = vunpack.c.l.b16 %v764
    %v2849 = vunpack.c.h.b16 %v764
    %v2850 = vunpack.c.l.b16 %v765
    %v2851 = vunpack.c.h.b16 %v765
    %v2852 = vunpack.c.l.b16 %v766
    %v2853 = vunpack.c.h.b16 %v766
    %v2854 = vunpack.c.l.b16 %v767
    %v2855 = vunpack.c.h.b16 %v767
    %v2856 = vunpack.c.l.b16 %v768
    %v2857 = vunpack.c.h.b16 %v768
    %v2858 = vunpack.c.l.b16 %v769
    %v2859 = vunpack.c.h.b16 %v769
    %v2860 = vunpack.c.l.b16 %v770
    %v2861 = vunpack.c.h.b16 %v770
    %v2862 = vunpack.c.l.b16 %v771
    %v2863 = vunpack.c.h.b16 %v771
    %v2864 = vunpack.c.l.b16 %v772
    %v2865 = vunpack.c.h.b16 %v772
    %v2866 = vunpack.c.l.b16 %v773
    %v2867 = vunpack.c.h.b16 %v773
    %v2868 = vunpack.c.l.b16 %v774
    %v2869 = vunpack.c.h.b16 %v774
    %v2870 = vunpack.c.l.b16 %v775
    %v2871 = vunpack.c.h.b16 %v775
    %v2872 = vunpack.c.l.b16 %v776
    %v2873 = vunpack.c.h.b16 %v776
    %v2874 = vunpack.c.l.b16 %v777
    %v2875 = vunpack.c.h.b16 %v777
    %v2876 = vunpack.c.l.b16 %v778
    %v2877 = vunpack.c.h.b16 %v778
    %v2878 = vunpack.c.l.b16 %v779
    %v2879 = vunpack.c.h.b16 %v779
    %v2880 = vunpack.c.l.b16 %v780
    %v2881 = vunpack.c.h.b16 %v780
    %v2882 = vunpack.c.l.b16 %v781
    %v2883 = vunpack.c.h.b16 %v781
    %v2884 = vunpack.c.l.b16 %v782
    %v2885 = vunpack.c.h.b16 %v782
    %v2886 = vunpack.c.l.b16 %v783
    %v2887 = vunpack.c.h.b16 %v783
    %v2888 = vunpack.c.l.b16 %v784
    %v2889 = vunpack.c.h.b16 %v784
    %v2890 = vunpack.c.l.b16 %v785
    %v2891 = vunpack.c.h.b16 %v785
    %v2892 = vunpack.c.l.b16 %v786
    %v2893 = vunpack.c.h.b16 %v786
    %v2894 = vunpack.c.l.b16 %v787
    %v2895 = vunpack.c.h.b16 %v787
    %v2896 = vunpack.c.l.b16 %v788
    %v2897 = vunpack.c.h.b16 %v788
    %v2898 = vunpack.c.l.b16 %v789
    %v2899 = vunpack.c.h.b16 %v789
    %v2900 = vunpack.c.l.b16 %v790
    %v2901 = vunpack.c.h.b16 %v790
    %v2902 = vunpack.c.l.b16 %v791
    %v2903 = vunpack.c.h.b16 %v791
    %v2904 = vunpack.c.l.b16 %v792
    %v2905 = vunpack.c.h.b16 %v792
    %v2906 = vunpack.c.l.b16 %v793
    %v2907 = vunpack.c.h.b16 %v793
    %v2908 = vunpack.c.l.b16 %v794
    %v2909 = vunpack.c.h.b16 %v794
    %v2910 = vunpack.c.l.b16 %v795
    %v2911 = vunpack.c.h.b16 %v795
    %v2912 = vunpack.c.l.b16 %v796
    %v2913 = vunpack.c.h.b16 %v796
    %v2914 = vunpack.c.l.b16 %v797
    %v2915 = vunpack.c.h.b16 %v797
    %v2916 = vunpack.c.l.b16 %v798
    %v2917 = vunpack.c.h.b16 %v798
    %v2918 = vunpack.c.l.b16 %v799
    %v2919 = vunpack.c.h.b16 %v799
    %v2920 = vunpack.c.l.b16 %v800
    %v2921 = vunpack.c.h.b16 %v800
    %v2922 = vunpack.c.l.b16 %v801
    %v2923 = vunpack.c.h.b16 %v801
    %v2924 = vunpack.c.l.b16 %v802
    %v2925 = vunpack.c.h.b16 %v802
    %v2926 = vunpack.c.l.b16 %v803
    %v2927 = vunpack.c.h.b16 %v803
    %v2928 = vunpack.c.l.b16 %v804
    %v2929 = vunpack.c.h.b16 %v804
    %v2930 = vunpack.c.l.b16 %v805
    %v2931 = vunpack.c.h.b16 %v805
    %v2932 = vunpack.c.l.b16 %v806
    %v2933 = vunpack.c.h.b16 %v806
    %v2934 = vunpack.c.l.b16 %v807
    %v2935 = vunpack.c.h.b16 %v807
    %v2936 = vunpack.c.l.b16 %v808
    %v2937 = vunpack.c.h.b16 %v808
    %v2938 = vunpack.c.l.b16 %v809
    %v2939 = vunpack.c.h.b16 %v809
    %v2940 = vunpack.c.l.b16 %v810
    %v2941 = vunpack.c.h.b16 %v810
    %v2942 = vunpack.c.l.b16 %v811
    %v2943 = vunpack.c.h.b16 %v811
    %v2944 = vunpack.c.l.b16 %v812
    %v2945 = vunpack.c.h.b16 %v812
    %v2946 = vunpack.c.l.b16 %v813
    %v2947 = vunpack.c.h.b16 %v813
    %v2948 = vunpack.c.l.b16 %v814
    %v2949 = vunpack.c.h.b16 %v814
    %v2950 = vunpack.c.l.b16 %v815
    %v2951 = vunpack.c.h.b16 %v815
    %v2952 = vunpack.c.l.b16 %v816
    %v2953 = vunpack.c.h.b16 %v816
    %v2954 = vunpack.c.l.b16 %v817
    %v2955 = vunpack.c.h.b16 %v817
    %v2956 = vunpack.c.l.b16 %v818
    %v2957 = vunpack.c.h.b16 %v818
    %v2958 = vunpack.c.l.b16 %v819
    %v2959 = vunpack.c.h.b16 %v819
    %v2960 = vunpack.c.l.b16 %v820
    %v2961 = vunpack.c.h.b16 %v820
    %v2962 = vunpack.c.l.b16 %v821
    %v2963 = vunpack.c.h.b16 %v821
    %v2964 = vunpack.c.l.b16 %v822
    %v2965 = vunpack.c.h.b16 %v822
    %v2966 = vunpack.c.l.b16 %v823
    %v2967 = vunpack.c.h.b16 %v823
    %v2968 = vunpack.c.l.b16 %v824
    %v2969 = vunpack.c.h.b16 %v824
    %v2970 = vunpack.c.l.b16 %v825
    %v2971 = vunpack.c.h.b16 %v825
    %v2972 = vunpack.c.l.b16 %v826
    %v2973 = vunpack.c.h.b16 %v826
    %v2974 = vunpack.c.l.b16 %v827
    %v2975 = vunpack.c.h.b16 %v827
    %v2976 = vunpack.c.l.b16 %v828
    %v2977 = vunpack.c.h.b16 %v828
    %v2978 = vunpack.c.l.b16 %v829
    %v2979 = vunpack.c.h.b16 %v829
    %v2980 = vunpack.c.l.b16 %v830
    %v2981 = vunpack.c.h.b16 %v830
    %v2982 = vunpack.c.l.b16 %v831
    %v2983 = vunpack.c.h.b16 %v831
    %v2984 = vunpack.c.l.b16 %v832
    %v2985 = vunpack.c.h.b16 %v832
    %v2986 = vunpack.c.l.b16 %v833
    %v2987 = vunpack.c.h.b16 %v833
    %v2988 = vunpack.c.l.b16 %v834
    %v2989 = vunpack.c.h.b16 %v834
    %v2990 = vunpack.c.l.b16 %v835
    %v2991 = vunpack.c.h.b16 %v835
    %v2992 = vunpack.c.l.b16 %v836
    %v2993 = vunpack.c.h.b16 %v836
    %v2994 = vunpack.c.l.b16 %v837
    %v2995 = vunpack.c.h.b16 %v837
    %v2996 = vunpack.c.l.b16 %v838
    %v2997 = vunpack.c.h.b16 %v838
    %v2998 = vunpack.c.l.b16 %v839
    %v2999 = vunpack.c.h.b16 %v839
    %v3000 = vunpack.c.l.b16 %v840
    %v3001 = vunpack.c.h.b16 %v840
    %v3002 = vunpack.c.l.b16 %v841
    %v3003 = vunpack.c.h.b16 %v841
    %v3004 = vunpack.c.l.b16 %v842
    %v3005 = vunpack.c.h.b16 %v842
    %v3006 = vunpack.c.l.b16 %v843
    %v3007 = vunpack.c.h.b16 %v843
    %v3008 = vunpack.c.l.b16 %v844
    %v3009 = vunpack.c.h.b16 %v844
    %v3010 = vunpack.c.l.b16 %v845
    %v3011 = vunpack.c.h.b16 %v845
    %v3012 = vunpack.c.l.b16 %v846
    %v3013 = vunpack.c.h.b16 %v846
    %v3014 = vunpack.c.l.b16 %v847
    %v3015 = vunpack.c.h.b16 %v847
    %v3016 = vunpack.c.l.b16 %v848
    %v3017 = vunpack.c.h.b16 %v848
    %v3018 = vunpack.c.l.b16 %v849
    %v3019 = vunpack.c.h.b16 %v849
    %v3020 = vunpack.c.l.b16 %v850
    %v3021 = vunpack.c.h.b16 %v850
    %v3022 = vunpack.c.l.b16 %v851
    %v3023 = vunpack.c.h.b16 %v851
    %v3024 = vunpack.c.l.b16 %v852
    %v3025 = vunpack.c.h.b16 %v852
    %v3026 = vunpack.c.l.b16 %v853
    %v3027 = vunpack.c.h.b16 %v853
    %v3028 = vunpack.c.l.b16 %v854
    %v3029 = vunpack.c.h.b16 %v854
    %v3030 = vunpack.c.l.b16 %v855
    %v3031 = vunpack.c.h.b16 %v855
    %v3032 = vunpack.c.l.b16 %v856
    %v3033 = vunpack.c.h.b16 %v856
    %v3034 = vunpack.c.l.b16 %v857
    %v3035 = vunpack.c.h.b16 %v857
    %v3036 = vunpack.c.l.b16 %v858
    %v3037 = vunpack.c.h.b16 %v858
    %v3038 = vunpack.c.l.b16 %v859
    %v3039 = vunpack.c.h.b16 %v859
    %v3040 = vunpack.c.l.b16 %v860
    %v3041 = vunpack.c.h.b16 %v860
    %v3042 = vunpack.c.l.b16 %v861
    %v3043 = vunpack.c.h.b16 %v861
    %v3044 = vunpack.c.l.b16 %v862
    %v3045 = vunpack.c.h.b16 %v862
    %v3046 = vunpack.c.l.b16 %v863
    %v3047 = vunpack.c.h.b16 %v863
    %v3048 = vunpack.c.l.b16 %v864
    %v3049 = vunpack.c.h.b16 %v864
    %v3050 = vunpack.c.l.b16 %v865
    %v3051 = vunpack.c.h.b16 %v865
    %v3052 = vunpack.c.l.b16 %v866
    %v3053 = vunpack.c.h.b16 %v866
    %v3054 = vunpack.c.l.b16 %v867
    %v3055 = vunpack.c.h.b16 %v867
    %v3056 = vunpack.c.l.b16 %v868
    %v3057 = vunpack.c.h.b16 %v868
    %v3058 = vunpack.c.l.b16 %v869
    %v3059 = vunpack.c.h.b16 %v869
    %v3060 = vunpack.c.l.b16 %v870
    %v3061 = vunpack.c.h.b16 %v870
    %v3062 = vunpack.c.l.b16 %v871
    %v3063 = vunpack.c.h.b16 %v871
    %v3064 = vunpack.c.l.b16 %v872
    %v3065 = vunpack.c.h.b16 %v872
    %v3066 = vunpack.c.l.b16 %v873
    %v3067 = vunpack.c.h.b16 %v873
    %v3068 = vunpack.c.l.b16 %v874
    %v3069 = vunpack.c.h.b16 %v874
    %v3070 = vunpack.c.l.b16 %v875
    %v3071 = vunpack.c.h.b16 %v875
    %v3072 = vunpack.c.l.b16 %v876
    %v3073 = vunpack.c.h.b16 %v876
    %v3074 = vunpack.c.l.b16 %v877
    %v3075 = vunpack.c.h.b16 %v877
    %v3076 = vunpack.c.l.b16 %v878
    %v3077 = vunpack.c.h.b16 %v878
    %v3078 = vunpack.c.l.b16 %v879
    %v3079 = vunpack.c.h.b16 %v879
    %v3080 = vunpack.c.l.b16 %v880
    %v3081 = vunpack.c.h.b16 %v880
    %v3082 = vunpack.c.l.b16 %v881
    %v3083 = vunpack.c.h.b16 %v881
    %v3084 = vunpack.c.l.b16 %v882
    %v3085 = vunpack.c.h.b16 %v882
    %v3086 = vunpack.c.l.b16 %v883
    %v3087 = vunpack.c.h.b16 %v883
    %v3088 = vunpack.c.l.b16 %v884
    %v3089 = vunpack.c.h.b16 %v884
    %v3090 = vunpack.c.l.b16 %v885
    %v3091 = vunpack.c.h.b16 %v885
    %v3092 = vunpack.c.l.b16 %v886
    %v3093 = vunpack.c.h.b16 %v886
    %v3094 = vunpack.c.l.b16 %v887
    %v3095 = vunpack.c.h.b16 %v887
    %v3096 = vunpack.c.l.b16 %v888
    %v3097 = vunpack.c.h.b16 %v888
    %v3098 = vunpack.c.l.b16 %v889
    %v3099 = vunpack.c.h.b16 %v889
    %v3100 = vunpack.c.l.b16 %v890
    %v3101 = vunpack.c.h.b16 %v890
    %v3102 = vunpack.c.l.b16 %v891
    %v3103 = vunpack.c.h.b16 %v891
    %v3104 = vunpack.c.l.b16 %v892
    %v3105 = vunpack.c.h.b16 %v892
    %v3106 = vunpack.c.l.b16 %v893
    %v3107 = vunpack.c.h.b16 %v893
    %v3108 = vunpack.c.l.b16 %v894
    %v3109 = vunpack.c.h.b16 %v894
    %v3110 = vunpack.c.l.b16 %v895
    %v3111 = vunpack.c.h.b16 %v895
    %v3112 = vunpack.c.l.b16 %v896
    %v3113 = vunpack.c.h.b16 %v896
    %v3114 = vunpack.c.l.b16 %v897
    %v3115 = vunpack.c.h.b16 %v897
    %v3116 = vunpack.c.l.b16 %v898
    %v3117 = vunpack.c.h.b16 %v898
    %v3118 = vunpack.c.l.b16 %v899
    %v3119 = vunpack.c.h.b16 %v899
    %v3120 = vunpack.c.l.b16 %v900
    %v3121 = vunpack.c.h.b16 %v900
    %v3122 = vunpack.c.l.b16 %v901
    %v3123 = vunpack.c.h.b16 %v901
    %v3124 = vunpack.c.l.b16 %v902
    %v3125 = vunpack.c.h.b16 %v902
    %v3126 = vunpack.c.l.b16 %v903
    %v3127 = vunpack.c.h.b16 %v903
    %v3128 = vunpack.c.l.b16 %v904
    %v3129 = vunpack.c.h.b16 %v904
    %v3130 = vunpack.c.l.b16 %v905
    %v3131 = vunpack.c.h.b16 %v905
    %v3132 = vunpack.c.l.b16 %v906
    %v3133 = vunpack.c.h.b16 %v906
    %v3134 = vunpack.c.l.b16 %v907
    %v3135 = vunpack.c.h.b16 %v907
    %v3136 = vunpack.c.l.b16 %v908
    %v3137 = vunpack.c.h.b16 %v908
    %v3138 = vunpack.c.l.b16 %v909
    %v3139 = vunpack.c.h.b16 %v909
    %v3140 = vunpack.c.l.b16 %v910
    %v3141 = vunpack.c.h.b16 %v910
    %v3142 = vunpack.c.l.b16 %v911
    %v3143 = vunpack.c.h.b16 %v911
    %v3144 = vunpack.c.l.b16 %v912
    %v3145 = vunpack.c.h.b16 %v912
    %v3146 = vunpack.c.l.b16 %v913
    %v3147 = vunpack.c.h.b16 %v913
    %v3148 = vunpack.c.l.b16 %v914
    %v3149 = vunpack.c.h.b16 %v914
    %v3150 = vunpack.c.l.b16 %v915
    %v3151 = vunpack.c.h.b16 %v915
    %v3152 = vunpack.c.l.b16 %v916
    %v3153 = vunpack.c.h.b16 %v916
    %v3154 = vunpack.c.l.b16 %v917
    %v3155 = vunpack.c.h.b16 %v917
    %v3156 = vunpack.c.l.b16 %v918
    %v3157 = vunpack.c.h.b16 %v918
    %v3158 = vunpack.c.l.b16 %v919
    %v3159 = vunpack.c.h.b16 %v919
    %v3160 = vunpack.c.l.b16 %v920
    %v3161 = vunpack.c.h.b16 %v920
    %v3162 = vunpack.c.l.b16 %v921
    %v3163 = vunpack.c.h.b16 %v921
    %v3164 = vunpack.c.l.b16 %v922
    %v3165 = vunpack.c.h.b16 %v922
    %v3166 = vunpack.c.l.b16 %v923
    %v3167 = vunpack.c.h.b16 %v923
    %v3168 = vunpack.c.l.b16 %v924
    %v3169 = vunpack.c.h.b16 %v924
    %v3170 = vunpack.c.l.b16 %v925
    %v3171 = vunpack.c.h.b16 %v925
    %v3172 = vunpack.c.l.b16 %v926
    %v3173 = vunpack.c.h.b16 %v926
    %v3174 = vunpack.c.l.b16 %v927
    %v3175 = vunpack.c.h.b16 %v927
    %v3176 = vunpack.c.l.b16 %v928
    %v3177 = vunpack.c.h.b16 %v928
    %v3178 = vunpack.c.l.b16 %v929
    %v3179 = vunpack.c.h.b16 %v929
    %v3180 = vunpack.c.l.b16 %v930
    %v3181 = vunpack.c.h.b16 %v930
    %v3182 = vunpack.c.l.b16 %v931
    %v3183 = vunpack.c.h.b16 %v931
    %v3184 = vunpack.c.l.b16 %v932
    %v3185 = vunpack.c.h.b16 %v932
    %v3186 = vunpack.c.l.b16 %v933
    %v3187 = vunpack.c.h.b16 %v933
    %v3188 = vunpack.c.l.b16 %v934
    %v3189 = vunpack.c.h.b16 %v934
    %v3190 = vunpack.c.l.b16 %v935
    %v3191 = vunpack.c.h.b16 %v935
    %v3192 = vunpack.c.l.b16 %v936
    %v3193 = vunpack.c.h.b16 %v936
    %v3194 = vunpack.c.l.b16 %v937
    %v3195 = vunpack.c.h.b16 %v937
    %v3196 = vunpack.c.l.b16 %v938
    %v3197 = vunpack.c.h.b16 %v938
    %v3198 = vunpack.c.l.b16 %v939
    %v3199 = vunpack.c.h.b16 %v939
    %v3200 = vunpack.c.l.b16 %v940
    %v3201 = vunpack.c.h.b16 %v940
    %v3202 = vunpack.c.l.b16 %v941
    %v3203 = vunpack.c.h.b16 %v941
    %v3204 = vunpack.c.l.b16 %v942
    %v3205 = vunpack.c.h.b16 %v942
    %v3206 = vunpack.c.l.b16 %v943
    %v3207 = vunpack.c.h.b16 %v943
    %v3208 = vunpack.c.l.b16 %v944
    %v3209 = vunpack.c.h.b16 %v944
    %v3210 = vunpack.c.l.b16 %v945
    %v3211 = vunpack.c.h.b16 %v945
    %v3212 = vunpack.c.l.b16 %v946
    %v3213 = vunpack.c.h.b16 %v946
    %v3214 = vunpack.c.l.b16 %v947
    %v3215 = vunpack.c.h.b16 %v947
    %v3216 = vunpack.c.l.b16 %v948
    %v3217 = vunpack.c.h.b16 %v948
    %v3218 = vunpack.c.l.b16 %v949
    %v3219 = vunpack.c.h.b16 %v949
    %v3220 = vunpack.c.l.b16 %v950
    %v3221 = vunpack.c.h.b16 %v950
    %v3222 = vunpack.c.l.b16 %v951
    %v3223 = vunpack.c.h.b16 %v951
    %v3224 = vunpack.c.l.b16 %v952
    %v3225 = vunpack.c.h.b16 %v952
    %v3226 = vunpack.c.l.b16 %v953
    %v3227 = vunpack.c.h.b16 %v953
    %v3228 = vunpack.c.l.b16 %v954
    %v3229 = vunpack.c.h.b16 %v954
    %v3230 = vunpack.c.l.b16 %v955
    %v3231 = vunpack.c.h.b16 %v955
    %v3232 = vunpack.c.l.b16 %v956
    %v3233 = vunpack.c.h.b16 %v956
    %v3234 = vunpack.c.l.b16 %v957
    %v3235 = vunpack.c.h.b16 %v957
    %v3236 = vunpack.c.l.b16 %v958
    %v3237 = vunpack.c.h.b16 %v958
    %v3238 = vunpack.c.l.b16 %v959
    %v3239 = vunpack.c.h.b16 %v959
    %v3240 = vunpack.c.l.b16 %v960
    %v3241 = vunpack.c.h.b16 %v960
    %v3242 = vunpack.c.l.b16 %v961
    %v3243 = vunpack.c.h.b16 %v961
    %v3244 = vunpack.c.l.b16 %v962
    %v3245 = vunpack.c.h.b16 %v962
    %v3246 = vunpack.c.l.b16 %v963
    %v3247 = vunpack.c.h.b16 %v963
    %v3248 = vunpack.c.l.b16 %v964
    %v3249 = vunpack.c.h.b16 %v964
    %v3250 = vunpack.c.l.b16 %v965
    %v3251 = vunpack.c.h.b16 %v965
    %v3252 = vunpack.c.l.b16 %v966
    %v3253 = vunpack.c.h.b16 %v966
    %v3254 = vunpack.c.l.b16 %v967
    %v3255 = vunpack.c.h.b16 %v967
    %v3256 = vunpack.c.l.b16 %v968
    %v3257 = vunpack.c.h.b16 %v968
    %v3258 = vunpack.c.l.b16 %v969
    %v3259 = vunpack.c.h.b16 %v969
    %v3260 = vunpack.c.l.b16 %v970
    %v3261 = vunpack.c.h.b16 %v970
    %v3262 = vunpack.c.l.b16 %v971
    %v3263 = vunpack.c.h.b16 %v971
    %v3264 = vunpack.c.l.b16 %v972
    %v3265 = vunpack.c.h.b16 %v972
    %v3266 = vunpack.c.l.b16 %v973
    %v3267 = vunpack.c.h.b16 %v973
    %v3268 = vunpack.c.l.b16 %v974
    %v3269 = vunpack.c.h.b16 %v974
    %v3270 = vunpack.c.l.b16 %v975
    %v3271 = vunpack.c.h.b16 %v975
    %v3272 = vunpack.c.l.b16 %v976
    %v3273 = vunpack.c.h.b16 %v976
    %v3274 = vunpack.c.l.b16 %v977
    %v3275 = vunpack.c.h.b16 %v977
    %v3276 = vunpack.c.l.b16 %v978
    %v3277 = vunpack.c.h.b16 %v978
    %v3278 = vunpack.c.l.b16 %v979
    %v3279 = vunpack.c.h.b16 %v979
    %v3280 = vunpack.c.l.b16 %v980
    %v3281 = vunpack.c.h.b16 %v980
    %v3282 = vunpack.c.l.b16 %v981
    %v3283 = vunpack.c.h.b16 %v981
    %v3284 = vunpack.c.l.b16 %v982
    %v3285 = vunpack.c.h.b16 %v982
    %v3286 = vunpack.c.l.b16 %v983
    %v3287 = vunpack.c.h.b16 %v983
    %v3288 = vpack.c.b16 %v1756, %v1752
    %v3289 = vpack.c.b16 %v1757, %v1753
    %v3290 = vpack.c.b16 %v1758, %v1754
    %v3291 = vpack.c.b16 %v1759, %v1755
    %v3292 = vpack.c.b16 %v1764, %v1760
    %v3293 = vpack.c.b16 %v1765, %v1761
    %v3294 = vpack.c.b16 %v1766, %v1762
    %v3295 = vpack.c.b16 %v1767, %v1763
    %v3296 = vpack.c.b16 %v1772, %v1768
    %v3297 = vpack.c.b16 %v1773, %v1769
    %v3298 = vpack.c.b16 %v1774, %v1770
    %v3299 = vpack.c.b16 %v1775, %v1771
    %v3300 = vpack.c.b16 %v1780, %v1776
    %v3301 = vpack.c.b16 %v1781, %v1777
    %v3302 = vpack.c.b16 %v1782, %v1778
    %v3303 = vpack.c.b16 %v1783, %v1779
    %v3304 = vpack.c.b16 %v1788, %v1784
    %v3305 = vpack.c.b16 %v1789, %v1785
    %v3306 = vpack.c.b16 %v1790, %v1786
    %v3307 = vpack.c.b16 %v1791, %v1787
    %v3308 = vpack.c.b16 %v1796, %v1792
    %v3309 = vpack.c.b16 %v1797, %v1793
    %v3310 = vpack.c.b16 %v1798, %v1794
    %v3311 = vpack.c.b16 %v1799, %v1795
    %v3312 = vpack.c.b16 %v1804, %v1800
    %v3313 = vpack.c.b16 %v1805, %v1801
    %v3314 = vpack.c.b16 %v1806, %v1802
    %v3315 = vpack.c.b16 %v1807, %v1803
    %v3316 = vpack.c.b16 %v1812, %v1808
    %v3317 = vpack.c.b16 %v1813, %v1809
    %v3318 = vpack.c.b16 %v1814, %v1810
    %v3319 = vpack.c.b16 %v1815, %v1811
    %v3320 = vpack.c.b16 %v1820, %v1816
    %v3321 = vpack.c.b16 %v1821, %v1817
    %v3322 = vpack.c.b16 %v1822, %v1818
    %v3323 = vpack.c.b16 %v1823, %v1819
    %v3324 = vpack.c.b16 %v1828, %v1824
    %v3325 = vpack.c.b16 %v1829, %v1825
    %v3326 = vpack.c.b16 %v1830, %v1826
    %v3327 = vpack.c.b16 %v1831, %v1827
    %v3328 = vpack.c.b16 %v1836, %v1832
    %v3329 = vpack.c.b16 %v1837, %v1833
    %v3330 = vpack.c.b16 %v1838, %v1834
    %v3331 = vpack.c.b16 %v1839, %v1835
    %v3332 = vpack.c.b16 %v1844, %v1840
    %v3333 = vpack.c.b16 %v1845, %v1841
    %v3334 = vpack.c.b16 %v1846, %v1842
    %v3335 = vpack.c.b16 %v1847, %v1843
    %v3336 = vpack.c.b16 %v1852, %v1848
    %v3337 = vpack.c.b16 %v1853, %v1849
    %v3338 = vpack.c.b16 %v1854, %v1850
    %v3339 = vpack.c.b16 %v1855, %v1851
    %v3340 = vpack.c.b16 %v1860, %v1856
    %v3341 = vpack.c.b16 %v1861, %v1857
    %v3342 = vpack.c.b16 %v1862, %v1858
    %v3343 = vpack.c.b16 %v1863, %v1859
    %v3344 = vpack.c.b16 %v1868, %v1864
    %v3345 = vpack.c.b16 %v1869, %v1865
    %v3346 = vpack.c.b16 %v1870, %v1866
    %v3347 = vpack.c.b16 %v1871, %v1867
    %v3348 = vpack.c.b16 %v1876, %v1872
    %v3349 = vpack.c.b16 %v1877, %v1873
    %v3350 = vpack.c.b16 %v1878, %v1874
    %v3351 = vpack.c.b16 %v1879, %v1875
    %v3352 = vpack.c.b16 %v1884, %v1880
    %v3353 = vpack.c.b16 %v1885, %v1881
    %v3354 = vpack.c.b16 %v1886, %v1882
    %v3355 = vpack.c.b16 %v1887, %v1883
    %v3356 = vpack.c.b16 %v1892, %v1888
    %v3357 = vpack.c.b16 %v1893, %v1889
    %v3358 = vpack.c.b16 %v1894, %v1890
    %v3359 = vpack.c.b16 %v1895, %v1891
    %v3360 = vpack.c.b16 %v1900, %v1896
    %v3361 = vpack.c.b16 %v1901, %v1897
    %v3362 = vpack.c.b16 %v1902, %v1898
    %v3363 = vpack.c.b16 %v1903, %v1899
    %v3364 = vpack.c.b16 %v1908, %v1904
    %v3365 = vpack.c.b16 %v1909, %v1905
    %v3366 = vpack.c.b16 %v1910, %v1906
    %v3367 = vpack.c.b16 %v1911, %v1907
    %v3368 = vpack.c.b16 %v1916, %v1912
    %v3369 = vpack.c.b16 %v1917, %v1913
    %v3370 = vpack.c.b16 %v1918, %v1914
    %v3371 = vpack.c.b16 %v1919, %v1915
    %v3372 = vpack.c.b16 %v1924, %v1920
    %v3373 = vpack.c.b16 %v1925, %v1921
    %v3374 = vpack.c.b16 %v1926, %v1922
    %v3375 = vpack.c.b16 %v1927, %v1923
    %v3376 = vpack.c.b16 %v1932, %v1928
    %v3377 = vpack.c.b16 %v1933, %v1929
    %v3378 = vpack.c.b16 %v1934, %v1930
    %v3379 = vpack.c.b16 %v1935, %v1931
    %v3380 = vpack.c.b16 %v1940, %v1936
    %v3381 = vpack.c.b16 %v1941, %v1937
    %v3382 = vpack.c.b16 %v1942, %v1938
    %v3383 = vpack.c.b16 %v1943, %v1939
    %v3384 = vpack.c.b16 %v1948, %v1944
    %v3385 = vpack.c.b16 %v1949, %v1945
    %v3386 = vpack.c.b16 %v1950, %v1946
    %v3387 = vpack.c.b16 %v1951, %v1947
    %v3388 = vpack.c.b16 %v1956, %v1952
    %v3389 = vpack.c.b16 %v1957, %v1953
    %v3390 = vpack.c.b16 %v1958, %v1954
    %v3391 = vpack.c.b16 %v1959, %v1955
    %v3392 = vpack.c.b16 %v1964, %v1960
    %v3393 = vpack.c.b16 %v1965, %v1961
    %v3394 = vpack.c.b16 %v1966, %v1962
    %v3395 = vpack.c.b16 %v1967, %v1963
    %v3396 = vpack.c.b16 %v1972, %v1968
    %v3397 = vpack.c.b16 %v1973, %v1969
    %v3398 = vpack.c.b16 %v1974, %v1970
    %v3399 = vpack.c.b16 %v1975, %v1971
    %v3400 = vpack.c.b16 %v1980, %v1976
    %v3401 = vpack.c.b16 %v1981, %v1977
    %v3402 = vpack.c.b16 %v1982, %v1978
    %v3403 = vpack.c.b16 %v1983, %v1979
    %v3404 = vpack.c.b16 %v1988, %v1984
    %v3405 = vpack.c.b16 %v1989, %v1985
    %v3406 = vpack.c.b16 %v1990, %v1986
    %v3407 = vpack.c.b16 %v1991, %v1987
    %v3408 = vpack.c.b16 %v1996, %v1992
    %v3409 = vpack.c.b16 %v1997, %v1993
    %v3410 = vpack.c.b16 %v1998, %v1994
    %v3411 = vpack.c.b16 %v1999, %v1995
    %v3412 = vpack.c.b16 %v2004, %v2000
    %v3413 = vpack.c.b16 %v2005, %v2001
    %v3414 = vpack.c.b16 %v2006, %v2002
    %v3415 = vpack.c.b16 %v2007, %v2003
    %v3416 = vpack.c.b16 %v2012, %v2008
    %v3417 = vpack.c.b16 %v2013, %v2009
    %v3418 = vpack.c.b16 %v2014, %v2010
    %v3419 = vpack.c.b16 %v2015, %v2011
    %v3420 = vpack.c.b16 %v2020, %v2016
    %v3421 = vpack.c.b16 %v2021, %v2017
    %v3422 = vpack.c.b16 %v2022, %v2018
    %v3423 = vpack.c.b16 %v2023, %v2019
    %v3424 = vpack.c.b16 %v2028, %v2024
    %v3425 = vpack.c.b16 %v2029, %v2025
    %v3426 = vpack.c.b16 %v2030, %v2026
    %v3427 = vpack.c.b16 %v2031, %v2027
    %v3428 = vpack.c.b16 %v2036, %v2032
    %v3429 = vpack.c.b16 %v2037, %v2033
    %v3430 = vpack.c.b16 %v2038, %v2034
    %v3431 = vpack.c.b16 %v2039, %v2035
    %v3432 = vpack.c.b16 %v2044, %v2040
    %v3433 = vpack.c.b16 %v2045, %v2041
    %v3434 = vpack.c.b16 %v2046, %v2042
    %v3435 = vpack.c.b16 %v2047, %v2043
    %v3436 = vpack.c.b16 %v2052, %v2048
    %v3437 = vpack.c.b16 %v2053, %v2049
    %v3438 = vpack.c.b16 %v2054, %v2050
    %v3439 = vpack.c.b16 %v2055, %v2051
    %v3440 = vpack.c.b16 %v2060, %v2056
    %v3441 = vpack.c.b16 %v2061, %v2057
    %v3442 = vpack.c.b16 %v2062, %v2058
    %v3443 = vpack.c.b16 %v2063, %v2059
    %v3444 = vpack.c.b16 %v2068, %v2064
    %v3445 = vpack.c.b16 %v2069, %v2065
    %v3446 = vpack.c.b16 %v2070, %v2066
    %v3447 = vpack.c.b16 %v2071, %v2067
    %v3448 = vpack.c.b16 %v2076, %v2072
    %v3449 = vpack.c.b16 %v2077, %v2073
    %v3450 = vpack.c.b16 %v2078, %v2074
    %v3451 = vpack.c.b16 %v2079, %v2075
    %v3452 = vpack.c.b16 %v2084, %v2080
    %v3453 = vpack.c.b16 %v2085, %v2081
    %v3454 = vpack.c.b16 %v2086, %v2082
    %v3455 = vpack.c.b16 %v2087, %v2083
    %v3456 = vpack.c.b16 %v2092, %v2088
    %v3457 = vpack.c.b16 %v2093, %v2089
    %v3458 = vpack.c.b16 %v2094, %v2090
    %v3459 = vpack.c.b16 %v2095, %v2091
    %v3460 = vpack.c.b16 %v2100, %v2096
    %v3461 = vpack.c.b16 %v2101, %v2097
    %v3462 = vpack.c.b16 %v2102, %v2098
    %v3463 = vpack.c.b16 %v2103, %v2099
    %v3464 = vpack.c.b16 %v2108, %v2104
    %v3465 = vpack.c.b16 %v2109, %v2105
    %v3466 = vpack.c.b16 %v2110, %v2106
    %v3467 = vpack.c.b16 %v2111, %v2107
    %v3468 = vpack.c.b16 %v2116, %v2112
    %v3469 = vpack.c.b16 %v2117, %v2113
    %v3470 = vpack.c.b16 %v2118, %v2114
    %v3471 = vpack.c.b16 %v2119, %v2115
    %v3472 = vpack.c.b16 %v2124, %v2120
    %v3473 = vpack.c.b16 %v2125, %v2121
    %v3474 = vpack.c.b16 %v2126, %v2122
    %v3475 = vpack.c.b16 %v2127, %v2123
    %v3476 = vpack.c.b16 %v2132, %v2128
    %v3477 = vpack.c.b16 %v2133, %v2129
    %v3478 = vpack.c.b16 %v2134, %v2130
    %v3479 = vpack.c.b16 %v2135, %v2131
    %v3480 = vpack.c.b16 %v2140, %v2136
    %v3481 = vpack.c.b16 %v2141, %v2137
    %v3482 = vpack.c.b16 %v2142, %v2138
    %v3483 = vpack.c.b16 %v2143, %v2139
    %v3484 = vpack.c.b16 %v2148, %v2144
    %v3485 = vpack.c.b16 %v2149, %v2145
    %v3486 = vpack.c.b16 %v2150, %v2146
    %v3487 = vpack.c.b16 %v2151, %v2147
    %v3488 = vpack.c.b16 %v2156, %v2152
    %v3489 = vpack.c.b16 %v2157, %v2153
    %v3490 = vpack.c.b16 %v2158, %v2154
    %v3491 = vpack.c.b16 %v2159, %v2155
    %v3492 = vpack.c.b16 %v2164, %v2160
    %v3493 = vpack.c.b16 %v2165, %v2161
    %v3494 = vpack.c.b16 %v2166, %v2162
    %v3495 = vpack.c.b16 %v2167, %v2163
    %v3496 = vpack.c.b16 %v2172, %v2168
    %v3497 = vpack.c.b16 %v2173, %v2169
    %v3498 = vpack.c.b16 %v2174, %v2170
    %v3499 = vpack.c.b16 %v2175, %v2171
    %v3500 = vpack.c.b16 %v2180, %v2176
    %v3501 = vpack.c.b16 %v2181, %v2177
    %v3502 = vpack.c.b16 %v2182, %v2178
    %v3503 = vpack.c.b16 %v2183, %v2179
    %v3504 = vpack.c.b16 %v2188, %v2184
    %v3505 = vpack.c.b16 %v2189, %v2185
    %v3506 = vpack.c.b16 %v2190, %v2186
    %v3507 = vpack.c.b16 %v2191, %v2187
    %v3508 = vpack.c.b16 %v2196, %v2192
    %v3509 = vpack.c.b16 %v2197, %v2193
    %v3510 = vpack.c.b16 %v2198, %v2194
    %v3511 = vpack.c.b16 %v2199, %v2195
    %v3512 = vpack.c.b16 %v2204, %v2200
    %v3513 = vpack.c.b16 %v2205, %v2201
    %v3514 = vpack.c.b16 %v2206, %v2202
    %v3515 = vpack.c.b16 %v2207, %v2203
    %v3516 = vpack.c.b16 %v2212, %v2208
    %v3517 = vpack.c.b16 %v2213, %v2209
    %v3518 = vpack.c.b16 %v2214, %v2210
    %v3519 = vpack.c.b16 %v2215, %v2211
    %v3520 = vpack.c.b16 %v2220, %v2216
    %v3521 = vpack.c.b16 %v2221, %v2217
    %v3522 = vpack.c.b16 %v2222, %v2218
    %v3523 = vpack.c.b16 %v2223, %v2219
    %v3524 = vpack.c.b16 %v2228, %v2224
    %v3525 = vpack.c.b16 %v2229, %v2225
    %v3526 = vpack.c.b16 %v2230, %v2226
    %v3527 = vpack.c.b16 %v2231, %v2227
    %v3528 = vpack.c.b16 %v2236, %v2232
    %v3529 = vpack.c.b16 %v2237, %v2233
    %v3530 = vpack.c.b16 %v2238, %v2234
    %v3531 = vpack.c.b16 %v2239, %v2235
    %v3532 = vpack.c.b16 %v2244, %v2240
    %v3533 = vpack.c.b16 %v2245, %v2241
    %v3534 = vpack.c.b16 %v2246, %v2242
    %v3535 = vpack.c.b16 %v2247, %v2243
    %v3536 = vpack.c.b16 %v2252, %v2248
    %v3537 = vpack.c.b16 %v2253, %v2249
    %v3538 = vpack.c.b16 %v2254, %v2250
    %v3539 = vpack.c.b16 %v2255, %v2251
    %v3540 = vpack.c.b16 %v2260, %v2256
    %v3541 = vpack.c.b16 %v2261, %v2257
    %v3542 = vpack.c.b16 %v2262, %v2258
    %v3543 = vpack.c.b16 %v2263, %v2259
    %v3544 = vpack.c.b16 %v2268, %v2264
    %v3545 = vpack.c.b16 %v2269, %v2265
    %v3546 = vpack.c.b16 %v2270, %v2266
    %v3547 = vpack.c.b16 %v2271, %v2267
    %v3548 = vpack.c.b16 %v2276, %v2272
    %v3549 = vpack.c.b16 %v2277, %v2273
    %v3550 = vpack.c.b16 %v2278, %v2274
    %v3551 = vpack.c.b16 %v2279, %v2275
    %v3552 = vpack.c.b16 %v2284, %v2280
    %v3553 = vpack.c.b16 %v2285, %v2281
    %v3554 = vpack.c.b16 %v2286, %v2282
    %v3555 = vpack.c.b16 %v2287, %v2283
    %v3556 = vpack.c.b16 %v2292, %v2288
    %v3557 = vpack.c.b16 %v2293, %v2289
    %v3558 = vpack.c.b16 %v2294, %v2290
    %v3559 = vpack.c.b16 %v2295, %v2291
    %v3560 = vpack.c.b16 %v2300, %v2296
    %v3561 = vpack.c.b16 %v2301, %v2297
    %v3562 = vpack.c.b16 %v2302, %v2298
    %v3563 = vpack.c.b16 %v2303, %v2299
    %v3564 = vpack.c.b16 %v2308, %v2304
    %v3565 = vpack.c.b16 %v2309, %v2305
    %v3566 = vpack.c.b16 %v2310, %v2306
    %v3567 = vpack.c.b16 %v2311, %v2307
    %v3568 = vpack.c.b16 %v2316, %v2312
    %v3569 = vpack.c.b16 %v2317, %v2313
    %v3570 = vpack.c.b16 %v2318, %v2314
    %v3571 = vpack.c.b16 %v2319, %v2315
    %v3572 = vpack.c.b16 %v2324, %v2320
    %v3573 = vpack.c.b16 %v2325, %v2321
    %v3574 = vpack.c.b16 %v2326, %v2322
    %v3575 = vpack.c.b16 %v2327, %v2323
    %v3576 = vpack.c.b16 %v2332, %v2328
    %v3577 = vpack.c.b16 %v2333, %v2329
    %v3578 = vpack.c.b16 %v2334, %v2330
    %v3579 = vpack.c.b16 %v2335, %v2331
    %v3580 = vpack.c.b16 %v2340, %v2336
    %v3581 = vpack.c.b16 %v2341, %v2337
    %v3582 = vpack.c.b16 %v2342, %v2338
    %v3583 = vpack.c.b16 %v2343, %v2339
    %v3584 = vpack.c.b16 %v2348, %v2344
    %v3585 = vpack.c.b16 %v2349, %v2345
    %v3586 = vpack.c.b16 %v2350, %v2346
    %v3587 = vpack.c.b16 %v2351, %v2347
    %v3588 = vpack.c.b16 %v2356, %v2352
    %v3589 = vpack.c.b16 %v2357, %v2353
    %v3590 = vpack.c.b16 %v2358, %v2354
    %v3591 = vpack.c.b16 %v2359, %v2355
    %v3592 = vpack.c.b16 %v2364, %v2360
    %v3593 = vpack.c.b16 %v2365, %v2361
    %v3594 = vpack.c.b16 %v2366, %v2362
    %v3595 = vpack.c.b16 %v2367, %v2363
    %v3596 = vpack.c.b16 %v2372, %v2368
    %v3597 = vpack.c.b16 %v2373, %v2369
    %v3598 = vpack.c.b16 %v2374, %v2370
    %v3599 = vpack.c.b16 %v2375, %v2371
    %v3600 = vpack.c.b16 %v2380, %v2376
    %v3601 = vpack.c.b16 %v2381, %v2377
    %v3602 = vpack.c.b16 %v2382, %v2378
    %v3603 = vpack.c.b16 %v2383, %v2379
    %v3604 = vpack.c.b16 %v2388, %v2384
    %v3605 = vpack.c.b16 %v2389, %v2385
    %v3606 = vpack.c.b16 %v2390, %v2386
    %v3607 = vpack.c.b16 %v2391, %v2387
    %v3608 = vpack.c.b16 %v2396, %v2392
    %v3609 = vpack.c.b16 %v2397, %v2393
    %v3610 = vpack.c.b16 %v2398, %v2394
    %v3611 = vpack.c.b16 %v2399, %v2395
    %v3612 = vpack.c.b16 %v2404, %v2400
    %v3613 = vpack.c.b16 %v2405, %v2401
    %v3614 = vpack.c.b16 %v2406, %v2402
    %v3615 = vpack.c.b16 %v2407, %v2403
    %v3616 = vpack.c.b16 %v2412, %v2408
    %v3617 = vpack.c.b16 %v2413, %v2409
    %v3618 = vpack.c.b16 %v2414, %v2410
    %v3619 = vpack.c.b16 %v2415, %v2411
    %v3620 = vpack.c.b16 %v2420, %v2416
    %v3621 = vpack.c.b16 %v2421, %v2417
    %v3622 = vpack.c.b16 %v2422, %v2418
    %v3623 = vpack.c.b16 %v2423, %v2419
    %v3624 = vpack.c.b16 %v2428, %v2424
    %v3625 = vpack.c.b16 %v2429, %v2425
    %v3626 = vpack.c.b16 %v2430, %v2426
    %v3627 = vpack.c.b16 %v2431, %v2427
    %v3628 = vpack.c.b16 %v2436, %v2432
    %v3629 = vpack.c.b16 %v2437, %v2433
    %v3630 = vpack.c.b16 %v2438, %v2434
    %v3631 = vpack.c.b16 %v2439, %v2435
    %v3632 = vpack.c.b16 %v2444, %v2440
    %v3633 = vpack.c.b16 %v2445, %v2441
    %v3634 = vpack.c.b16 %v2446, %v2442
    %v3635 = vpack.c.b16 %v2447, %v2443
    %v3636 = vpack.c.b16 %v2452, %v2448
    %v3637 = vpack.c.b16 %v2453, %v2449
    %v3638 = vpack.c.b16 %v2454, %v2450
    %v3639 = vpack.c.b16 %v2455, %v2451
    %v3640 = vpack.c.b16 %v2460, %v2456
    %v3641 = vpack.c.b16 %v2461, %v2457
    %v3642 = vpack.c.b16 %v2462, %v2458
    %v3643 = vpack.c.b16 %v2463, %v2459
    %v3644 = vpack.c.b16 %v2468, %v2464
    %v3645 = vpack.c.b16 %v2469, %v2465
    %v3646 = vpack.c.b16 %v2470, %v2466
    %v3647 = vpack.c.b16 %v2471, %v2467
    %v3648 = vpack.c.b16 %v2476, %v2472
    %v3649 = vpack.c.b16 %v2477, %v2473
    %v3650 = vpack.c.b16 %v2478, %v2474
    %v3651 = vpack.c.b16 %v2479, %v2475
    %v3652 = vpack.c.b16 %v2484, %v2480
    %v3653 = vpack.c.b16 %v2485, %v2481
    %v3654 = vpack.c.b16 %v2486, %v2482
    %v3655 = vpack.c.b16 %v2487, %v2483
    %v3656 = vpack.c.b16 %v2492, %v2488
    %v3657 = vpack.c.b16 %v2493, %v2489
    %v3658 = vpack.c.b16 %v2494, %v2490
    %v3659 = vpack.c.b16 %v2495, %v2491
    %v3660 = vpack.c.b16 %v2500, %v2496
    %v3661 = vpack.c.b16 %v2501, %v2497
    %v3662 = vpack.c.b16 %v2502, %v2498
    %v3663 = vpack.c.b16 %v2503, %v2499
    %v3664 = vpack.c.b16 %v2508, %v2504
    %v3665 = vpack.c.b16 %v2509, %v2505
    %v3666 = vpack.c.b16 %v2510, %v2506
    %v3667 = vpack.c.b16 %v2511, %v2507
    %v3668 = vpack.c.b16 %v2516, %v2512
    %v3669 = vpack.c.b16 %v2517, %v2513
    %v3670 = vpack.c.b16 %v2518, %v2514
    %v3671 = vpack.c.b16 %v2519, %v2515
    %v3672 = vpack.c.b16 %v2524, %v2520
    %v3673 = vpack.c.b16 %v2525, %v2521
    %v3674 = vpack.c.b16 %v2526, %v2522
    %v3675 = vpack.c.b16 %v2527, %v2523
    %v3676 = vpack.c.b16 %v2532, %v2528
    %v3677 = vpack.c.b16 %v2533, %v2529
    %v3678 = vpack.c.b16 %v2534, %v2530
    %v3679 = vpack.c.b16 %v2535, %v2531
    %v3680 = vpack.c.b16 %v2540, %v2536
    %v3681 = vpack.c.b16 %v2541, %v2537
    %v3682 = vpack.c.b16 %v2542, %v2538
    %v3683 = vpack.c.b16 %v2543, %v2539
    %v3684 = vpack.c.b16 %v2548, %v2544
    %v3685 = vpack.c.b16 %v2549, %v2545
    %v3686 = vpack.c.b16 %v2550, %v2546
    %v3687 = vpack.c.b16 %v2551, %v2547
    %v3688 = vpack.c.b16 %v2556, %v2552
    %v3689 = vpack.c.b16 %v2557, %v2553
    %v3690 = vpack.c.b16 %v2558, %v2554
    %v3691 = vpack.c.b16 %v2559, %v2555
    %v3692 = vpack.c.b16 %v2564, %v2560
    %v3693 = vpack.c.b16 %v2565, %v2561
    %v3694 = vpack.c.b16 %v2566, %v2562
    %v3695 = vpack.c.b16 %v2567, %v2563
    %v3696 = vpack.c.b16 %v2572, %v2568
    %v3697 = vpack.c.b16 %v2573, %v2569
    %v3698 = vpack.c.b16 %v2574, %v2570
    %v3699 = vpack.c.b16 %v2575, %v2571
    %v3700 = vpack.c.b16 %v2580, %v2576
    %v3701 = vpack.c.b16 %v2581, %v2577
    %v3702 = vpack.c.b16 %v2582, %v2578
    %v3703 = vpack.c.b16 %v2583, %v2579
    %v3704 = vpack.c.b16 %v2588, %v2584
    %v3705 = vpack.c.b16 %v2589, %v2585
    %v3706 = vpack.c.b16 %v2590, %v2586
    %v3707 = vpack.c.b16 %v2591, %v2587
    %v3708 = vpack.c.b16 %v2596, %v2592
    %v3709 = vpack.c.b16 %v2597, %v2593
    %v3710 = vpack.c.b16 %v2598, %v2594
    %v3711 = vpack.c.b16 %v2599, %v2595
    %v3712 = vpack.c.b16 %v2604, %v2600
    %v3713 = vpack.c.b16 %v2605, %v2601
    %v3714 = vpack.c.b16 %v2606, %v2602
    %v3715 = vpack.c.b16 %v2607, %v2603
    %v3716 = vpack.c.b16 %v2612, %v2608
    %v3717 = vpack.c.b16 %v2613, %v2609
    %v3718 = vpack.c.b16 %v2614, %v2610
    %v3719 = vpack.c.b16 %v2615, %v2611
    %v3720 = vpack.c.b16 %v2620, %v2616
    %v3721 = vpack.c.b16 %v2621, %v2617
    %v3722 = vpack.c.b16 %v2622, %v2618
    %v3723 = vpack.c.b16 %v2623, %v2619
    %v3724 = vpack.c.b16 %v2628, %v2624
    %v3725 = vpack.c.b16 %v2629, %v2625
    %v3726 = vpack.c.b16 %v2630, %v2626
    %v3727 = vpack.c.b16 %v2631, %v2627
    %v3728 = vpack.c.b16 %v2636, %v2632
    %v3729 = vpack.c.b16 %v2637, %v2633
    %v3730 = vpack.c.b16 %v2638, %v2634
    %v3731 = vpack.c.b16 %v2639, %v2635
    %v3732 = vpack.c.b16 %v2644, %v2640
    %v3733 = vpack.c.b16 %v2645, %v2641
    %v3734 = vpack.c.b16 %v2646, %v2642
    %v3735 = vpack.c.b16 %v2647, %v2643
    %v3736 = vpack.c.b16 %v2652, %v2648
    %v3737 = vpack.c.b16 %v2653, %v2649
    %v3738 = vpack.c.b16 %v2654, %v2650
    %v3739 = vpack.c.b16 %v2655, %v2651
    %v3740 = vpack.c.b16 %v2660, %v2656
    %v3741 = vpack.c.b16 %v2661, %v2657
    %v3742 = vpack.c.b16 %v2662, %v2658
    %v3743 = vpack.c.b16 %v2663, %v2659
    %v3744 = vpack.c.b16 %v2668, %v2664
    %v3745 = vpack.c.b16 %v2669, %v2665
    %v3746 = vpack.c.b16 %v2670, %v2666
    %v3747 = vpack.c.b16 %v2671, %v2667
    %v3748 = vpack.c.b16 %v2676, %v2672
    %v3749 = vpack.c.b16 %v2677, %v2673
    %v3750 = vpack.c.b16 %v2678, %v2674
    %v3751 = vpack.c.b16 %v2679, %v2675
    %v3752 = vpack.c.b16 %v2684, %v2680
    %v3753 = vpack.c.b16 %v2685, %v2681
    %v3754 = vpack.c.b16 %v2686, %v2682
    %v3755 = vpack.c.b16 %v2687, %v2683
    %v3756 = vpack.c.b16 %v2692, %v2688
    %v3757 = vpack.c.b16 %v2693, %v2689
    %v3758 = vpack.c.b16 %v2694, %v2690
    %v3759 = vpack.c.b16 %v2695, %v2691
    %v3760 = vpack.c.b16 %v2700, %v2696
    %v3761 = vpack.c.b16 %v2701, %v2697
    %v3762 = vpack.c.b16 %v2702, %v2698
    %v3763 = vpack.c.b16 %v2703, %v2699
    %v3764 = vpack.c.b16 %v2708, %v2704
    %v3765 = vpack.c.b16 %v2709, %v2705
    %v3766 = vpack.c.b16 %v2710, %v2706
    %v3767 = vpack.c.b16 %v2711, %v2707
    %v3768 = vpack.c.b16 %v2716, %v2712
    %v3769 = vpack.c.b16 %v2717, %v2713
    %v3770 = vpack.c.b16 %v2718, %v2714
    %v3771 = vpack.c.b16 %v2719, %v2715
    %v3772 = vpack.c.b16 %v2724, %v2720
    %v3773 = vpack.c.b16 %v2725, %v2721
    %v3774 = vpack.c.b16 %v2726, %v2722
    %v3775 = vpack.c.b16 %v2727, %v2723
    %v3776 = vpack.c.b16 %v2732, %v2728
    %v3777 = vpack.c.b16 %v2733, %v2729
    %v3778 = vpack.c.b16 %v2734, %v2730
    %v3779 = vpack.c.b16 %v2735, %v2731
    %v3780 = vpack.c.b16 %v2740, %v2736
    %v3781 = vpack.c.b16 %v2741, %v2737
    %v3782 = vpack.c.b16 %v2742, %v2738
    %v3783 = vpack.c.b16 %v2743, %v2739
    %v3784 = vpack.c.b16 %v2748, %v2744
    %v3785 = vpack.c.b16 %v2749, %v2745
    %v3786 = vpack.c.b16 %v2750, %v2746
    %v3787 = vpack.c.b16 %v2751, %v2747
    %v3788 = vpack.c.b16 %v2756, %v2752
    %v3789 = vpack.c.b16 %v2757, %v2753
    %v3790 = vpack.c.b16 %v2758, %v2754
    %v3791 = vpack.c.b16 %v2759, %v2755
    %v3792 = vpack.c.b16 %v2764, %v2760
    %v3793 = vpack.c.b16 %v2765, %v2761
    %v3794 = vpack.c.b16 %v2766, %v2762
    %v3795 = vpack.c.b16 %v2767, %v2763
    %v3796 = vpack.c.b16 %v2772, %v2768
    %v3797 = vpack.c.b16 %v2773, %v2769
    %v3798 = vpack.c.b16 %v2774, %v2770
    %v3799 = vpack.c.b16 %v2775, %v2771
    %v3800 = vpack.c.b16 %v2780, %v2776
    %v3801 = vpack.c.b16 %v2781, %v2777
    %v3802 = vpack.c.b16 %v2782, %v2778
    %v3803 = vpack.c.b16 %v2783, %v2779
    %v3804 = vpack.c.b16 %v2788, %v2784
    %v3805 = vpack.c.b16 %v2789, %v2785
    %v3806 = vpack.c.b16 %v2790, %v2786
    %v3807 = vpack.c.b16 %v2791, %v2787
    %v3808 = vpack.c.b16 %v2796, %v2792
    %v3809 = vpack.c.b16 %v2797, %v2793
    %v3810 = vpack.c.b16 %v2798, %v2794
    %v3811 = vpack.c.b16 %v2799, %v2795
    %v3812 = vpack.c.b16 %v2804, %v2800
    %v3813 = vpack.c.b16 %v2805, %v2801
    %v3814 = vpack.c.b16 %v2806, %v2802
    %v3815 = vpack.c.b16 %v2807, %v2803
    %v3816 = vpack.c.b16 %v2812, %v2808
    %v3817 = vpack.c.b16 %v2813, %v2809
    %v3818 = vpack.c.b16 %v2814, %v2810
    %v3819 = vpack.c.b16 %v2815, %v2811
    %v3820 = vpack.c.b16 %v2820, %v2816
    %v3821 = vpack.c.b16 %v2821, %v2817
    %v3822 = vpack.c.b16 %v2822, %v2818
    %v3823 = vpack.c.b16 %v2823, %v2819
    %v3824 = vpack.c.b16 %v2828, %v2824
    %v3825 = vpack.c.b16 %v2829, %v2825
    %v3826 = vpack.c.b16 %v2830, %v2826
    %v3827 = vpack.c.b16 %v2831, %v2827
    %v3828 = vpack.c.b16 %v2836, %v2832
    %v3829 = vpack.c.b16 %v2837, %v2833
    %v3830 = vpack.c.b16 %v2838, %v2834
    %v3831 = vpack.c.b16 %v2839, %v2835
    %v3832 = vpack.c.b16 %v2844, %v2840
    %v3833 = vpack.c.b16 %v2845, %v2841
    %v3834 = vpack.c.b16 %v2846, %v2842
    %v3835 = vpack.c.b16 %v2847, %v2843
    %v3836 = vpack.c.b16 %v2852, %v2848
    %v3837 = vpack.c.b16 %v2853, %v2849
    %v3838 = vpack.c.b16 %v2854, %v2850
    %v3839 = vpack.c.b16 %v2855, %v2851
    %v3840 = vpack.c.b16 %v2860, %v2856
    %v3841 = vpack.c.b16 %v2861, %v2857
    %v3842 = vpack.c.b16 %v2862, %v2858
    %v3843 = vpack.c.b16 %v2863, %v2859
    %v3844 = vpack.c.b16 %v2868, %v2864
    %v3845 = vpack.c.b16 %v2869, %v2865
    %v3846 = vpack.c.b16 %v2870, %v2866
    %v3847 = vpack.c.b16 %v2871, %v2867
    %v3848 = vpack.c.b16 %v2876, %v2872
    %v3849 = vpack.c.b16 %v2877, %v2873
    %v3850 = vpack.c.b16 %v2878, %v2874
    %v3851 = vpack.c.b16 %v2879, %v2875
    %v3852 = vpack.c.b16 %v2884, %v2880
    %v3853 = vpack.c.b16 %v2885, %v2881
    %v3854 = vpack.c.b16 %v2886, %v2882
    %v3855 = vpack.c.b16 %v2887, %v2883
    %v3856 = vpack.c.b16 %v2892, %v2888
    %v3857 = vpack.c.b16 %v2893, %v2889
    %v3858 = vpack.c.b16 %v2894, %v2890
    %v3859 = vpack.c.b16 %v2895, %v2891
    %v3860 = vpack.c.b16 %v2900, %v2896
    %v3861 = vpack.c.b16 %v2901, %v2897
    %v3862 = vpack.c.b16 %v2902, %v2898
    %v3863 = vpack.c.b16 %v2903, %v2899
    %v3864 = vpack.c.b16 %v2908, %v2904
    %v3865 = vpack.c.b16 %v2909, %v2905
    %v3866 = vpack.c.b16 %v2910, %v2906
    %v3867 = vpack.c.b16 %v2911, %v2907
    %v3868 = vpack.c.b16 %v2916, %v2912
    %v3869 = vpack.c.b16 %v2917, %v2913
    %v3870 = vpack.c.b16 %v2918, %v2914
    %v3871 = vpack.c.b16 %v2919, %v2915
    %v3872 = vpack.c.b16 %v2924, %v2920
    %v3873 = vpack.c.b16 %v2925, %v2921
    %v3874 = vpack.c.b16 %v2926, %v2922
    %v3875 = vpack.c.b16 %v2927, %v2923
    %v3876 = vpack.c.b16 %v2932, %v2928
    %v3877 = vpack.c.b16 %v2933, %v2929
    %v3878 = vpack.c.b16 %v2934, %v2930
    %v3879 = vpack.c.b16 %v2935, %v2931
    %v3880 = vpack.c.b16 %v2940, %v2936
    %v3881 = vpack.c.b16 %v2941, %v2937
    %v3882 = vpack.c.b16 %v2942, %v2938
    %v3883 = vpack.c.b16 %v2943, %v2939
    %v3884 = vpack.c.b16 %v2948, %v2944
    %v3885 = vpack.c.b16 %v2949, %v2945
    %v3886 = vpack.c.b16 %v2950, %v2946
    %v3887 = vpack.c.b16 %v2951, %v2947
    %v3888 = vpack.c.b16 %v2956, %v2952
    %v3889 = vpack.c.b16 %v2957, %v2953
    %v3890 = vpack.c.b16 %v2958, %v2954
    %v3891 = vpack.c.b16 %v2959, %v2955
    %v3892 = vpack.c.b16 %v2964, %v2960
    %v3893 = vpack.c.b16 %v2965, %v2961
    %v3894 = vpack.c.b16 %v2966, %v2962
    %v3895 = vpack.c.b16 %v2967, %v2963
    %v3896 = vpack.c.b16 %v2972, %v2968
    %v3897 = vpack.c.b16 %v2973, %v2969
    %v3898 = vpack.c.b16 %v2974, %v2970
    %v3899 = vpack.c.b16 %v2975, %v2971
    %v3900 = vpack.c.b16 %v2980, %v2976
    %v3901 = vpack.c.b16 %v2981, %v2977
    %v3902 = vpack.c.b16 %v2982, %v2978
    %v3903 = vpack.c.b16 %v2983, %v2979
    %v3904 = vpack.c.b16 %v2988, %v2984
    %v3905 = vpack.c.b16 %v2989, %v2985
    %v3906 = vpack.c.b16 %v2990, %v2986
    %v3907 = vpack.c.b16 %v2991, %v2987
    %v3908 = vpack.c.b16 %v2996, %v2992
    %v3909 = vpack.c.b16 %v2997, %v2993
    %v3910 = vpack.c.b16 %v2998, %v2994
    %v3911 = vpack.c.b16 %v2999, %v2995
    %v3912 = vpack.c.b16 %v3004, %v3000
    %v3913 = vpack.c.b16 %v3005, %v3001
    %v3914 = vpack.c.b16 %v3006, %v3002
    %v3915 = vpack.c.b16 %v3007, %v3003
    %v3916 = vpack.c.b16 %v3012, %v3008
    %v3917 = vpack.c.b16 %v3013, %v3009
    %v3918 = vpack.c.b16 %v3014, %v3010
    %v3919 = vpack.c.b16 %v3015, %v3011
    %v3920 = vpack.c.b16 %v3020, %v3016
    %v3921 = vpack.c.b16 %v3021, %v3017
    %v3922 = vpack.c.b16 %v3022, %v3018
    %v3923 = vpack.c.b16 %v3023, %v3019
    %v3924 = vpack.c.b16 %v3028, %v3024
    %v3925 = vpack.c.b16 %v3029, %v3025
    %v3926 = vpack.c.b16 %v3030, %v3026
    %v3927 = vpack.c.b16 %v3031, %v3027
    %v3928 = vpack.c.b16 %v3036, %v3032
    %v3929 = vpack.c.b16 %v3037, %v3033
    %v3930 = vpack.c.b16 %v3038, %v3034
    %v3931 = vpack.c.b16 %v3039, %v3035
    %v3932 = vpack.c.b16 %v3044, %v3040
    %v3933 = vpack.c.b16 %v3045, %v3041
    %v3934 = vpack.c.b16 %v3046, %v3042
    %v3935 = vpack.c.b16 %v3047, %v3043
    %v3936 = vpack.c.b16 %v3052, %v3048
    %v3937 = vpack.c.b16 %v3053, %v3049
    %v3938 = vpack.c.b16 %v3054, %v3050
    %v3939 = vpack.c.b16 %v3055, %v3051
    %v3940 = vpack.c.b16 %v3060, %v3056
    %v3941 = vpack.c.b16 %v3061, %v3057
    %v3942 = vpack.c.b16 %v3062, %v3058
    %v3943 = vpack.c.b16 %v3063, %v3059
    %v3944 = vpack.c.b16 %v3068, %v3064
    %v3945 = vpack.c.b16 %v3069, %v3065
    %v3946 = vpack.c.b16 %v3070, %v3066
    %v3947 = vpack.c.b16 %v3071, %v3067
    %v3948 = vpack.c.b16 %v3076, %v3072
    %v3949 = vpack.c.b16 %v3077, %v3073
    %v3950 = vpack.c.b16 %v3078, %v3074
    %v3951 = vpack.c.b16 %v3079, %v3075
    %v3952 = vpack.c.b16 %v3084, %v3080
    %v3953 = vpack.c.b16 %v3085, %v3081
    %v3954 = vpack.c.b16 %v3086, %v3082
    %v3955 = vpack.c.b16 %v3087, %v3083
    %v3956 = vpack.c.b16 %v3092, %v3088
    %v3957 = vpack.c.b16 %v3093, %v3089
    %v3958 = vpack.c.b16 %v3094, %v3090
    %v3959 = vpack.c.b16 %v3095, %v3091
    %v3960 = vpack.c.b16 %v3100, %v3096
    %v3961 = vpack.c.b16 %v3101, %v3097
    %v3962 = vpack.c.b16 %v3102, %v3098
    %v3963 = vpack.c.b16 %v3103, %v3099
    %v3964 = vpack.c.b16 %v3108, %v3104
    %v3965 = vpack.c.b16 %v3109, %v3105
    %v3966 = vpack.c.b16 %v3110, %v3106
    %v3967 = vpack.c.b16 %v3111, %v3107
    %v3968 = vpack.c.b16 %v3116, %v3112
    %v3969 = vpack.c.b16 %v3117, %v3113
    %v3970 = vpack.c.b16 %v3118, %v3114
    %v3971 = vpack.c.b16 %v3119, %v3115
    %v3972 = vpack.c.b16 %v3124, %v3120
    %v3973 = vpack.c.b16 %v3125, %v3121
    %v3974 = vpack.c.b16 %v3126, %v3122
    %v3975 = vpack.c.b16 %v3127, %v3123
    %v3976 = vpack.c.b16 %v3132, %v3128
    %v3977 = vpack.c.b16 %v3133, %v3129
    %v3978 = vpack.c.b16 %v3134, %v3130
    %v3979 = vpack.c.b16 %v3135, %v3131
    %v3980 = vpack.c.b16 %v3140, %v3136
    %v3981 = vpack.c.b16 %v3141, %v3137
    %v3982 = vpack.c.b16 %v3142, %v3138
    %v3983 = vpack.c.b16 %v3143, %v3139
    %v3984 = vpack.c.b16 %v3148, %v3144
    %v3985 = vpack.c.b16 %v3149, %v3145
    %v3986 = vpack.c.b16 %v3150, %v3146
    %v3987 = vpack.c.b16 %v3151, %v3147
    %v3988 = vpack.c.b16 %v3156, %v3152
    %v3989 = vpack.c.b16 %v3157, %v3153
    %v3990 = vpack.c.b16 %v3158, %v3154
    %v3991 = vpack.c.b16 %v3159, %v3155
    %v3992 = vpack.c.b16 %v3164, %v3160
    %v3993 = vpack.c.b16 %v3165, %v3161
    %v3994 = vpack.c.b16 %v3166, %v3162
    %v3995 = vpack.c.b16 %v3167, %v3163
    %v3996 = vpack.c.b16 %v3172, %v3168
    %v3997 = vpack.c.b16 %v3173, %v3169
    %v3998 = vpack.c.b16 %v3174, %v3170
    %v3999 = vpack.c.b16 %v3175, %v3171
    %v4000 = vpack.c.b16 %v3180, %v3176
    %v4001 = vpack.c.b16 %v3181, %v3177
    %v4002 = vpack.c.b16 %v3182, %v3178
    %v4003 = vpack.c.b16 %v3183, %v3179
    %v4004 = vpack.c.b16 %v3188, %v3184
    %v4005 = vpack.c.b16 %v3189, %v3185
    %v4006 = vpack.c.b16 %v3190, %v3186
    %v4007 = vpack.c.b16 %v3191, %v3187
    %v4008 = vpack.c.b16 %v3196, %v3192
    %v4009 = vpack.c.b16 %v3197, %v3193
    %v4010 = vpack.c.b16 %v3198, %v3194
    %v4011 = vpack.c.b16 %v3199, %v3195
    %v4012 = vpack.c.b16 %v3204, %v3200
    %v4013 = vpack.c.b16 %v3205, %v3201
    %v4014 = vpack.c.b16 %v3206, %v3202
    %v4015 = vpack.c.b16 %v3207, %v3203
    %v4016 = vpack.c.b16 %v3212, %v3208
    %v4017 = vpack.c.b16 %v3213, %v3209
    %v4018 = vpack.c.b16 %v3214, %v3210
    %v4019 = vpack.c.b16 %v3215, %v3211
    %v4020 = vpack.c.b16 %v3220, %v3216
    %v4021 = vpack.c.b16 %v3221, %v3217
    %v4022 = vpack.c.b16 %v3222, %v3218
    %v4023 = vpack.c.b16 %v3223, %v3219
    %v4024 = vpack.c.b16 %v3228, %v3224
    %v4025 = vpack.c.b16 %v3229, %v3225
    %v4026 = vpack.c.b16 %v3230, %v3226
    %v4027 = vpack.c.b16 %v3231, %v3227
    %v4028 = vpack.c.b16 %v3236, %v3232
    %v4029 = vpack.c.b16 %v3237, %v3233
    %v4030 = vpack.c.b16 %v3238, %v3234
    %v4031 = vpack.c.b16 %v3239, %v3235
    %v4032 = vpack.c.b16 %v3244, %v3240
    %v4033 = vpack.c.b16 %v3245, %v3241
    %v4034 = vpack.c.b16 %v3246, %v3242
    %v4035 = vpack.c.b16 %v3247, %v3243
    %v4036 = vpack.c.b16 %v3252, %v3248
    %v4037 = vpack.c.b16 %v3253, %v3249
    %v4038 = vpack.c.b16 %v3254, %v3250
    %v4039 = vpack.c.b16 %v3255, %v3251
    %v4040 = vpack.c.b16 %v3260, %v3256
    %v4041 = vpack.c.b16 %v3261, %v3257
    %v4042 = vpack.c.b16 %v3262, %v3258
    %v4043 = vpack.c.b16 %v3263, %v3259
    %v4044 = vpack.c.b16 %v3268, %v3264
    %v4045 = vpack.c.b16 %v3269, %v3265
    %v4046 = vpack.c.b16 %v3270, %v3266
    %v4047 = vpack.c.b16 %v3271, %v3267
    %v4048 = vpack.c.b16 %v3276, %v3272
    %v4049 = vpack.c.b16 %v3277, %v3273
    %v4050 = vpack.c.b16 %v3278, %v3274
    %v4051 = vpack.c.b16 %v3279, %v3275
    %v4052 = vpack.c.b16 %v3284, %v3280
    %v4053 = vpack.c.b16 %v3285, %v3281
    %v4054 = vpack.c.b16 %v3286, %v3282
    %v4055 = vpack.c.b16 %v3287, %v3283
    %4824 = vmatprep.subr.bf16.mxu0 %v3289
    %4825 = vmatpush1.bf16.msra.mxu0 %v3288
    %4826 = vmatprep.subr.bf16.mxu0 %v3293
    %4827 = vmatpush1.bf16.msra.mxu0 %v3292
    %4828 = vmatprep.subr.bf16.mxu0 %v3297
    %4829 = vmatpush1.bf16.msra.mxu0 %v3296
    %4830 = vmatprep.subr.bf16.mxu0 %v3301
    %4831 = vmatpush1.bf16.msra.mxu0 %v3300
    %4832 = vmatprep.subr.bf16.mxu0 %v3305
    %4833 = vmatpush1.bf16.msra.mxu0 %v3304
    %4834 = vmatprep.subr.bf16.mxu0 %v3309
    %4835 = vmatpush1.bf16.msra.mxu0 %v3308
    %4836 = vmatprep.subr.bf16.mxu0 %v3313
    %4837 = vmatpush1.bf16.msra.mxu0 %v3312
    %4838 = vmatprep.subr.bf16.mxu0 %v3317
    %4839 = vmatpush1.bf16.msra.mxu0 %v3316
    %4840 = vmatprep.subr.bf16.mxu0 %v3321
    %4841 = vmatpush1.bf16.msra.mxu0 %v3320
    %4842 = vmatprep.subr.bf16.mxu0 %v3325
    %4843 = vmatpush1.bf16.msra.mxu0 %v3324
    %4844 = vmatprep.subr.bf16.mxu0 %v3329
    %4845 = vmatpush1.bf16.msra.mxu0 %v3328
    %4846 = vmatprep.subr.bf16.mxu0 %v3333
    %4847 = vmatpush1.bf16.msra.mxu0 %v3332
    %4848 = vmatprep.subr.bf16.mxu0 %v3337
    %4849 = vmatpush1.bf16.msra.mxu0 %v3336
    %4850 = vmatprep.subr.bf16.mxu0 %v3341
    %4851 = vmatpush1.bf16.msra.mxu0 %v3340
    %4852 = vmatprep.subr.bf16.mxu0 %v3345
    %4853 = vmatpush1.bf16.msra.mxu0 %v3344
    %4854 = vmatprep.subr.bf16.mxu0 %v3349
    %4855 = vmatpush1.bf16.msra.mxu0 %v3348
    %4856 = vmatprep.mubr.bf16.mxu0 %v192
    %4857 = vmatmul.mubr.bf16.gmra.mrb[0].mxu0 %v191
    %v4858 = vpop.f32.mrb[0].mxu0
    %v4859 = vadd.f32 0.0, %v4858
    %v4860 = vpop.f32.mrb[0].mxu0
    %v4861 = vadd.f32 0.0, %v4860
    %v4862 = vpop.f32.mrb[0].mxu0
    %v4863 = vpop.f32.mrb[0].mxu0
    %4864 = vdwg.mxu0
    %4865 = vmatprep.subr.bf16.mxu0 %v3353
    %4866 = vmatpush1.bf16.msra.mxu0 %v3352
    %4867 = vmatprep.subr.bf16.mxu0 %v3357
    %4868 = vmatpush1.bf16.msra.mxu0 %v3356
    %4869 = vmatprep.subr.bf16.mxu0 %v3361
    %4870 = vmatpush1.bf16.msra.mxu0 %v3360
    %4871 = vmatprep.subr.bf16.mxu0 %v3365
    %4872 = vmatpush1.bf16.msra.mxu0 %v3364
    %4873 = vmatprep.subr.bf16.mxu0 %v3369
    %4874 = vmatpush1.bf16.msra.mxu0 %v3368
    %4875 = vmatprep.subr.bf16.mxu0 %v3373
    %4876 = vmatpush1.bf16.msra.mxu0 %v3372
    %4877 = vmatprep.subr.bf16.mxu0 %v3377
    %4878 = vmatpush1.bf16.msra.mxu0 %v3376
    %4879 = vmatprep.subr.bf16.mxu0 %v3381
    %4880 = vmatpush1.bf16.msra.mxu0 %v3380
    %4881 = vmatprep.subr.bf16.mxu0 %v3385
    %4882 = vmatpush1.bf16.msra.mxu0 %v3384
    %4883 = vmatprep.subr.bf16.mxu0 %v3389
    %4884 = vmatpush1.bf16.msra.mxu0 %v3388
    %4885 = vmatprep.subr.bf16.mxu0 %v3393
    %4886 = vmatpush1.bf16.msra.mxu0 %v3392
    %4887 = vmatprep.subr.bf16.mxu0 %v3397
    %4888 = vmatpush1.bf16.msra.mxu0 %v3396
    %4889 = vmatprep.subr.bf16.mxu0 %v3401
    %4890 = vmatpush1.bf16.msra.mxu0 %v3400
    %4891 = vmatprep.subr.bf16.mxu0 %v3405
    %4892 = vmatpush1.bf16.msra.mxu0 %v3404
    %4893 = vmatprep.subr.bf16.mxu0 %v3409
    %4894 = vmatpush1.bf16.msra.mxu0 %v3408
    %4895 = vmatprep.subr.bf16.mxu0 %v3413
    %4896 = vmatpush1.bf16.msra.mxu0 %v3412
    %4897 = vmatprep.mubr.bf16.mxu0 %v194
    %4898 = vmatmul.mubr.bf16.gmra.mrb[0].mxu0 %v193
    %v4899 = vpop.f32.mrb[0].mxu0
    %v4900 = vadd.f32 %v4859, %v4899
    %v4901 = vpop.f32.mrb[0].mxu0
    %v4902 = vadd.f32 %v4861, %v4901
    %v4903 = vpop.f32.mrb[0].mxu0
    %v4904 = vpop.f32.mrb[0].mxu0
    %4905 = vdwg.mxu0
    %4906 = vmatprep.subr.bf16.mxu0 %v3417
    %4907 = vmatpush1.bf16.msra.mxu0 %v3416
    %4908 = vmatprep.subr.bf16.mxu0 %v3421
    %4909 = vmatpush1.bf16.msra.mxu0 %v3420
    %4910 = vmatprep.subr.bf16.mxu0 %v3425
    %4911 = vmatpush1.bf16.msra.mxu0 %v3424
    %4912 = vmatprep.subr.bf16.mxu0 %v3429
    %4913 = vmatpush1.bf16.msra.mxu0 %v3428
    %4914 = vmatprep.subr.bf16.mxu0 %v3433
    %4915 = vmatpush1.bf16.msra.mxu0 %v3432
    %4916 = vmatprep.subr.bf16.mxu0 %v3437
    %4917 = vmatpush1.bf16.msra.mxu0 %v3436
    %4918 = vmatprep.subr.bf16.mxu0 %v3441
    %4919 = vmatpush1.bf16.msra.mxu0 %v3440
    %4920 = vmatprep.subr.bf16.mxu0 %v3445
    %4921 = vmatpush1.bf16.msra.mxu0 %v3444
    %4922 = vmatprep.subr.bf16.mxu0 %v3449
    %4923 = vmatpush1.bf16.msra.mxu0 %v3448
    %4924 = vmatprep.subr.bf16.mxu0 %v3453
    %4925 = vmatpush1.bf16.msra.mxu0 %v3452
    %4926 = vmatprep.subr.bf16.mxu0 %v3457
    %4927 = vmatpush1.bf16.msra.mxu0 %v3456
    %4928 = vmatprep.subr.bf16.mxu0 %v3461
    %4929 = vmatpush1.bf16.msra.mxu0 %v3460
    %4930 = vmatprep.subr.bf16.mxu0 %v3465
    %4931 = vmatpush1.bf16.msra.mxu0 %v3464
    %4932 = vmatprep.subr.bf16.mxu0 %v3469
    %4933 = vmatpush1.bf16.msra.mxu0 %v3468
    %4934 = vmatprep.subr.bf16.mxu0 %v3473
    %4935 = vmatpush1.bf16.msra.mxu0 %v3472
    %4936 = vmatprep.subr.bf16.mxu0 %v3477
    %4937 = vmatpush1.bf16.msra.mxu0 %v3476
    %4938 = vmatprep.mubr.bf16.mxu0 %v196
    %4939 = vmatmul.mubr.bf16.gmra.mrb[0].mxu0 %v195
    %v4940 = vpop.f32.mrb[0].mxu0
    %v4941 = vadd.f32 %v4900, %v4940
    %v4942 = vpop.f32.mrb[0].mxu0
    %v4943 = vadd.f32 %v4902, %v4942
    %v4944 = vpop.f32.mrb[0].mxu0
    %v4945 = vpop.f32.mrb[0].mxu0
    %4946 = vdwg.mxu0
    %4947 = vmatprep.subr.bf16.mxu0 %v3481
    %4948 = vmatpush1.bf16.msra.mxu0 %v3480
    %4949 = vmatprep.subr.bf16.mxu0 %v3485
    %4950 = vmatpush1.bf16.msra.mxu0 %v3484
    %4951 = vmatprep.subr.bf16.mxu0 %v3489
    %4952 = vmatpush1.bf16.msra.mxu0 %v3488
    %4953 = vmatprep.subr.bf16.mxu0 %v3493
    %4954 = vmatpush1.bf16.msra.mxu0 %v3492
    %4955 = vmatprep.subr.bf16.mxu0 %v3497
    %4956 = vmatpush1.bf16.msra.mxu0 %v3496
    %4957 = vmatprep.subr.bf16.mxu0 %v3501
    %4958 = vmatpush1.bf16.msra.mxu0 %v3500
    %4959 = vmatprep.subr.bf16.mxu0 %v3505
    %4960 = vmatpush1.bf16.msra.mxu0 %v3504
    %4961 = vmatprep.subr.bf16.mxu0 %v3509
    %4962 = vmatpush1.bf16.msra.mxu0 %v3508
    %4963 = vmatprep.subr.bf16.mxu0 %v3513
    %4964 = vmatpush1.bf16.msra.mxu0 %v3512
    %4965 = vmatprep.subr.bf16.mxu0 %v3517
    %4966 = vmatpush1.bf16.msra.mxu0 %v3516
    %4967 = vmatprep.subr.bf16.mxu0 %v3521
    %4968 = vmatpush1.bf16.msra.mxu0 %v3520
    %4969 = vmatprep.subr.bf16.mxu0 %v3525
    %4970 = vmatpush1.bf16.msra.mxu0 %v3524
    %4971 = vmatprep.subr.bf16.mxu0 %v3529
    %4972 = vmatpush1.bf16.msra.mxu0 %v3528
    %4973 = vmatprep.subr.bf16.mxu0 %v3533
    %4974 = vmatpush1.bf16.msra.mxu0 %v3532
    %4975 = vmatprep.subr.bf16.mxu0 %v3537
    %4976 = vmatpush1.bf16.msra.mxu0 %v3536
    %4977 = vmatprep.subr.bf16.mxu0 %v3541
    %4978 = vmatpush1.bf16.msra.mxu0 %v3540
    %4979 = vmatprep.mubr.bf16.mxu0 %v198
    %4980 = vmatmul.mubr.bf16.gmra.mrb[0].mxu0 %v197
    %v4981 = vpop.f32.mrb[0].mxu0
    %v4982 = vadd.f32 %v4941, %v4981
    %v4983 = vpop.f32.mrb[0].mxu0
    %v4984 = vadd.f32 %v4943, %v4983
    %v4985 = vpop.f32.mrb[0].mxu0
    %v4986 = vpop.f32.mrb[0].mxu0
    %4987 = vdwg.mxu0
    %4988 = vmatprep.subr.bf16.mxu0 %v3545
    %4989 = vmatpush1.bf16.msra.mxu0 %v3544
    %4990 = vmatprep.subr.bf16.mxu0 %v3549
    %4991 = vmatpush1.bf16.msra.mxu0 %v3548
    %4992 = vmatprep.subr.bf16.mxu0 %v3553
    %4993 = vmatpush1.bf16.msra.mxu0 %v3552
    %4994 = vmatprep.subr.bf16.mxu0 %v3557
    %4995 = vmatpush1.bf16.msra.mxu0 %v3556
    %4996 = vmatprep.subr.bf16.mxu0 %v3561
    %4997 = vmatpush1.bf16.msra.mxu0 %v3560
    %4998 = vmatprep.subr.bf16.mxu0 %v3565
    %4999 = vmatpush1.bf16.msra.mxu0 %v3564
    %5000 = vmatprep.subr.bf16.mxu0 %v3569
    %5001 = vmatpush1.bf16.msra.mxu0 %v3568
    %5002 = vmatprep.subr.bf16.mxu0 %v3573
    %5003 = vmatpush1.bf16.msra.mxu0 %v3572
    %5004 = vmatprep.subr.bf16.mxu0 %v3577
    %5005 = vmatpush1.bf16.msra.mxu0 %v3576
    %5006 = vmatprep.subr.bf16.mxu0 %v3581
    %5007 = vmatpush1.bf16.msra.mxu0 %v3580
    %5008 = vmatprep.subr.bf16.mxu0 %v3585
    %5009 = vmatpush1.bf16.msra.mxu0 %v3584
    %5010 = vmatprep.subr.bf16.mxu0 %v3589
    %5011 = vmatpush1.bf16.msra.mxu0 %v3588
    %5012 = vmatprep.subr.bf16.mxu0 %v3593
    %5013 = vmatpush1.bf16.msra.mxu0 %v3592
    %5014 = vmatprep.subr.bf16.mxu0 %v3597
    %5015 = vmatpush1.bf16.msra.mxu0 %v3596
    %5016 = vmatprep.subr.bf16.mxu0 %v3601
    %5017 = vmatpush1.bf16.msra.mxu0 %v3600
    %5018 = vmatprep.subr.bf16.mxu0 %v3605
    %5019 = vmatpush1.bf16.msra.mxu0 %v3604
    %5020 = vmatprep.mubr.bf16.mxu0 %v200
    %5021 = vmatmul.mubr.bf16.gmra.mrb[0].mxu0 %v199
    %v5022 = vpop.f32.mrb[0].mxu0
    %v5023 = vadd.f32 %v4982, %v5022
    %v5024 = vpop.f32.mrb[0].mxu0
    %v5025 = vadd.f32 %v4984, %v5024
    %v5026 = vpop.f32.mrb[0].mxu0
    %v5027 = vpop.f32.mrb[0].mxu0
    %5028 = vdwg.mxu0
    %5029 = vmatprep.subr.bf16.mxu0 %v3609
    %5030 = vmatpush1.bf16.msra.mxu0 %v3608
    %5031 = vmatprep.subr.bf16.mxu0 %v3613
    %5032 = vmatpush1.bf16.msra.mxu0 %v3612
    %5033 = vmatprep.subr.bf16.mxu0 %v3617
    %5034 = vmatpush1.bf16.msra.mxu0 %v3616
    %5035 = vmatprep.subr.bf16.mxu0 %v3621
    %5036 = vmatpush1.bf16.msra.mxu0 %v3620
    %5037 = vmatprep.subr.bf16.mxu0 %v3625
    %5038 = vmatpush1.bf16.msra.mxu0 %v3624
    %5039 = vmatprep.subr.bf16.mxu0 %v3629
    %5040 = vmatpush1.bf16.msra.mxu0 %v3628
    %5041 = vmatprep.subr.bf16.mxu0 %v3633
    %5042 = vmatpush1.bf16.msra.mxu0 %v3632
    %5043 = vmatprep.subr.bf16.mxu0 %v3637
    %5044 = vmatpush1.bf16.msra.mxu0 %v3636
    %5045 = vmatprep.subr.bf16.mxu0 %v3641
    %5046 = vmatpush1.bf16.msra.mxu0 %v3640
    %5047 = vmatprep.subr.bf16.mxu0 %v3645
    %5048 = vmatpush1.bf16.msra.mxu0 %v3644
    %5049 = vmatprep.subr.bf16.mxu0 %v3649
    %5050 = vmatpush1.bf16.msra.mxu0 %v3648
    %5051 = vmatprep.subr.bf16.mxu0 %v3653
    %5052 = vmatpush1.bf16.msra.mxu0 %v3652
    %5053 = vmatprep.subr.bf16.mxu0 %v3657
    %5054 = vmatpush1.bf16.msra.mxu0 %v3656
    %5055 = vmatprep.subr.bf16.mxu0 %v3661
    %5056 = vmatpush1.bf16.msra.mxu0 %v3660
    %5057 = vmatprep.subr.bf16.mxu0 %v3665
    %5058 = vmatpush1.bf16.msra.mxu0 %v3664
    %5059 = vmatprep.subr.bf16.mxu0 %v3669
    %5060 = vmatpush1.bf16.msra.mxu0 %v3668
    %5061 = vmatprep.mubr.bf16.mxu0 %v202
    %5062 = vmatmul.mubr.bf16.gmra.mrb[0].mxu0 %v201
    %v5063 = vpop.f32.mrb[0].mxu0
    %v5064 = vadd.f32 %v5023, %v5063
    %v5065 = vpop.f32.mrb[0].mxu0
    %v5066 = vadd.f32 %v5025, %v5065
    %v5067 = vpop.f32.mrb[0].mxu0
    %v5068 = vpop.f32.mrb[0].mxu0
    %5069 = vdwg.mxu0
    %5070 = vmatprep.subr.bf16.mxu0 %v3673
    %5071 = vmatpush1.bf16.msra.mxu0 %v3672
    %5072 = vmatprep.subr.bf16.mxu0 %v3677
    %5073 = vmatpush1.bf16.msra.mxu0 %v3676
    %5074 = vmatprep.subr.bf16.mxu0 %v3681
    %5075 = vmatpush1.bf16.msra.mxu0 %v3680
    %5076 = vmatprep.subr.bf16.mxu0 %v3685
    %5077 = vmatpush1.bf16.msra.mxu0 %v3684
    %5078 = vmatprep.subr.bf16.mxu0 %v3689
    %5079 = vmatpush1.bf16.msra.mxu0 %v3688
    %5080 = vmatprep.subr.bf16.mxu0 %v3693
    %5081 = vmatpush1.bf16.msra.mxu0 %v3692
    %5082 = vmatprep.subr.bf16.mxu0 %v3697
    %5083 = vmatpush1.bf16.msra.mxu0 %v3696
    %5084 = vmatprep.subr.bf16.mxu0 %v3701
    %5085 = vmatpush1.bf16.msra.mxu0 %v3700
    %5086 = vmatprep.subr.bf16.mxu0 %v3705
    %5087 = vmatpush1.bf16.msra.mxu0 %v3704
    %5088 = vmatprep.subr.bf16.mxu0 %v3709
    %5089 = vmatpush1.bf16.msra.mxu0 %v3708
    %5090 = vmatprep.subr.bf16.mxu0 %v3713
    %5091 = vmatpush1.bf16.msra.mxu0 %v3712
    %5092 = vmatprep.subr.bf16.mxu0 %v3717
    %5093 = vmatpush1.bf16.msra.mxu0 %v3716
    %5094 = vmatprep.subr.bf16.mxu0 %v3721
    %5095 = vmatpush1.bf16.msra.mxu0 %v3720
    %5096 = vmatprep.subr.bf16.mxu0 %v3725
    %5097 = vmatpush1.bf16.msra.mxu0 %v3724
    %5098 = vmatprep.subr.bf16.mxu0 %v3729
    %5099 = vmatpush1.bf16.msra.mxu0 %v3728
    %5100 = vmatprep.subr.bf16.mxu0 %v3733
    %5101 = vmatpush1.bf16.msra.mxu0 %v3732
    %5102 = vmatprep.mubr.bf16.mxu0 %v204
    %5103 = vmatmul.mubr.bf16.gmra.mrb[0].mxu0 %v203
    %v5104 = vpop.f32.mrb[0].mxu0
    %v5105 = vadd.f32 %v5064, %v5104
    %v5106 = vpop.f32.mrb[0].mxu0
    %v5107 = vadd.f32 %v5066, %v5106
    %v5108 = vpop.f32.mrb[0].mxu0
    %v5109 = vpop.f32.mrb[0].mxu0
    %5110 = vdwg.mxu0
    %5111 = vmatprep.subr.bf16.mxu0 %v3737
    %5112 = vmatpush1.bf16.msra.mxu0 %v3736
    %5113 = vmatprep.subr.bf16.mxu0 %v3741
    %5114 = vmatpush1.bf16.msra.mxu0 %v3740
    %5115 = vmatprep.subr.bf16.mxu0 %v3745
    %5116 = vmatpush1.bf16.msra.mxu0 %v3744
    %5117 = vmatprep.subr.bf16.mxu0 %v3749
    %5118 = vmatpush1.bf16.msra.mxu0 %v3748
    %5119 = vmatprep.subr.bf16.mxu0 %v3753
    %5120 = vmatpush1.bf16.msra.mxu0 %v3752
    %5121 = vmatprep.subr.bf16.mxu0 %v3757
    %5122 = vmatpush1.bf16.msra.mxu0 %v3756
    %5123 = vmatprep.subr.bf16.mxu0 %v3761
    %5124 = vmatpush1.bf16.msra.mxu0 %v3760
    %5125 = vmatprep.subr.bf16.mxu0 %v3765
    %5126 = vmatpush1.bf16.msra.mxu0 %v3764
    %5127 = vmatprep.subr.bf16.mxu0 %v3769
    %5128 = vmatpush1.bf16.msra.mxu0 %v3768
    %5129 = vmatprep.subr.bf16.mxu0 %v3773
    %5130 = vmatpush1.bf16.msra.mxu0 %v3772
    %5131 = vmatprep.subr.bf16.mxu0 %v3777
    %5132 = vmatpush1.bf16.msra.mxu0 %v3776
    %5133 = vmatprep.subr.bf16.mxu0 %v3781
    %5134 = vmatpush1.bf16.msra.mxu0 %v3780
    %5135 = vmatprep.subr.bf16.mxu0 %v3785
    %5136 = vmatpush1.bf16.msra.mxu0 %v3784
    %5137 = vmatprep.subr.bf16.mxu0 %v3789
    %5138 = vmatpush1.bf16.msra.mxu0 %v3788
    %5139 = vmatprep.subr.bf16.mxu0 %v3793
    %5140 = vmatpush1.bf16.msra.mxu0 %v3792
    %5141 = vmatprep.subr.bf16.mxu0 %v3797
    %5142 = vmatpush1.bf16.msra.mxu0 %v3796
    %5143 = vmatprep.mubr.bf16.mxu0 %v206
    %5144 = vmatmul.mubr.bf16.gmra.mrb[0].mxu0 %v205
    %v5145 = vpop.f32.mrb[0].mxu0
    %v5146 = vadd.f32 %v5105, %v5145
    %v5147 = vpop.f32.mrb[0].mxu0
    %v5148 = vadd.f32 %v5107, %v5147
    %v5149 = vpop.f32.mrb[0].mxu0
    %v5150 = vpop.f32.mrb[0].mxu0
    %5151 = vdwg.mxu0
    %5152 = vmatprep.subr.bf16.mxu0 %v3801
    %5153 = vmatpush1.bf16.msra.mxu0 %v3800
    %5154 = vmatprep.subr.bf16.mxu0 %v3805
    %5155 = vmatpush1.bf16.msra.mxu0 %v3804
    %5156 = vmatprep.subr.bf16.mxu0 %v3809
    %5157 = vmatpush1.bf16.msra.mxu0 %v3808
    %5158 = vmatprep.subr.bf16.mxu0 %v3813
    %5159 = vmatpush1.bf16.msra.mxu0 %v3812
    %5160 = vmatprep.subr.bf16.mxu0 %v3817
    %5161 = vmatpush1.bf16.msra.mxu0 %v3816
    %5162 = vmatprep.subr.bf16.mxu0 %v3821
    %5163 = vmatpush1.bf16.msra.mxu0 %v3820
    %5164 = vmatprep.subr.bf16.mxu0 %v3825
    %5165 = vmatpush1.bf16.msra.mxu0 %v3824
    %5166 = vmatprep.subr.bf16.mxu0 %v3829
    %5167 = vmatpush1.bf16.msra.mxu0 %v3828
    %5168 = vmatprep.subr.bf16.mxu0 %v3833
    %5169 = vmatpush1.bf16.msra.mxu0 %v3832
    %5170 = vmatprep.subr.bf16.mxu0 %v3837
    %5171 = vmatpush1.bf16.msra.mxu0 %v3836
    %5172 = vmatprep.subr.bf16.mxu0 %v3841
    %5173 = vmatpush1.bf16.msra.mxu0 %v3840
    %5174 = vmatprep.subr.bf16.mxu0 %v3845
    %5175 = vmatpush1.bf16.msra.mxu0 %v3844
    %5176 = vmatprep.subr.bf16.mxu0 %v3849
    %5177 = vmatpush1.bf16.msra.mxu0 %v3848
    %5178 = vmatprep.subr.bf16.mxu0 %v3853
    %5179 = vmatpush1.bf16.msra.mxu0 %v3852
    %5180 = vmatprep.subr.bf16.mxu0 %v3857
    %5181 = vmatpush1.bf16.msra.mxu0 %v3856
    %5182 = vmatprep.subr.bf16.mxu0 %v3861
    %5183 = vmatpush1.bf16.msra.mxu0 %v3860
    %5184 = vmatprep.mubr.bf16.mxu0 %v208
    %5185 = vmatmul.mubr.bf16.gmra.mrb[0].mxu0 %v207
    %v5186 = vpop.f32.mrb[0].mxu0
    %v5187 = vadd.f32 %v5146, %v5186
    %v5188 = vpop.f32.mrb[0].mxu0
    %v5189 = vadd.f32 %v5148, %v5188
    %v5190 = vpop.f32.mrb[0].mxu0
    %v5191 = vpop.f32.mrb[0].mxu0
    %5192 = vdwg.mxu0
    %5193 = vmatprep.subr.bf16.mxu0 %v3865
    %5194 = vmatpush1.bf16.msra.mxu0 %v3864
    %5195 = vmatprep.subr.bf16.mxu0 %v3869
    %5196 = vmatpush1.bf16.msra.mxu0 %v3868
    %5197 = vmatprep.subr.bf16.mxu0 %v3873
    %5198 = vmatpush1.bf16.msra.mxu0 %v3872
    %5199 = vmatprep.subr.bf16.mxu0 %v3877
    %5200 = vmatpush1.bf16.msra.mxu0 %v3876
    %5201 = vmatprep.subr.bf16.mxu0 %v3881
    %5202 = vmatpush1.bf16.msra.mxu0 %v3880
    %5203 = vmatprep.subr.bf16.mxu0 %v3885
    %5204 = vmatpush1.bf16.msra.mxu0 %v3884
    %5205 = vmatprep.subr.bf16.mxu0 %v3889
    %5206 = vmatpush1.bf16.msra.mxu0 %v3888
    %5207 = vmatprep.subr.bf16.mxu0 %v3893
    %5208 = vmatpush1.bf16.msra.mxu0 %v3892
    %5209 = vmatprep.subr.bf16.mxu0 %v3897
    %5210 = vmatpush1.bf16.msra.mxu0 %v3896
    %5211 = vmatprep.subr.bf16.mxu0 %v3901
    %5212 = vmatpush1.bf16.msra.mxu0 %v3900
    %5213 = vmatprep.subr.bf16.mxu0 %v3905
    %5214 = vmatpush1.bf16.msra.mxu0 %v3904
    %5215 = vmatprep.subr.bf16.mxu0 %v3909
    %5216 = vmatpush1.bf16.msra.mxu0 %v3908
    %5217 = vmatprep.subr.bf16.mxu0 %v3913
    %5218 = vmatpush1.bf16.msra.mxu0 %v3912
    %5219 = vmatprep.subr.bf16.mxu0 %v3917
    %5220 = vmatpush1.bf16.msra.mxu0 %v3916
    %5221 = vmatprep.subr.bf16.mxu0 %v3921
    %5222 = vmatpush1.bf16.msra.mxu0 %v3920
    %5223 = vmatprep.subr.bf16.mxu0 %v3925
    %5224 = vmatpush1.bf16.msra.mxu0 %v3924
    %5225 = vmatprep.mubr.bf16.mxu0 %v210
    %5226 = vmatmul.mubr.bf16.gmra.mrb[0].mxu0 %v209
    %v5227 = vpop.f32.mrb[0].mxu0
    %v5228 = vadd.f32 %v5187, %v5227
    %v5229 = vpop.f32.mrb[0].mxu0
    %v5230 = vadd.f32 %v5189, %v5229
    %v5231 = vpop.f32.mrb[0].mxu0
    %v5232 = vpop.f32.mrb[0].mxu0
    %5233 = vdwg.mxu0
    %5234 = vmatprep.subr.bf16.mxu0 %v3929
    %5235 = vmatpush1.bf16.msra.mxu0 %v3928
    %5236 = vmatprep.subr.bf16.mxu0 %v3933
    %5237 = vmatpush1.bf16.msra.mxu0 %v3932
    %5238 = vmatprep.subr.bf16.mxu0 %v3937
    %5239 = vmatpush1.bf16.msra.mxu0 %v3936
    %5240 = vmatprep.subr.bf16.mxu0 %v3941
    %5241 = vmatpush1.bf16.msra.mxu0 %v3940
    %5242 = vmatprep.subr.bf16.mxu0 %v3945
    %5243 = vmatpush1.bf16.msra.mxu0 %v3944
    %5244 = vmatprep.subr.bf16.mxu0 %v3949
    %5245 = vmatpush1.bf16.msra.mxu0 %v3948
    %5246 = vmatprep.subr.bf16.mxu0 %v3953
    %5247 = vmatpush1.bf16.msra.mxu0 %v3952
    %5248 = vmatprep.subr.bf16.mxu0 %v3957
    %5249 = vmatpush1.bf16.msra.mxu0 %v3956
    %5250 = vmatprep.subr.bf16.mxu0 %v3961
    %5251 = vmatpush1.bf16.msra.mxu0 %v3960
    %5252 = vmatprep.subr.bf16.mxu0 %v3965
    %5253 = vmatpush1.bf16.msra.mxu0 %v3964
    %5254 = vmatprep.subr.bf16.mxu0 %v3969
    %5255 = vmatpush1.bf16.msra.mxu0 %v3968
    %5256 = vmatprep.subr.bf16.mxu0 %v3973
    %5257 = vmatpush1.bf16.msra.mxu0 %v3972
    %5258 = vmatprep.subr.bf16.mxu0 %v3977
    %5259 = vmatpush1.bf16.msra.mxu0 %v3976
    %5260 = vmatprep.subr.bf16.mxu0 %v3981
    %5261 = vmatpush1.bf16.msra.mxu0 %v3980
    %5262 = vmatprep.subr.bf16.mxu0 %v3985
    %5263 = vmatpush1.bf16.msra.mxu0 %v3984
    %5264 = vmatprep.subr.bf16.mxu0 %v3989
    %5265 = vmatpush1.bf16.msra.mxu0 %v3988
    %5266 = vmatprep.mubr.bf16.mxu0 %v212
    %5267 = vmatmul.mubr.bf16.gmra.mrb[0].mxu0 %v211
    %v5268 = vpop.f32.mrb[0].mxu0
    %v5269 = vadd.f32 %v5228, %v5268
    %v5270 = vpop.f32.mrb[0].mxu0
    %v5271 = vadd.f32 %v5230, %v5270
    %v5272 = vpop.f32.mrb[0].mxu0
    %v5273 = vpop.f32.mrb[0].mxu0
    %5274 = vdwg.mxu0
    %5275 = vmatprep.subr.bf16.mxu0 %v3993
    %5276 = vmatpush1.bf16.msra.mxu0 %v3992
    %5277 = vmatprep.subr.bf16.mxu0 %v3997
    %5278 = vmatpush1.bf16.msra.mxu0 %v3996
    %5279 = vmatprep.subr.bf16.mxu0 %v4001
    %5280 = vmatpush1.bf16.msra.mxu0 %v4000
    %5281 = vmatprep.subr.bf16.mxu0 %v4005
    %5282 = vmatpush1.bf16.msra.mxu0 %v4004
    %5283 = vmatprep.subr.bf16.mxu0 %v4009
    %5284 = vmatpush1.bf16.msra.mxu0 %v4008
    %5285 = vmatprep.subr.bf16.mxu0 %v4013
    %5286 = vmatpush1.bf16.msra.mxu0 %v4012
    %5287 = vmatprep.subr.bf16.mxu0 %v4017
    %5288 = vmatpush1.bf16.msra.mxu0 %v4016
    %5289 = vmatprep.subr.bf16.mxu0 %v4021
    %5290 = vmatpush1.bf16.msra.mxu0 %v4020
    %5291 = vmatprep.subr.bf16.mxu0 %v4025
    %5292 = vmatpush1.bf16.msra.mxu0 %v4024
    %5293 = vmatprep.subr.bf16.mxu0 %v4029
    %5294 = vmatpush1.bf16.msra.mxu0 %v4028
    %5295 = vmatprep.subr.bf16.mxu0 %v4033
    %5296 = vmatpush1.bf16.msra.mxu0 %v4032
    %5297 = vmatprep.subr.bf16.mxu0 %v4037
    %5298 = vmatpush1.bf16.msra.mxu0 %v4036
    %5299 = vmatprep.subr.bf16.mxu0 %v4041
    %5300 = vmatpush1.bf16.msra.mxu0 %v4040
    %5301 = vmatprep.subr.bf16.mxu0 %v4045
    %5302 = vmatpush1.bf16.msra.mxu0 %v4044
    %5303 = vmatprep.subr.bf16.mxu0 %v4049
    %5304 = vmatpush1.bf16.msra.mxu0 %v4048
    %5305 = vmatprep.subr.bf16.mxu0 %v4053
    %5306 = vmatpush1.bf16.msra.mxu0 %v4052
    %5307 = vmatprep.mubr.bf16.mxu0 %v214
    %5308 = vmatmul.mubr.bf16.gmra.mrb[0].mxu0 %v213
    %v5309 = vpop.f32.mrb[0].mxu0
    %v5310 = vadd.f32 %v5269, %v5309
    %v5311 = vpop.f32.mrb[0].mxu0
    %v5312 = vadd.f32 %v5271, %v5311
    %v5313 = vpop.f32.mrb[0].mxu0
    %v5314 = vpop.f32.mrb[0].mxu0
    %5315 = vdwg.mxu0
    %5316 = vmatprep.subr.bf16.mxu0 %v3291
    %5317 = vmatpush1.bf16.msra.mxu0 %v3290
    %5318 = vmatprep.subr.bf16.mxu0 %v3295
    %5319 = vmatpush1.bf16.msra.mxu0 %v3294
    %5320 = vmatprep.subr.bf16.mxu0 %v3299
    %5321 = vmatpush1.bf16.msra.mxu0 %v3298
    %5322 = vmatprep.subr.bf16.mxu0 %v3303
    %5323 = vmatpush1.bf16.msra.mxu0 %v3302
    %5324 = vmatprep.subr.bf16.mxu0 %v3307
    %5325 = vmatpush1.bf16.msra.mxu0 %v3306
    %5326 = vmatprep.subr.bf16.mxu0 %v3311
    %5327 = vmatpush1.bf16.msra.mxu0 %v3310
    %5328 = vmatprep.subr.bf16.mxu0 %v3315
    %5329 = vmatpush1.bf16.msra.mxu0 %v3314
    %5330 = vmatprep.subr.bf16.mxu0 %v3319
    %5331 = vmatpush1.bf16.msra.mxu0 %v3318
    %5332 = vmatprep.subr.bf16.mxu0 %v3323
    %5333 = vmatpush1.bf16.msra.mxu0 %v3322
    %5334 = vmatprep.subr.bf16.mxu0 %v3327
    %5335 = vmatpush1.bf16.msra.mxu0 %v3326
    %5336 = vmatprep.subr.bf16.mxu0 %v3331
    %5337 = vmatpush1.bf16.msra.mxu0 %v3330
    %5338 = vmatprep.subr.bf16.mxu0 %v3335
    %5339 = vmatpush1.bf16.msra.mxu0 %v3334
    %5340 = vmatprep.subr.bf16.mxu0 %v3339
    %5341 = vmatpush1.bf16.msra.mxu0 %v3338
    %5342 = vmatprep.subr.bf16.mxu0 %v3343
    %5343 = vmatpush1.bf16.msra.mxu0 %v3342
    %5344 = vmatprep.subr.bf16.mxu0 %v3347
    %5345 = vmatpush1.bf16.msra.mxu0 %v3346
    %5346 = vmatprep.subr.bf16.mxu0 %v3351
    %5347 = vmatpush1.bf16.msra.mxu0 %v3350
    %5348 = vmatprep.mubr.bf16.mxu0 %v192
    %5349 = vmatmul.mubr.bf16.gmra.mrb[0].mxu0 %v191
    %v5350 = vpop.f32.mrb[0].mxu0
    %v5351 = vadd.f32 0.0, %v5350
    %v5352 = vpop.f32.mrb[0].mxu0
    %v5353 = vadd.f32 0.0, %v5352
    %v5354 = vpop.f32.mrb[0].mxu0
    %v5355 = vpop.f32.mrb[0].mxu0
    %5356 = vdwg.mxu0
    %5357 = vmatprep.subr.bf16.mxu0 %v3355
    %5358 = vmatpush1.bf16.msra.mxu0 %v3354
    %5359 = vmatprep.subr.bf16.mxu0 %v3359
    %5360 = vmatpush1.bf16.msra.mxu0 %v3358
    %5361 = vmatprep.subr.bf16.mxu0 %v3363
    %5362 = vmatpush1.bf16.msra.mxu0 %v3362
    %5363 = vmatprep.subr.bf16.mxu0 %v3367
    %5364 = vmatpush1.bf16.msra.mxu0 %v3366
    %5365 = vmatprep.subr.bf16.mxu0 %v3371
    %5366 = vmatpush1.bf16.msra.mxu0 %v3370
    %5367 = vmatprep.subr.bf16.mxu0 %v3375
    %5368 = vmatpush1.bf16.msra.mxu0 %v3374
    %5369 = vmatprep.subr.bf16.mxu0 %v3379
    %5370 = vmatpush1.bf16.msra.mxu0 %v3378
    %5371 = vmatprep.subr.bf16.mxu0 %v3383
    %5372 = vmatpush1.bf16.msra.mxu0 %v3382
    %5373 = vmatprep.subr.bf16.mxu0 %v3387
    %5374 = vmatpush1.bf16.msra.mxu0 %v3386
    %5375 = vmatprep.subr.bf16.mxu0 %v3391
    %5376 = vmatpush1.bf16.msra.mxu0 %v3390
    %5377 = vmatprep.subr.bf16.mxu0 %v3395
    %5378 = vmatpush1.bf16.msra.mxu0 %v3394
    %5379 = vmatprep.subr.bf16.mxu0 %v3399
    %5380 = vmatpush1.bf16.msra.mxu0 %v3398
    %5381 = vmatprep.subr.bf16.mxu0 %v3403
    %5382 = vmatpush1.bf16.msra.mxu0 %v3402
    %5383 = vmatprep.subr.bf16.mxu0 %v3407
    %5384 = vmatpush1.bf16.msra.mxu0 %v3406
    %5385 = vmatprep.subr.bf16.mxu0 %v3411
    %5386 = vmatpush1.bf16.msra.mxu0 %v3410
    %5387 = vmatprep.subr.bf16.mxu0 %v3415
    %5388 = vmatpush1.bf16.msra.mxu0 %v3414
    %5389 = vmatprep.mubr.bf16.mxu0 %v194
    %5390 = vmatmul.mubr.bf16.gmra.mrb[0].mxu0 %v193
    %v5391 = vpop.f32.mrb[0].mxu0
    %v5392 = vadd.f32 %v5351, %v5391
    %v5393 = vpop.f32.mrb[0].mxu0
    %v5394 = vadd.f32 %v5353, %v5393
    %v5395 = vpop.f32.mrb[0].mxu0
    %v5396 = vpop.f32.mrb[0].mxu0
    %5397 = vdwg.mxu0
    %5398 = vmatprep.subr.bf16.mxu0 %v3419
    %5399 = vmatpush1.bf16.msra.mxu0 %v3418
    %5400 = vmatprep.subr.bf16.mxu0 %v3423
    %5401 = vmatpush1.bf16.msra.mxu0 %v3422
    %5402 = vmatprep.subr.bf16.mxu0 %v3427
    %5403 = vmatpush1.bf16.msra.mxu0 %v3426
    %5404 = vmatprep.subr.bf16.mxu0 %v3431
    %5405 = vmatpush1.bf16.msra.mxu0 %v3430
    %5406 = vmatprep.subr.bf16.mxu0 %v3435
    %5407 = vmatpush1.bf16.msra.mxu0 %v3434
    %5408 = vmatprep.subr.bf16.mxu0 %v3439
    %5409 = vmatpush1.bf16.msra.mxu0 %v3438
    %5410 = vmatprep.subr.bf16.mxu0 %v3443
    %5411 = vmatpush1.bf16.msra.mxu0 %v3442
    %5412 = vmatprep.subr.bf16.mxu0 %v3447
    %5413 = vmatpush1.bf16.msra.mxu0 %v3446
    %5414 = vmatprep.subr.bf16.mxu0 %v3451
    %5415 = vmatpush1.bf16.msra.mxu0 %v3450
    %5416 = vmatprep.subr.bf16.mxu0 %v3455
    %5417 = vmatpush1.bf16.msra.mxu0 %v3454
    %5418 = vmatprep.subr.bf16.mxu0 %v3459
    %5419 = vmatpush1.bf16.msra.mxu0 %v3458
    %5420 = vmatprep.subr.bf16.mxu0 %v3463
    %5421 = vmatpush1.bf16.msra.mxu0 %v3462
    %5422 = vmatprep.subr.bf16.mxu0 %v3467
    %5423 = vmatpush1.bf16.msra.mxu0 %v3466
    %5424 = vmatprep.subr.bf16.mxu0 %v3471
    %5425 = vmatpush1.bf16.msra.mxu0 %v3470
    %5426 = vmatprep.subr.bf16.mxu0 %v3475
    %5427 = vmatpush1.bf16.msra.mxu0 %v3474
    %5428 = vmatprep.subr.bf16.mxu0 %v3479
    %5429 = vmatpush1.bf16.msra.mxu0 %v3478
    %5430 = vmatprep.mubr.bf16.mxu0 %v196
    %5431 = vmatmul.mubr.bf16.gmra.mrb[0].mxu0 %v195
    %v5432 = vpop.f32.mrb[0].mxu0
    %v5433 = vadd.f32 %v5392, %v5432
    %v5434 = vpop.f32.mrb[0].mxu0
    %v5435 = vadd.f32 %v5394, %v5434
    %v5436 = vpop.f32.mrb[0].mxu0
    %v5437 = vpop.f32.mrb[0].mxu0
    %5438 = vdwg.mxu0
    %5439 = vmatprep.subr.bf16.mxu0 %v3483
    %5440 = vmatpush1.bf16.msra.mxu0 %v3482
    %5441 = vmatprep.subr.bf16.mxu0 %v3487
    %5442 = vmatpush1.bf16.msra.mxu0 %v3486
    %5443 = vmatprep.subr.bf16.mxu0 %v3491
    %5444 = vmatpush1.bf16.msra.mxu0 %v3490
    %5445 = vmatprep.subr.bf16.mxu0 %v3495
    %5446 = vmatpush1.bf16.msra.mxu0 %v3494
    %5447 = vmatprep.subr.bf16.mxu0 %v3499
    %5448 = vmatpush1.bf16.msra.mxu0 %v3498
    %5449 = vmatprep.subr.bf16.mxu0 %v3503
    %5450 = vmatpush1.bf16.msra.mxu0 %v3502
    %5451 = vmatprep.subr.bf16.mxu0 %v3507
    %5452 = vmatpush1.bf16.msra.mxu0 %v3506
    %5453 = vmatprep.subr.bf16.mxu0 %v3511
    %5454 = vmatpush1.bf16.msra.mxu0 %v3510
    %5455 = vmatprep.subr.bf16.mxu0 %v3515
    %5456 = vmatpush1.bf16.msra.mxu0 %v3514
    %5457 = vmatprep.subr.bf16.mxu0 %v3519
    %5458 = vmatpush1.bf16.msra.mxu0 %v3518
    %5459 = vmatprep.subr.bf16.mxu0 %v3523
    %5460 = vmatpush1.bf16.msra.mxu0 %v3522
    %5461 = vmatprep.subr.bf16.mxu0 %v3527
    %5462 = vmatpush1.bf16.msra.mxu0 %v3526
    %5463 = vmatprep.subr.bf16.mxu0 %v3531
    %5464 = vmatpush1.bf16.msra.mxu0 %v3530
    %5465 = vmatprep.subr.bf16.mxu0 %v3535
    %5466 = vmatpush1.bf16.msra.mxu0 %v3534
    %5467 = vmatprep.subr.bf16.mxu0 %v3539
    %5468 = vmatpush1.bf16.msra.mxu0 %v3538
    %5469 = vmatprep.subr.bf16.mxu0 %v3543
    %5470 = vmatpush1.bf16.msra.mxu0 %v3542
    %5471 = vmatprep.mubr.bf16.mxu0 %v198
    %5472 = vmatmul.mubr.bf16.gmra.mrb[0].mxu0 %v197
    %v5473 = vpop.f32.mrb[0].mxu0
    %v5474 = vadd.f32 %v5433, %v5473
    %v5475 = vpop.f32.mrb[0].mxu0
    %v5476 = vadd.f32 %v5435, %v5475
    %v5477 = vpop.f32.mrb[0].mxu0
    %v5478 = vpop.f32.mrb[0].mxu0
    %5479 = vdwg.mxu0
    %5480 = vmatprep.subr.bf16.mxu0 %v3547
    %5481 = vmatpush1.bf16.msra.mxu0 %v3546
    %5482 = vmatprep.subr.bf16.mxu0 %v3551
    %5483 = vmatpush1.bf16.msra.mxu0 %v3550
    %5484 = vmatprep.subr.bf16.mxu0 %v3555
    %5485 = vmatpush1.bf16.msra.mxu0 %v3554
    %5486 = vmatprep.subr.bf16.mxu0 %v3559
    %5487 = vmatpush1.bf16.msra.mxu0 %v3558
    %5488 = vmatprep.subr.bf16.mxu0 %v3563
    %5489 = vmatpush1.bf16.msra.mxu0 %v3562
    %5490 = vmatprep.subr.bf16.mxu0 %v3567
    %5491 = vmatpush1.bf16.msra.mxu0 %v3566
    %5492 = vmatprep.subr.bf16.mxu0 %v3571
    %5493 = vmatpush1.bf16.msra.mxu0 %v3570
    %5494 = vmatprep.subr.bf16.mxu0 %v3575
    %5495 = vmatpush1.bf16.msra.mxu0 %v3574
    %5496 = vmatprep.subr.bf16.mxu0 %v3579
    %5497 = vmatpush1.bf16.msra.mxu0 %v3578
    %5498 = vmatprep.subr.bf16.mxu0 %v3583
    %5499 = vmatpush1.bf16.msra.mxu0 %v3582
    %5500 = vmatprep.subr.bf16.mxu0 %v3587
    %5501 = vmatpush1.bf16.msra.mxu0 %v3586
    %5502 = vmatprep.subr.bf16.mxu0 %v3591
    %5503 = vmatpush1.bf16.msra.mxu0 %v3590
    %5504 = vmatprep.subr.bf16.mxu0 %v3595
    %5505 = vmatpush1.bf16.msra.mxu0 %v3594
    %5506 = vmatprep.subr.bf16.mxu0 %v3599
    %5507 = vmatpush1.bf16.msra.mxu0 %v3598
    %5508 = vmatprep.subr.bf16.mxu0 %v3603
    %5509 = vmatpush1.bf16.msra.mxu0 %v3602
    %5510 = vmatprep.subr.bf16.mxu0 %v3607
    %5511 = vmatpush1.bf16.msra.mxu0 %v3606
    %5512 = vmatprep.mubr.bf16.mxu0 %v200
    %5513 = vmatmul.mubr.bf16.gmra.mrb[0].mxu0 %v199
    %v5514 = vpop.f32.mrb[0].mxu0
    %v5515 = vadd.f32 %v5474, %v5514
    %v5516 = vpop.f32.mrb[0].mxu0
    %v5517 = vadd.f32 %v5476, %v5516
    %v5518 = vpop.f32.mrb[0].mxu0
    %v5519 = vpop.f32.mrb[0].mxu0
    %5520 = vdwg.mxu0
    %5521 = vmatprep.subr.bf16.mxu0 %v3611
    %5522 = vmatpush1.bf16.msra.mxu0 %v3610
    %5523 = vmatprep.subr.bf16.mxu0 %v3615
    %5524 = vmatpush1.bf16.msra.mxu0 %v3614
    %5525 = vmatprep.subr.bf16.mxu0 %v3619
    %5526 = vmatpush1.bf16.msra.mxu0 %v3618
    %5527 = vmatprep.subr.bf16.mxu0 %v3623
    %5528 = vmatpush1.bf16.msra.mxu0 %v3622
    %5529 = vmatprep.subr.bf16.mxu0 %v3627
    %5530 = vmatpush1.bf16.msra.mxu0 %v3626
    %5531 = vmatprep.subr.bf16.mxu0 %v3631
    %5532 = vmatpush1.bf16.msra.mxu0 %v3630
    %5533 = vmatprep.subr.bf16.mxu0 %v3635
    %5534 = vmatpush1.bf16.msra.mxu0 %v3634
    %5535 = vmatprep.subr.bf16.mxu0 %v3639
    %5536 = vmatpush1.bf16.msra.mxu0 %v3638
    %5537 = vmatprep.subr.bf16.mxu0 %v3643
    %5538 = vmatpush1.bf16.msra.mxu0 %v3642
    %5539 = vmatprep.subr.bf16.mxu0 %v3647
    %5540 = vmatpush1.bf16.msra.mxu0 %v3646
    %5541 = vmatprep.subr.bf16.mxu0 %v3651
    %5542 = vmatpush1.bf16.msra.mxu0 %v3650
    %5543 = vmatprep.subr.bf16.mxu0 %v3655
    %5544 = vmatpush1.bf16.msra.mxu0 %v3654
    %5545 = vmatprep.subr.bf16.mxu0 %v3659
    %5546 = vmatpush1.bf16.msra.mxu0 %v3658
    %5547 = vmatprep.subr.bf16.mxu0 %v3663
    %5548 = vmatpush1.bf16.msra.mxu0 %v3662
    %5549 = vmatprep.subr.bf16.mxu0 %v3667
    %5550 = vmatpush1.bf16.msra.mxu0 %v3666
    %5551 = vmatprep.subr.bf16.mxu0 %v3671
    %5552 = vmatpush1.bf16.msra.mxu0 %v3670
    %5553 = vmatprep.mubr.bf16.mxu0 %v202
    %5554 = vmatmul.mubr.bf16.gmra.mrb[0].mxu0 %v201
    %v5555 = vpop.f32.mrb[0].mxu0
    %v5556 = vadd.f32 %v5515, %v5555
    %v5557 = vpop.f32.mrb[0].mxu0
    %v5558 = vadd.f32 %v5517, %v5557
    %v5559 = vpop.f32.mrb[0].mxu0
    %v5560 = vpop.f32.mrb[0].mxu0
    %5561 = vdwg.mxu0
    %5562 = vmatprep.subr.bf16.mxu0 %v3675
    %5563 = vmatpush1.bf16.msra.mxu0 %v3674
    %5564 = vmatprep.subr.bf16.mxu0 %v3679
    %5565 = vmatpush1.bf16.msra.mxu0 %v3678
    %5566 = vmatprep.subr.bf16.mxu0 %v3683
    %5567 = vmatpush1.bf16.msra.mxu0 %v3682
    %5568 = vmatprep.subr.bf16.mxu0 %v3687
    %5569 = vmatpush1.bf16.msra.mxu0 %v3686
    %5570 = vmatprep.subr.bf16.mxu0 %v3691
    %5571 = vmatpush1.bf16.msra.mxu0 %v3690
    %5572 = vmatprep.subr.bf16.mxu0 %v3695
    %5573 = vmatpush1.bf16.msra.mxu0 %v3694
    %5574 = vmatprep.subr.bf16.mxu0 %v3699
    %5575 = vmatpush1.bf16.msra.mxu0 %v3698
    %5576 = vmatprep.subr.bf16.mxu0 %v3703
    %5577 = vmatpush1.bf16.msra.mxu0 %v3702
    %5578 = vmatprep.subr.bf16.mxu0 %v3707
    %5579 = vmatpush1.bf16.msra.mxu0 %v3706
    %5580 = vmatprep.subr.bf16.mxu0 %v3711
    %5581 = vmatpush1.bf16.msra.mxu0 %v3710
    %5582 = vmatprep.subr.bf16.mxu0 %v3715
    %5583 = vmatpush1.bf16.msra.mxu0 %v3714
    %5584 = vmatprep.subr.bf16.mxu0 %v3719
    %5585 = vmatpush1.bf16.msra.mxu0 %v3718
    %5586 = vmatprep.subr.bf16.mxu0 %v3723
    %5587 = vmatpush1.bf16.msra.mxu0 %v3722
    %5588 = vmatprep.subr.bf16.mxu0 %v3727
    %5589 = vmatpush1.bf16.msra.mxu0 %v3726
    %5590 = vmatprep.subr.bf16.mxu0 %v3731
    %5591 = vmatpush1.bf16.msra.mxu0 %v3730
    %5592 = vmatprep.subr.bf16.mxu0 %v3735
    %5593 = vmatpush1.bf16.msra.mxu0 %v3734
    %5594 = vmatprep.mubr.bf16.mxu0 %v204
    %5595 = vmatmul.mubr.bf16.gmra.mrb[0].mxu0 %v203
    %v5596 = vpop.f32.mrb[0].mxu0
    %v5597 = vadd.f32 %v5556, %v5596
    %v5598 = vpop.f32.mrb[0].mxu0
    %v5599 = vadd.f32 %v5558, %v5598
    %v5600 = vpop.f32.mrb[0].mxu0
    %v5601 = vpop.f32.mrb[0].mxu0
    %5602 = vdwg.mxu0
    %5603 = vmatprep.subr.bf16.mxu0 %v3739
    %5604 = vmatpush1.bf16.msra.mxu0 %v3738
    %5605 = vmatprep.subr.bf16.mxu0 %v3743
    %5606 = vmatpush1.bf16.msra.mxu0 %v3742
    %5607 = vmatprep.subr.bf16.mxu0 %v3747
    %5608 = vmatpush1.bf16.msra.mxu0 %v3746
    %5609 = vmatprep.subr.bf16.mxu0 %v3751
    %5610 = vmatpush1.bf16.msra.mxu0 %v3750
    %5611 = vmatprep.subr.bf16.mxu0 %v3755
    %5612 = vmatpush1.bf16.msra.mxu0 %v3754
    %5613 = vmatprep.subr.bf16.mxu0 %v3759
    %5614 = vmatpush1.bf16.msra.mxu0 %v3758
    %5615 = vmatprep.subr.bf16.mxu0 %v3763
    %5616 = vmatpush1.bf16.msra.mxu0 %v3762
    %5617 = vmatprep.subr.bf16.mxu0 %v3767
    %5618 = vmatpush1.bf16.msra.mxu0 %v3766
    %5619 = vmatprep.subr.bf16.mxu0 %v3771
    %5620 = vmatpush1.bf16.msra.mxu0 %v3770
    %5621 = vmatprep.subr.bf16.mxu0 %v3775
    %5622 = vmatpush1.bf16.msra.mxu0 %v3774
    %5623 = vmatprep.subr.bf16.mxu0 %v3779
    %5624 = vmatpush1.bf16.msra.mxu0 %v3778
    %5625 = vmatprep.subr.bf16.mxu0 %v3783
    %5626 = vmatpush1.bf16.msra.mxu0 %v3782
    %5627 = vmatprep.subr.bf16.mxu0 %v3787
    %5628 = vmatpush1.bf16.msra.mxu0 %v3786
    %5629 = vmatprep.subr.bf16.mxu0 %v3791
    %5630 = vmatpush1.bf16.msra.mxu0 %v3790
    %5631 = vmatprep.subr.bf16.mxu0 %v3795
    %5632 = vmatpush1.bf16.msra.mxu0 %v3794
    %5633 = vmatprep.subr.bf16.mxu0 %v3799
    %5634 = vmatpush1.bf16.msra.mxu0 %v3798
    %5635 = vmatprep.mubr.bf16.mxu0 %v206
    %5636 = vmatmul.mubr.bf16.gmra.mrb[0].mxu0 %v205
    %v5637 = vpop.f32.mrb[0].mxu0
    %v5638 = vadd.f32 %v5597, %v5637
    %v5639 = vpop.f32.mrb[0].mxu0
    %v5640 = vadd.f32 %v5599, %v5639
    %v5641 = vpop.f32.mrb[0].mxu0
    %v5642 = vpop.f32.mrb[0].mxu0
    %5643 = vdwg.mxu0
    %5644 = vmatprep.subr.bf16.mxu0 %v3803
    %5645 = vmatpush1.bf16.msra.mxu0 %v3802
    %5646 = vmatprep.subr.bf16.mxu0 %v3807
    %5647 = vmatpush1.bf16.msra.mxu0 %v3806
    %5648 = vmatprep.subr.bf16.mxu0 %v3811
    %5649 = vmatpush1.bf16.msra.mxu0 %v3810
    %5650 = vmatprep.subr.bf16.mxu0 %v3815
    %5651 = vmatpush1.bf16.msra.mxu0 %v3814
    %5652 = vmatprep.subr.bf16.mxu0 %v3819
    %5653 = vmatpush1.bf16.msra.mxu0 %v3818
    %5654 = vmatprep.subr.bf16.mxu0 %v3823
    %5655 = vmatpush1.bf16.msra.mxu0 %v3822
    %5656 = vmatprep.subr.bf16.mxu0 %v3827
    %5657 = vmatpush1.bf16.msra.mxu0 %v3826
    %5658 = vmatprep.subr.bf16.mxu0 %v3831
    %5659 = vmatpush1.bf16.msra.mxu0 %v3830
    %5660 = vmatprep.subr.bf16.mxu0 %v3835
    %5661 = vmatpush1.bf16.msra.mxu0 %v3834
    %5662 = vmatprep.subr.bf16.mxu0 %v3839
    %5663 = vmatpush1.bf16.msra.mxu0 %v3838
    %5664 = vmatprep.subr.bf16.mxu0 %v3843
    %5665 = vmatpush1.bf16.msra.mxu0 %v3842
    %5666 = vmatprep.subr.bf16.mxu0 %v3847
    %5667 = vmatpush1.bf16.msra.mxu0 %v3846
    %5668 = vmatprep.subr.bf16.mxu0 %v3851
    %5669 = vmatpush1.bf16.msra.mxu0 %v3850
    %5670 = vmatprep.subr.bf16.mxu0 %v3855
    %5671 = vmatpush1.bf16.msra.mxu0 %v3854
    %5672 = vmatprep.subr.bf16.mxu0 %v3859
    %5673 = vmatpush1.bf16.msra.mxu0 %v3858
    %5674 = vmatprep.subr.bf16.mxu0 %v3863
    %5675 = vmatpush1.bf16.msra.mxu0 %v3862
    %5676 = vmatprep.mubr.bf16.mxu0 %v208
    %5677 = vmatmul.mubr.bf16.gmra.mrb[0].mxu0 %v207
    %v5678 = vpop.f32.mrb[0].mxu0
    %v5679 = vadd.f32 %v5638, %v5678
    %v5680 = vpop.f32.mrb[0].mxu0
    %v5681 = vadd.f32 %v5640, %v5680
    %v5682 = vpop.f32.mrb[0].mxu0
    %v5683 = vpop.f32.mrb[0].mxu0
    %5684 = vdwg.mxu0
    %5685 = vmatprep.subr.bf16.mxu0 %v3867
    %5686 = vmatpush1.bf16.msra.mxu0 %v3866
    %5687 = vmatprep.subr.bf16.mxu0 %v3871
    %5688 = vmatpush1.bf16.msra.mxu0 %v3870
    %5689 = vmatprep.subr.bf16.mxu0 %v3875
    %5690 = vmatpush1.bf16.msra.mxu0 %v3874
    %5691 = vmatprep.subr.bf16.mxu0 %v3879
    %5692 = vmatpush1.bf16.msra.mxu0 %v3878
    %5693 = vmatprep.subr.bf16.mxu0 %v3883
    %5694 = vmatpush1.bf16.msra.mxu0 %v3882
    %5695 = vmatprep.subr.bf16.mxu0 %v3887
    %5696 = vmatpush1.bf16.msra.mxu0 %v3886
    %5697 = vmatprep.subr.bf16.mxu0 %v3891
    %5698 = vmatpush1.bf16.msra.mxu0 %v3890
    %5699 = vmatprep.subr.bf16.mxu0 %v3895
    %5700 = vmatpush1.bf16.msra.mxu0 %v3894
    %5701 = vmatprep.subr.bf16.mxu0 %v3899
    %5702 = vmatpush1.bf16.msra.mxu0 %v3898
    %5703 = vmatprep.subr.bf16.mxu0 %v3903
    %5704 = vmatpush1.bf16.msra.mxu0 %v3902
    %5705 = vmatprep.subr.bf16.mxu0 %v3907
    %5706 = vmatpush1.bf16.msra.mxu0 %v3906
    %5707 = vmatprep.subr.bf16.mxu0 %v3911
    %5708 = vmatpush1.bf16.msra.mxu0 %v3910
    %5709 = vmatprep.subr.bf16.mxu0 %v3915
    %5710 = vmatpush1.bf16.msra.mxu0 %v3914
    %5711 = vmatprep.subr.bf16.mxu0 %v3919
    %5712 = vmatpush1.bf16.msra.mxu0 %v3918
    %5713 = vmatprep.subr.bf16.mxu0 %v3923
    %5714 = vmatpush1.bf16.msra.mxu0 %v3922
    %5715 = vmatprep.subr.bf16.mxu0 %v3927
    %5716 = vmatpush1.bf16.msra.mxu0 %v3926
    %5717 = vmatprep.mubr.bf16.mxu0 %v210
    %5718 = vmatmul.mubr.bf16.gmra.mrb[0].mxu0 %v209
    %v5719 = vpop.f32.mrb[0].mxu0
    %v5720 = vadd.f32 %v5679, %v5719
    %v5721 = vpop.f32.mrb[0].mxu0
    %v5722 = vadd.f32 %v5681, %v5721
    %v5723 = vpop.f32.mrb[0].mxu0
    %v5724 = vpop.f32.mrb[0].mxu0
    %5725 = vdwg.mxu0
    %5726 = vmatprep.subr.bf16.mxu0 %v3931
    %5727 = vmatpush1.bf16.msra.mxu0 %v3930
    %5728 = vmatprep.subr.bf16.mxu0 %v3935
    %5729 = vmatpush1.bf16.msra.mxu0 %v3934
    %5730 = vmatprep.subr.bf16.mxu0 %v3939
    %5731 = vmatpush1.bf16.msra.mxu0 %v3938
    %5732 = vmatprep.subr.bf16.mxu0 %v3943
    %5733 = vmatpush1.bf16.msra.mxu0 %v3942
    %5734 = vmatprep.subr.bf16.mxu0 %v3947
    %5735 = vmatpush1.bf16.msra.mxu0 %v3946
    %5736 = vmatprep.subr.bf16.mxu0 %v3951
    %5737 = vmatpush1.bf16.msra.mxu0 %v3950
    %5738 = vmatprep.subr.bf16.mxu0 %v3955
    %5739 = vmatpush1.bf16.msra.mxu0 %v3954
    %5740 = vmatprep.subr.bf16.mxu0 %v3959
    %5741 = vmatpush1.bf16.msra.mxu0 %v3958
    %5742 = vmatprep.subr.bf16.mxu0 %v3963
    %5743 = vmatpush1.bf16.msra.mxu0 %v3962
    %5744 = vmatprep.subr.bf16.mxu0 %v3967
    %5745 = vmatpush1.bf16.msra.mxu0 %v3966
    %5746 = vmatprep.subr.bf16.mxu0 %v3971
    %5747 = vmatpush1.bf16.msra.mxu0 %v3970
    %5748 = vmatprep.subr.bf16.mxu0 %v3975
    %5749 = vmatpush1.bf16.msra.mxu0 %v3974
    %5750 = vmatprep.subr.bf16.mxu0 %v3979
    %5751 = vmatpush1.bf16.msra.mxu0 %v3978
    %5752 = vmatprep.subr.bf16.mxu0 %v3983
    %5753 = vmatpush1.bf16.msra.mxu0 %v3982
    %5754 = vmatprep.subr.bf16.mxu0 %v3987
    %5755 = vmatpush1.bf16.msra.mxu0 %v3986
    %5756 = vmatprep.subr.bf16.mxu0 %v3991
    %5757 = vmatpush1.bf16.msra.mxu0 %v3990
    %5758 = vmatprep.mubr.bf16.mxu0 %v212
    %5759 = vmatmul.mubr.bf16.gmra.mrb[0].mxu0 %v211
    %v5760 = vpop.f32.mrb[0].mxu0
    %v5761 = vadd.f32 %v5720, %v5760
    %v5762 = vpop.f32.mrb[0].mxu0
    %v5763 = vadd.f32 %v5722, %v5762
    %v5764 = vpop.f32.mrb[0].mxu0
    %v5765 = vpop.f32.mrb[0].mxu0
    %5766 = vdwg.mxu0
    %5767 = vmatprep.subr.bf16.mxu0 %v3995
    %5768 = vmatpush1.bf16.msra.mxu0 %v3994
    %5769 = vmatprep.subr.bf16.mxu0 %v3999
    %5770 = vmatpush1.bf16.msra.mxu0 %v3998
    %5771 = vmatprep.subr.bf16.mxu0 %v4003
    %5772 = vmatpush1.bf16.msra.mxu0 %v4002
    %5773 = vmatprep.subr.bf16.mxu0 %v4007
    %5774 = vmatpush1.bf16.msra.mxu0 %v4006
    %5775 = vmatprep.subr.bf16.mxu0 %v4011
    %5776 = vmatpush1.bf16.msra.mxu0 %v4010
    %5777 = vmatprep.subr.bf16.mxu0 %v4015
    %5778 = vmatpush1.bf16.msra.mxu0 %v4014
    %5779 = vmatprep.subr.bf16.mxu0 %v4019
    %5780 = vmatpush1.bf16.msra.mxu0 %v4018
    %5781 = vmatprep.subr.bf16.mxu0 %v4023
    %5782 = vmatpush1.bf16.msra.mxu0 %v4022
    %5783 = vmatprep.subr.bf16.mxu0 %v4027
    %5784 = vmatpush1.bf16.msra.mxu0 %v4026
    %5785 = vmatprep.subr.bf16.mxu0 %v4031
    %5786 = vmatpush1.bf16.msra.mxu0 %v4030
    %5787 = vmatprep.subr.bf16.mxu0 %v4035
    %5788 = vmatpush1.bf16.msra.mxu0 %v4034
    %5789 = vmatprep.subr.bf16.mxu0 %v4039
    %5790 = vmatpush1.bf16.msra.mxu0 %v4038
    %5791 = vmatprep.subr.bf16.mxu0 %v4043
    %5792 = vmatpush1.bf16.msra.mxu0 %v4042
    %5793 = vmatprep.subr.bf16.mxu0 %v4047
    %5794 = vmatpush1.bf16.msra.mxu0 %v4046
    %5795 = vmatprep.subr.bf16.mxu0 %v4051
    %5796 = vmatpush1.bf16.msra.mxu0 %v4050
    %5797 = vmatprep.subr.bf16.mxu0 %v4055
    %5798 = vmatpush1.bf16.msra.mxu0 %v4054
    %5799 = vmatprep.mubr.bf16.mxu0 %v214
    %5800 = vmatmul.mubr.bf16.gmra.mrb[0].mxu0 %v213
    %v5801 = vpop.f32.mrb[0].mxu0
    %v5802 = vadd.f32 %v5761, %v5801
    %v5803 = vpop.f32.mrb[0].mxu0
    %v5804 = vadd.f32 %v5763, %v5803
    %v5805 = vpop.f32.mrb[0].mxu0
    %v5806 = vpop.f32.mrb[0].mxu0
    %5807 = vdwg.mxu0
    %v5812 = vcombine.low %v5310, %v5312
    %v5813 = vcombine.low %v5802, %v5804
    %v5815 = vunpack.c.l.s4 1983009808
    %v5816 = vunpack.c.0.s8 %v5815
    %v5817 = vlaneseq
    %v5818 = vshrl.u32 %v5817, 7
    %v5819 = vsub.s32 %v5816, %v5818
    %v5820 = vrot.slane %v5812, %v5819
    %v5822 = vunpack.c.l.s4 1983009808
    %v5823 = vunpack.c.0.s8 %v5822
    %v5824 = vlaneseq
    %v5825 = vshrl.u32 %v5824, 7
    %v5826 = vsub.s32 %v5823, %v5825
    %v5827 = vrot.slane %v5813, %v5826
    %v5828 = vcombine.low %v5820, %v5827
    %v5830 = vadd.f32 %v215, %v5828
    %5831 = vst [vmem:[#allocation2] sm:$0xff] %v5830
    // Predicated region
    $region22: #{tpu_custom_call.1} parent=1 // pred_check
      %p5832 = pneg %p45
    $region23: #{tpu_custom_call.1} parent=1 // pred_check_branch
      %5834 = sbr.rel (%p5832) target = $region25
    $region24: #{tpu_custom_call.1} parent=1 // pred_region
      %v5835 = vld [vmem:[#allocation2] sm:$0xff]
      %5836 = vst [vmem:[#allocation8] sm:$0xff] %v5835
    $region25: #{tpu_custom_call.1} parent=1 // pred_fallthru
      _
    // Predicated region
    $region26: #{tpu_custom_call.1} parent=1 // pred_check
      _
    $region27: #{tpu_custom_call.1} parent=1 // pred_check_branch
      %5838 = sbr.rel (0) target = $region29
    $region28: #{tpu_custom_call.1} parent=1 // pred_region
      %s5840 = ssub.s32 128, 128
      %5841 = vsyncadd [#allocation5], %s5840
      %s5843 = sshll.u32 [#allocation8], 4
      %s5844 = int_to_ptr.vmem [resolvable:$true] %s5843
      %5846 = dma.vmem_to_hbm [thread:$0]  %s5844, 128, %s2, [#allocation5]
    $region29: #{tpu_custom_call.1} parent=1 // pred_fallthru
      _
    // Predicated region
    $region30: #{tpu_custom_call.1} parent=1 // pred_check
      _
    $region31: #{tpu_custom_call.1} parent=1 // pred_check_branch
      %5848 = sbr.rel (0) target = $region33
    $region32: #{tpu_custom_call.1} parent=1 // pred_region
      %5849 = dma.done [#allocation5], 128
    $region33: #{tpu_custom_call.1} parent=1 // pred_fallthru
      _
    %5850 = vsyncpa [#allocation4], 1
    %5851 = vsyncpa [#allocation7], 1
    %5852 = vsyncpa [#allocation5], 1

</llo_original>
